<compile_context>
chip_gen: v7x
topology: tpu7x:2x2x1
jax: 0.10.0
libtpu: 0.0.40
codegen_flags: <defaults>
</compile_context>

<pallas_src>
import jax
import jax.numpy as jnp
from jax.experimental import pallas as pl
from jax.experimental.pallas import tpu as pltpu

_LANE = 128


# ----------------------------------------------------------------------------
# Fused kernel: upconv (2x2, stride 2) -> concat -> 3x3 conv -> bias -> ReLU
# ----------------------------------------------------------------------------
def _up_block_kernel(xm_ref, xt_ref, xb_ref, brm_ref, brt_ref, brb_ref,
                     wt_ref, bt_ref, wc_ref, bc_ref,
                     o_ref,
                     pad_ref, win_ref, acc_ref):
    # Block shapes (per grid step (n, r)):
    #   xm_ref : (1, THX, W, Cin)   x rows owned by this row tile (THX = TH//2)
    #   xt_ref : (1, 1,  W, Cin)    x row just above the tile (clamped at top)
    #   xb_ref : (1, 1,  W, Cin)    x row just below the tile (clamped at bottom)
    #   brm_ref: (1, TH, WW, Cb)    bridge rows owned by this row tile
    #   brt_ref: (1, 1,  WW, Cb)    bridge halo row above (clamped)
    #   brb_ref: (1, 1,  WW, Cb)    bridge halo row below (clamped)
    #   wt_ref : (2, Cin, 2*Cp)     upconv taps, [row-parity, cin, kj*Cp + c]
    #   bt_ref : (1, 2*Cp)          upconv bias (f32), tiled over kj
    #   wc_ref : (3, 3*2*Cp, Cp)    3x3 conv weights, [dh, dw*2*Cp + k, o]
    #   bc_ref : (1, Cp)            conv bias (f32)
    #   o_ref  : (1, TH, WW, Cp)
    #   pad_ref: (TH+2, WW+2, 2*Cp) compute-dtype scratch (zero-padded up|bridge)
    #   win_ref: (TH, WW, 3*2*Cp)   compute-dtype scratch (dw-packed conv window)
    #   acc_ref: (TH*WW, Cp)        f32 accumulator
    cdtype = pad_ref.dtype
    THX, W, Cin = xm_ref.shape[1], xm_ref.shape[2], xm_ref.shape[3]
    TH, WW, Cb = brm_ref.shape[1], brm_ref.shape[2], brm_ref.shape[3]
    Cp = o_ref.shape[3]
    C2p = 2 * Cp

    r = pl.program_id(1)
    last_r = pl.num_programs(1) - 1

    # --- transposed conv: one matmul per output-row parity --------------------
    # x rows stacked as [halo-above | tile rows | halo-below] -> (THX+2, W, Cin)
    x_ext = jnp.concatenate([xt_ref[0], xm_ref[0], xb_ref[0]], axis=0)
    x_flat = x_ext.astype(cdtype).reshape((THX + 2) * W, Cin)
    ups = []
    for ki in range(2):
        y = jnp.dot(x_flat, wt_ref[ki], preferred_element_type=jnp.float32)
        # y[a*W + w, kj*Cp + c] -> up[a, 2*w + kj, c]: single reshape, no 5-D
        # transpose.
        ups.append((y + bt_ref[...]).astype(cdtype).reshape(THX + 2, WW, Cp))
    up0, up1 = ups

    # --- scatter up | bridge into the padded concat scratch -------------------
    # interior rows: interleave the two parities along the (leading) row dim.
    mid = jnp.stack([up0[1:THX + 1], up1[1:THX + 1]], axis=1).reshape(TH, WW, Cp)
    pad_ref[1:TH + 1, 1:WW + 1, 0:Cp] = mid
    # halo rows: row above the tile has odd parity, row below has even parity.
    pad_ref[0:1, 1:WW + 1, 0:Cp] = up1[0:1]
    pad_ref[TH + 1:TH + 2, 1:WW + 1, 0:Cp] = up0[THX + 1:THX + 2]

    def bridge_block(v):
        # Lane-pad Cout -> Cp so the store is one full lane group and the
        # scratch never holds uninitialised bits that could feed the MXU.
        v = v.astype(cdtype)
        if Cb == Cp:
            return v
        z = jnp.zeros(v.shape[:-1] + (Cp - Cb,), cdtype)
        return jnp.concatenate([v, z], axis=-1)

    pad_ref[1:TH + 1, 1:WW + 1, Cp:C2p] = bridge_block(brm_ref[0])
    pad_ref[0:1, 1:WW + 1, Cp:C2p] = bridge_block(brt_ref[0])
    pad_ref[TH + 1:TH + 2, 1:WW + 1, Cp:C2p] = bridge_block(brb_ref[0])

    # --- 3x3-conv zero padding -------------------------------------------------
    # Left/right columns every step (cheap: 2*(TH+2) sublane rows).  Top/bottom
    # rows only where the tile touches the image border (elsewhere the halo
    # rows above hold real neighbour data).
    pad_ref[:, 0:1, :] = jnp.zeros((TH + 2, 1, C2p), cdtype)
    pad_ref[:, WW + 1:WW + 2, :] = jnp.zeros((TH + 2, 1, C2p), cdtype)

    @pl.when(r == 0)
    def _():
        pad_ref[0:1, :, :] = jnp.zeros((1, WW + 2, C2p), cdtype)

    @pl.when(r == last_r)
    def _():
        pad_ref[TH + 1:TH + 2, :, :] = jnp.zeros((1, WW + 2, C2p), cdtype)

    # --- 3x3 conv: 3 matmuls, the 3 width taps packed along K -----------------
    def row_partial(dh):
        for dw in range(3):
            win_ref[:, :, dw * C2p:(dw + 1) * C2p] = (
                pad_ref[dh:dh + TH, dw:dw + WW, :])
        return jnp.dot(win_ref[...].reshape(TH * WW, 3 * C2p), wc_ref[dh],
                       preferred_element_type=jnp.float32)

    acc_ref[...] = row_partial(0)
    acc_ref[...] += row_partial(1)
    res = acc_ref[...] + row_partial(2) + bc_ref[...]

    # --- bias + ReLU folded into the lane-dense output store ------------------
    o_ref[0] = jnp.maximum(res, 0.0).reshape(TH, WW, Cp).astype(o_ref.dtype)


# ----------------------------------------------------------------------------
# Wrapper (NCHW in / NCHW out, PyTorch parameter layouts)
# ----------------------------------------------------------------------------
def _vmem_bytes(TH, W, WW, Cin, Cout, Cp, in_bytes, out_bytes, c_bytes):
    """Rough per-step VMEM footprint (double-buffered operands + scratch)."""
    THX = TH // 2
    C2p = 2 * Cp
    est = 0
    est += 2 * (THX + 2) * W * Cin * in_bytes           # x tile + halo rows
    est += 2 * (TH + 2) * WW * Cout * in_bytes          # bridge tile + halo rows
    est += 2 * TH * WW * Cp * out_bytes                 # output tile
    est += 2 * (2 * Cin * C2p * c_bytes + 2 * C2p * 4   # weights / biases
                + 3 * 3 * C2p * Cp * c_bytes + Cp * 4)
    est += (TH + 2) * (WW + 2) * C2p * c_bytes          # padded concat scratch
    est += TH * WW * 3 * C2p * c_bytes                  # dw-packed window scratch
    est += TH * WW * Cp * 4                             # f32 accumulator
    est += 3 * (THX + 2) * WW * Cp * c_bytes            # in-kernel temporaries
    return est


def unet_up_block(x_nchw, bridge_nchw, params, *, row_tile=None,
                  compute_dtype=jnp.bfloat16):
    wt, bt, wc, bc = params["wt"], params["bt"], params["wc"], params["bc"]
    # wt: (Cin, Cout, 2, 2)   bt: (Cout,)    -- ConvTranspose2d
    # wc: (Cout, 2*Cout, 3, 3) bc: (Cout,)   -- Conv2d
    N, Cin, H, W = x_nchw.shape
    Cout = wt.shape[1]
    HH, WW = 2 * H, 2 * W
    assert bridge_nchw.shape == (N, Cout, HH, WW), bridge_nchw.shape

    Cp = -(-Cout // _LANE) * _LANE          # lane-pad Cout to a multiple of 128
    C2p = 2 * Cp

    in_bytes = jnp.dtype(x_nchw.dtype).itemsize
    out_bytes = in_bytes
    c_bytes = jnp.dtype(compute_dtype).itemsize

    try:
        vmem_cap = int(pltpu.get_tpu_info().vmem_capacity_bytes)
    except Exception:
        vmem_cap = 64 * 1024 * 1024         # conservative (v7x-sized) fallback

    # --- row tile: largest even divisor of HH that fits the VMEM budget -------
    if row_tile is None:
        budget = int(0.45 * vmem_cap)
        row_tile = 2
        for t in range(min(HH, 256), 1, -1):
            if (t % 2 == 0 and HH % t == 0 and
                    _vmem_bytes(t, W, WW, Cin, Cout, Cp,
                                in_bytes, out_bytes, c_bytes) <= budget):
                row_tile = t
                break
    TH = int(row_tile)
    if TH % 2 != 0 or HH % TH != 0:
        raise ValueError(f"row_tile={TH} must be even and divide 2*H={HH}")
    THX = TH // 2
    R = HH // TH

    # --- NHWC (channels -> lanes) ----------------------------------------------
    x = jnp.transpose(x_nchw, (0, 2, 3, 1))              # (N, H, W, Cin)
    br = jnp.transpose(bridge_nchw, (0, 2, 3, 1))        # (N, HH, WW, Cout)

    # --- pack / lane-pad parameters --------------------------------------------
    # ConvTranspose2d weight (Cin, Cout, 2, 2) -> wt_k[ki, cin, kj*Cp + c]
    wt_t = jnp.transpose(wt, (2, 0, 3, 1))               # (ki, Cin, kj, Cout)
    wt_k = jnp.pad(wt_t, ((0, 0), (0, 0), (0, 0), (0, Cp - Cout)))
    wt_k = wt_k.reshape(2, Cin, C2p).astype(compute_dtype)
    bt_p = jnp.pad(bt, (0, Cp - Cout)).astype(jnp.float32)
    bt_k = jnp.concatenate([bt_p, bt_p]).reshape(1, C2p)
    # Conv2d weight (Cout, 2*Cout, 3, 3) -> wc3[dh, dw*2*Cp + k, o]
    # (k < Cp: up half; Cp <= k < 2*Cp: bridge half -- matches cat([up, bridge]))
    wc_t = jnp.transpose(wc, (2, 3, 1, 0))               # (3, 3, 2*Cout, Cout)
    pad4 = ((0, 0), (0, 0), (0, Cp - Cout), (0, Cp - Cout))
    wc_up = jnp.pad(wc_t[:, :, :Cout, :], pad4)
    wc_br = jnp.pad(wc_t[:, :, Cout:, :], pad4)
    wc3 = jnp.concatenate([wc_up, wc_br], axis=2)
    wc3 = wc3.reshape(3, 3 * C2p, Cp).astype(compute_dtype)
    bc_k = jnp.pad(bc, (0, Cp - Cout)).astype(jnp.float32).reshape(1, Cp)

    # --- BlockSpecs (main tiles + clamped 1-row halo tiles) ---------------------
    x_main = pl.BlockSpec((1, THX, W, Cin), lambda n, r: (n, r, 0, 0))
    x_top = pl.BlockSpec((1, 1, W, Cin),
                         lambda n, r: (n, jnp.maximum(r * THX - 1, 0), 0, 0))
    x_bot = pl.BlockSpec((1, 1, W, Cin),
                         lambda n, r: (n, jnp.minimum((r + 1) * THX, H - 1), 0, 0))
    br_main = pl.BlockSpec((1, TH, WW, Cout), lambda n, r: (n, r, 0, 0))
    br_top = pl.BlockSpec((1, 1, WW, Cout),
                          lambda n, r: (n, jnp.maximum(r * TH - 1, 0), 0, 0))
    br_bot = pl.BlockSpec((1, 1, WW, Cout),
                          lambda n, r: (n, jnp.minimum((r + 1) * TH, HH - 1), 0, 0))
    w_specs = [
        pl.BlockSpec((2, Cin, C2p), lambda n, r: (0, 0, 0)),
        pl.BlockSpec((1, C2p), lambda n, r: (0, 0)),
        pl.BlockSpec((3, 3 * C2p, Cp), lambda n, r: (0, 0, 0)),
        pl.BlockSpec((1, Cp), lambda n, r: (0, 0)),
    ]
    out_spec = pl.BlockSpec((1, TH, WW, Cp), lambda n, r: (n, r, 0, 0))

    scratch = [
        pltpu.VMEM((TH + 2, WW + 2, C2p), compute_dtype),   # padded concat
        pltpu.VMEM((TH, WW, 3 * C2p), compute_dtype),       # dw-packed window
        pltpu.VMEM((TH * WW, Cp), jnp.float32),             # f32 accumulator
    ]

    # --- cost / VMEM hints -------------------------------------------------------
    est = _vmem_bytes(TH, W, WW, Cin, Cout, Cp, in_bytes, out_bytes, c_bytes)
    vmem_limit = int(min(max(int(1.4 * est), 32 * 1024 * 1024),
                         int(0.9 * vmem_cap)))
    flops = N * R * (2 * 2 * (THX + 2) * W * Cin * C2p
                     + 3 * 2 * TH * WW * (3 * C2p) * Cp)
    bytes_accessed = (
        N * R * ((THX + 2) * W * Cin + (TH + 2) * WW * Cout) * in_bytes
        + N * HH * WW * Cp * out_bytes
        + int(wt_k.size + wc3.size) * c_bytes
        + int(bt_k.size + bc_k.size) * 4)
    cost = pl.CostEstimate(flops=int(flops), transcendentals=0,
                           bytes_accessed=int(bytes_accessed))

    out = pl.pallas_call(
        _up_block_kernel,
        out_shape=jax.ShapeDtypeStruct((N, HH, WW, Cp), x.dtype),
        grid_spec=pltpu.PrefetchScalarGridSpec(
            num_scalar_prefetch=0,
            grid=(N, R),
            in_specs=[x_main, x_top, x_bot, br_main, br_top, br_bot, *w_specs],
            out_specs=out_spec,
            scratch_shapes=scratch,
        ),
        compiler_params=pltpu.CompilerParams(
            dimension_semantics=("parallel", "parallel"),
            vmem_limit_bytes=vmem_limit,
        ),
        cost_estimate=cost,
    )(x, x, x, br, br, br, wt_k, bt_k, wc3, bc_k)

    # drop channel padding, back to NCHW
    return jnp.transpose(out[..., :Cout], (0, 3, 1, 2))


# ----------------------------------------------------------------------------
# Pure-JAX reference (mirrors PyTorch math) for the correctness check
# ----------------------------------------------------------------------------
def _reference(x, bridge, params):
    wt, bt, wc, bc = params["wt"], params["bt"], params["wc"], params["bc"]
    N, Cin, H, W = x.shape
    Cout = wt.shape[1]
    # ConvTranspose2d, kernel 2, stride 2
    y = jnp.einsum('nchw,cokl->nohwkl', x, wt)               # (N,Cout,H,W,2,2)
    up = (y.transpose(0, 1, 2, 4, 3, 5).reshape(N, Cout, 2 * H, 2 * W)
          + bt[None, :, None, None])
    cat = jnp.concatenate([up, bridge], axis=1)              # (N,2Cout,2H,2W)
    catp = jnp.pad(cat, ((0, 0), (0, 0), (1, 1), (1, 1)))
    out = jnp.zeros((N, Cout, 2 * H, 2 * W), jnp.float32)
    for kh in range(3):
        for kw in range(3):
            win = catp[:, :, kh:kh + 2 * H, kw:kw + 2 * W]
            out = out + jnp.einsum('nchw,oc->nohw', win, wc[:, :, kh, kw])
    out = out + bc[None, :, None, None]
    return jnp.maximum(out, 0.0)


if __name__ == "__main__":
    key = jax.random.PRNGKey(0)
    k_x, k_b, k_wt, k_bt, k_wc, k_bc = jax.random.split(key, 6)

    N, in_chans, out_chans, H, W = 2, 8, 4, 8, 8

    x = jax.random.normal(k_x, (N, in_chans, H, W), jnp.float32)
    bridge = jax.random.normal(k_b, (N, out_chans, 2 * H, 2 * W), jnp.float32)

    params = {
        "wt": 0.1 * jax.random.normal(k_wt, (in_chans, out_chans, 2, 2), jnp.float32),
        "bt": 0.1 * jax.random.normal(k_bt, (out_chans,), jnp.float32),
        "wc": 0.1 * jax.random.normal(k_wc, (out_chans, 2 * out_chans, 3, 3), jnp.float32),
        "bc": 0.1 * jax.random.normal(k_bc, (out_chans,), jnp.float32),
    }

    ref = jax.block_until_ready(_reference(x, bridge, params))

    # f32 compute path: tight check of the algorithm (4 row tiles -> halo rows,
    # boundary zeroing and tile interleave all exercised).
    out_f32 = jax.block_until_ready(
        unet_up_block(x, bridge, params, row_tile=4, compute_dtype=jnp.float32))
    assert out_f32.shape == (N, out_chans, 2 * H, 2 * W), out_f32.shape
    assert jnp.allclose(out_f32, ref, rtol=1e-4, atol=1e-4), \
        float(jnp.max(jnp.abs(out_f32 - ref)))

    # default bf16 compute path (bf16 MXU inputs, f32 accumulation).
    out_bf16 = jax.block_until_ready(unet_up_block(x, bridge, params, row_tile=8))
    assert out_bf16.shape == (N, out_chans, 2 * H, 2 * W), out_bf16.shape
    assert jnp.allclose(out_bf16, ref, rtol=5e-2, atol=5e-2), \
        float(jnp.max(jnp.abs(out_bf16 - ref)))

    print("KERNEL_OK")
</pallas_src>

<mosaic_0001>
module attributes {stable_mosaic.version = 11 : i64} {
  func.func @_up_block_kernel(%arg0: i32, %arg1: i32, %arg2: memref<1x2x8x8xf32, #tpu.memory_space<vmem>>, %arg3: memref<1x1x8x8xf32, #tpu.memory_space<vmem>>, %arg4: memref<1x1x8x8xf32, #tpu.memory_space<vmem>>, %arg5: memref<1x4x16x4xf32, #tpu.memory_space<vmem>>, %arg6: memref<1x1x16x4xf32, #tpu.memory_space<vmem>>, %arg7: memref<1x1x16x4xf32, #tpu.memory_space<vmem>>, %arg8: memref<2x8x256xf32, #tpu.memory_space<vmem>>, %arg9: memref<1x256xf32, #tpu.memory_space<vmem>>, %arg10: memref<3x768x128xf32, #tpu.memory_space<vmem>>, %arg11: memref<1x128xf32, #tpu.memory_space<vmem>>, %arg12: memref<1x4x16x128xf32, #tpu.memory_space<vmem>>, %arg13: memref<6x18x256xf32, #tpu.memory_space<vmem>>, %arg14: memref<4x16x768xf32, #tpu.memory_space<vmem>>, %arg15: memref<64x128xf32, #tpu.memory_space<vmem>>) attributes {dimension_semantics = [#tpu.dimension_semantics<parallel>, #tpu.dimension_semantics<parallel>], iteration_bounds = array<i64: 2, 4>, scalar_prefetch = 0 : i64, scratch_operands = 3 : i64, tpu.core_type = #tpu.core_type<tc>, window_params = [{transform_indices = @transform_0, window_bounds = array<i64: 1, 2, 8, 8>}, {transform_indices = @transform_1, window_bounds = array<i64: 1, 1, 8, 8>}, {transform_indices = @transform_2, window_bounds = array<i64: 1, 1, 8, 8>}, {transform_indices = @transform_3, window_bounds = array<i64: 1, 4, 16, 4>}, {transform_indices = @transform_4, window_bounds = array<i64: 1, 1, 16, 4>}, {transform_indices = @transform_5, window_bounds = array<i64: 1, 1, 16, 4>}, {pipeline_mode = #tpu.pipeline_mode<synchronous>, transform_indices = @transform_6, window_bounds = array<i64: 2, 8, 256>}, {pipeline_mode = #tpu.pipeline_mode<synchronous>, transform_indices = @transform_7, window_bounds = array<i64: 1, 256>}, {pipeline_mode = #tpu.pipeline_mode<synchronous>, transform_indices = @transform_8, window_bounds = array<i64: 3, 768, 128>}, {pipeline_mode = #tpu.pipeline_mode<synchronous>, transform_indices = @transform_9, window_bounds = array<i64: 1, 128>}, {transform_indices = @transform_10, window_bounds = array<i64: 1, 4, 16, 128>}]} {
    %c0 = arith.constant 0 : index
    %c0_0 = arith.constant 0 : index
    %c0_1 = arith.constant 0 : index
    %c0_2 = arith.constant 0 : index
    %0 = vector.load %arg3[%c0, %c0_0, %c0_1, %c0_2] : memref<1x1x8x8xf32, #tpu.memory_space<vmem>>, vector<1x1x8x8xf32>
    %1 = vector.shape_cast %0 : vector<1x1x8x8xf32> to vector<1x8x8xf32>
    %c0_3 = arith.constant 0 : index
    %c0_4 = arith.constant 0 : index
    %c0_5 = arith.constant 0 : index
    %c0_6 = arith.constant 0 : index
    %2 = vector.load %arg2[%c0_3, %c0_4, %c0_5, %c0_6] : memref<1x2x8x8xf32, #tpu.memory_space<vmem>>, vector<1x2x8x8xf32>
    %3 = vector.shape_cast %2 : vector<1x2x8x8xf32> to vector<2x8x8xf32>
    %c0_7 = arith.constant 0 : index
    %c0_8 = arith.constant 0 : index
    %c0_9 = arith.constant 0 : index
    %c0_10 = arith.constant 0 : index
    %4 = vector.load %arg4[%c0_7, %c0_8, %c0_9, %c0_10] : memref<1x1x8x8xf32, #tpu.memory_space<vmem>>, vector<1x1x8x8xf32>
    %5 = vector.shape_cast %4 : vector<1x1x8x8xf32> to vector<1x8x8xf32>
    %6 = tpu.concatenate %1, %3, %5 in 0 : vector<1x8x8xf32>, vector<2x8x8xf32>, vector<1x8x8xf32> -> vector<4x8x8xf32>
    %7 = vector.shape_cast %6 : vector<4x8x8xf32> to vector<32x8xf32>
    %c0_11 = arith.constant 0 : index
    %c0_12 = arith.constant 0 : index
    %c0_13 = arith.constant 0 : index
    %8 = vector.load %arg8[%c0_11, %c0_12, %c0_13] : memref<2x8x256xf32, #tpu.memory_space<vmem>>, vector<1x8x256xf32>
    %9 = vector.shape_cast %8 : vector<1x8x256xf32> to vector<8x256xf32>
    %cst = arith.constant dense<0.000000e+00> : vector<32x256xf32>
    %10 = tpu.matmul %7, %9, %cst {dimension_numbers = #tpu.dot_dimension_numbers<[1], [0], [0], [1], [0, 0, 1, 1], [], []>} : vector<32x8xf32>, vector<8x256xf32>, vector<32x256xf32> -> vector<32x256xf32>
    %c0_14 = arith.constant 0 : index
    %c0_15 = arith.constant 0 : index
    %11 = vector.load %arg9[%c0_14, %c0_15] : memref<1x256xf32, #tpu.memory_space<vmem>>, vector<1x256xf32>
    %12 = vector.broadcast %11 : vector<1x256xf32> to vector<32x256xf32>
    %13 = arith.addf %10, %12 : vector<32x256xf32>
    %14 = vector.shape_cast %13 : vector<32x256xf32> to vector<4x16x128xf32>
    %c1 = arith.constant 1 : index
    %c0_16 = arith.constant 0 : index
    %c0_17 = arith.constant 0 : index
    %15 = vector.load %arg8[%c1, %c0_16, %c0_17] : memref<2x8x256xf32, #tpu.memory_space<vmem>>, vector<1x8x256xf32>
    %16 = vector.shape_cast %15 : vector<1x8x256xf32> to vector<8x256xf32>
    %cst_18 = arith.constant dense<0.000000e+00> : vector<32x256xf32>
    %17 = tpu.matmul %7, %16, %cst_18 {dimension_numbers = #tpu.dot_dimension_numbers<[1], [0], [0], [1], [0, 0, 1, 1], [], []>} : vector<32x8xf32>, vector<8x256xf32>, vector<32x256xf32> -> vector<32x256xf32>
    %c0_19 = arith.constant 0 : index
    %c0_20 = arith.constant 0 : index
    %18 = vector.load %arg9[%c0_19, %c0_20] : memref<1x256xf32, #tpu.memory_space<vmem>>, vector<1x256xf32>
    %19 = vector.broadcast %18 : vector<1x256xf32> to vector<32x256xf32>
    %20 = arith.addf %17, %19 : vector<32x256xf32>
    %21 = vector.shape_cast %20 : vector<32x256xf32> to vector<4x16x128xf32>
    %22 = vector.extract_strided_slice %14 {offsets = [1, 0, 0], sizes = [2, 16, 128], strides = [1, 1, 1]} : vector<4x16x128xf32> to vector<2x16x128xf32>
    %23 = vector.extract_strided_slice %21 {offsets = [1, 0, 0], sizes = [2, 16, 128], strides = [1, 1, 1]} : vector<4x16x128xf32> to vector<2x16x128xf32>
    %24 = vector.shape_cast %22 : vector<2x16x128xf32> to vector<2x1x16x128xf32>
    %25 = vector.shape_cast %23 : vector<2x16x128xf32> to vector<2x1x16x128xf32>
    %26 = tpu.concatenate %24, %25 in 1 : vector<2x1x16x128xf32>, vector<2x1x16x128xf32> -> vector<2x2x16x128xf32>
    %27 = vector.shape_cast %26 : vector<2x2x16x128xf32> to vector<4x16x128xf32>
    %c1_21 = arith.constant 1 : index
    %c1_22 = arith.constant 1 : index
    %c0_23 = arith.constant 0 : index
    %28 = vector.load %arg13[%c1_21, %c1_22, %c0_23] : memref<6x18x256xf32, #tpu.memory_space<vmem>>, vector<4x16x128xf32>
    tpu.vector_store %arg13[%c1_21, %c1_22, %c0_23], %27 {strides = array<i32>} : memref<6x18x256xf32, #tpu.memory_space<vmem>>, vector<4x16x128xf32>,
    %29 = vector.extract_strided_slice %21 {offsets = [0, 0, 0], sizes = [1, 16, 128], strides = [1, 1, 1]} : vector<4x16x128xf32> to vector<1x16x128xf32>
    %c0_24 = arith.constant 0 : index
    %c1_25 = arith.constant 1 : index
    %c0_26 = arith.constant 0 : index
    %30 = vector.load %arg13[%c0_24, %c1_25, %c0_26] : memref<6x18x256xf32, #tpu.memory_space<vmem>>, vector<1x16x128xf32>
    tpu.vector_store %arg13[%c0_24, %c1_25, %c0_26], %29 {strides = array<i32>} : memref<6x18x256xf32, #tpu.memory_space<vmem>>, vector<1x16x128xf32>,
    %31 = vector.extract_strided_slice %14 {offsets = [3, 0, 0], sizes = [1, 16, 128], strides = [1, 1, 1]} : vector<4x16x128xf32> to vector<1x16x128xf32>
    %c5 = arith.constant 5 : index
    %c1_27 = arith.constant 1 : index
    %c0_28 = arith.constant 0 : index
    %32 = vector.load %arg13[%c5, %c1_27, %c0_28] : memref<6x18x256xf32, #tpu.memory_space<vmem>>, vector<1x16x128xf32>
    tpu.vector_store %arg13[%c5, %c1_27, %c0_28], %31 {strides = array<i32>} : memref<6x18x256xf32, #tpu.memory_space<vmem>>, vector<1x16x128xf32>,
    %c0_29 = arith.constant 0 : index
    %c0_30 = arith.constant 0 : index
    %c0_31 = arith.constant 0 : index
    %c0_32 = arith.constant 0 : index
    %33 = vector.load %arg5[%c0_29, %c0_30, %c0_31, %c0_32] : memref<1x4x16x4xf32, #tpu.memory_space<vmem>>, vector<1x4x16x4xf32>
    %34 = vector.shape_cast %33 : vector<1x4x16x4xf32> to vector<4x16x4xf32>
    %cst_33 = arith.constant 0.000000e+00 : f32
    %35 = vector.broadcast %cst_33 : f32 to vector<4x16x124xf32>
    %36 = tpu.concatenate %34, %35 in 2 : vector<4x16x4xf32>, vector<4x16x124xf32> -> vector<4x16x128xf32>
    %c1_34 = arith.constant 1 : index
    %c1_35 = arith.constant 1 : index
    %c128 = arith.constant 128 : index
    %37 = vector.load %arg13[%c1_34, %c1_35, %c128] : memref<6x18x256xf32, #tpu.memory_space<vmem>>, vector<4x16x128xf32>
    tpu.vector_store %arg13[%c1_34, %c1_35, %c128], %36 {strides = array<i32>} : memref<6x18x256xf32, #tpu.memory_space<vmem>>, vector<4x16x128xf32>,
    %c0_36 = arith.constant 0 : index
    %c0_37 = arith.constant 0 : index
    %c0_38 = arith.constant 0 : index
    %c0_39 = arith.constant 0 : index
    %38 = vector.load %arg6[%c0_36, %c0_37, %c0_38, %c0_39] : memref<1x1x16x4xf32, #tpu.memory_space<vmem>>, vector<1x1x16x4xf32>
    %39 = vector.shape_cast %38 : vector<1x1x16x4xf32> to vector<1x16x4xf32>
    %cst_40 = arith.constant 0.000000e+00 : f32
    %40 = vector.broadcast %cst_40 : f32 to vector<1x16x124xf32>
    %41 = tpu.concatenate %39, %40 in 2 : vector<1x16x4xf32>, vector<1x16x124xf32> -> vector<1x16x128xf32>
    %c0_41 = arith.constant 0 : index
    %c1_42 = arith.constant 1 : index
    %c128_43 = arith.constant 128 : index
    %42 = vector.load %arg13[%c0_41, %c1_42, %c128_43] : memref<6x18x256xf32, #tpu.memory_space<vmem>>, vector<1x16x128xf32>
    tpu.vector_store %arg13[%c0_41, %c1_42, %c128_43], %41 {strides = array<i32>} : memref<6x18x256xf32, #tpu.memory_space<vmem>>, vector<1x16x128xf32>,
    %c0_44 = arith.constant 0 : index
    %c0_45 = arith.constant 0 : index
    %c0_46 = arith.constant 0 : index
    %c0_47 = arith.constant 0 : index
    %43 = vector.load %arg7[%c0_44, %c0_45, %c0_46, %c0_47] : memref<1x1x16x4xf32, #tpu.memory_space<vmem>>, vector<1x1x16x4xf32>
    %44 = vector.shape_cast %43 : vector<1x1x16x4xf32> to vector<1x16x4xf32>
    %cst_48 = arith.constant 0.000000e+00 : f32
    %45 = vector.broadcast %cst_48 : f32 to vector<1x16x124xf32>
    %46 = tpu.concatenate %44, %45 in 2 : vector<1x16x4xf32>, vector<1x16x124xf32> -> vector<1x16x128xf32>
    %c5_49 = arith.constant 5 : index
    %c1_50 = arith.constant 1 : index
    %c128_51 = arith.constant 128 : index
    %47 = vector.load %arg13[%c5_49, %c1_50, %c128_51] : memref<6x18x256xf32, #tpu.memory_space<vmem>>, vector<1x16x128xf32>
    tpu.vector_store %arg13[%c5_49, %c1_50, %c128_51], %46 {strides = array<i32>} : memref<6x18x256xf32, #tpu.memory_space<vmem>>, vector<1x16x128xf32>,
    %cst_52 = arith.constant 0.000000e+00 : f32
    %48 = vector.broadcast %cst_52 : f32 to vector<6x1x256xf32>
    %c0_53 = arith.constant 0 : index
    %c0_54 = arith.constant 0 : index
    %c0_55 = arith.constant 0 : index
    %49 = vector.load %arg13[%c0_53, %c0_54, %c0_55] : memref<6x18x256xf32, #tpu.memory_space<vmem>>, vector<6x1x256xf32>
    tpu.vector_store %arg13[%c0_53, %c0_54, %c0_55], %48 {strides = array<i32>} : memref<6x18x256xf32, #tpu.memory_space<vmem>>, vector<6x1x256xf32>,
    %cst_56 = arith.constant 0.000000e+00 : f32
    %50 = vector.broadcast %cst_56 : f32 to vector<6x1x256xf32>
    %c0_57 = arith.constant 0 : index
    %c17 = arith.constant 17 : index
    %c0_58 = arith.constant 0 : index
    %51 = vector.load %arg13[%c0_57, %c17, %c0_58] : memref<6x18x256xf32, #tpu.memory_space<vmem>>, vector<6x1x256xf32>
    tpu.vector_store %arg13[%c0_57, %c17, %c0_58], %50 {strides = array<i32>} : memref<6x18x256xf32, #tpu.memory_space<vmem>>, vector<6x1x256xf32>,
    %c0_i32 = arith.constant 0 : i32
    %52 = arith.cmpi eq, %arg1, %c0_i32 : i32
    %53 = arith.extui %52 : i1 to i32
    %c0_i32_59 = arith.constant 0 : i32
    %54 = arith.cmpi ne, %53, %c0_i32_59 : i32
    scf.if %54 {
      %cst_148 = arith.constant 0.000000e+00 : f32
      %106 = vector.broadcast %cst_148 : f32 to vector<1x18x256xf32>
      %c0_149 = arith.constant 0 : index
      %c0_150 = arith.constant 0 : index
      %c0_151 = arith.constant 0 : index
      %107 = vector.load %arg13[%c0_149, %c0_150, %c0_151] : memref<6x18x256xf32, #tpu.memory_space<vmem>>, vector<1x18x256xf32>
      tpu.vector_store %arg13[%c0_149, %c0_150, %c0_151], %106 {strides = array<i32>} : memref<6x18x256xf32, #tpu.memory_space<vmem>>, vector<1x18x256xf32>,
    } else {
    }
    %c3_i32 = arith.constant 3 : i32
    %55 = arith.cmpi eq, %arg1, %c3_i32 : i32
    %56 = arith.extui %55 : i1 to i32
    %c0_i32_60 = arith.constant 0 : i32
    %57 = arith.cmpi ne, %56, %c0_i32_60 : i32
    scf.if %57 {
      %cst_148 = arith.constant 0.000000e+00 : f32
      %106 = vector.broadcast %cst_148 : f32 to vector<1x18x256xf32>
      %c5_149 = arith.constant 5 : index
      %c0_150 = arith.constant 0 : index
      %c0_151 = arith.constant 0 : index
      %107 = vector.load %arg13[%c5_149, %c0_150, %c0_151] : memref<6x18x256xf32, #tpu.memory_space<vmem>>, vector<1x18x256xf32>
      tpu.vector_store %arg13[%c5_149, %c0_150, %c0_151], %106 {strides = array<i32>} : memref<6x18x256xf32, #tpu.memory_space<vmem>>, vector<1x18x256xf32>,
    } else {
    }
    %c0_61 = arith.constant 0 : index
    %c0_62 = arith.constant 0 : index
    %c0_63 = arith.constant 0 : index
    %58 = vector.load %arg13[%c0_61, %c0_62, %c0_63] : memref<6x18x256xf32, #tpu.memory_space<vmem>>, vector<4x16x256xf32>
    %c0_64 = arith.constant 0 : index
    %c0_65 = arith.constant 0 : index
    %c0_66 = arith.constant 0 : index
    %59 = vector.load %arg14[%c0_64, %c0_65, %c0_66] : memref<4x16x768xf32, #tpu.memory_space<vmem>>, vector<4x16x256xf32>
    tpu.vector_store %arg14[%c0_64, %c0_65, %c0_66], %58 {strides = array<i32>} : memref<4x16x768xf32, #tpu.memory_space<vmem>>, vector<4x16x256xf32>,
    %c0_67 = arith.constant 0 : index
    %c1_68 = arith.constant 1 : index
    %c0_69 = arith.constant 0 : index
    %60 = vector.load %arg13[%c0_67, %c1_68, %c0_69] : memref<6x18x256xf32, #tpu.memory_space<vmem>>, vector<4x16x256xf32>
    %c0_70 = arith.constant 0 : index
    %c0_71 = arith.constant 0 : index
    %c256 = arith.constant 256 : index
    %61 = vector.load %arg14[%c0_70, %c0_71, %c256] : memref<4x16x768xf32, #tpu.memory_space<vmem>>, vector<4x16x256xf32>
    tpu.vector_store %arg14[%c0_70, %c0_71, %c256], %60 {strides = array<i32>} : memref<4x16x768xf32, #tpu.memory_space<vmem>>, vector<4x16x256xf32>,
    %c0_72 = arith.constant 0 : index
    %c2 = arith.constant 2 : index
    %c0_73 = arith.constant 0 : index
    %62 = vector.load %arg13[%c0_72, %c2, %c0_73] : memref<6x18x256xf32, #tpu.memory_space<vmem>>, vector<4x16x256xf32>
    %c0_74 = arith.constant 0 : index
    %c0_75 = arith.constant 0 : index
    %c512 = arith.constant 512 : index
    %63 = vector.load %arg14[%c0_74, %c0_75, %c512] : memref<4x16x768xf32, #tpu.memory_space<vmem>>, vector<4x16x256xf32>
    tpu.vector_store %arg14[%c0_74, %c0_75, %c512], %62 {strides = array<i32>} : memref<4x16x768xf32, #tpu.memory_space<vmem>>, vector<4x16x256xf32>,
    %c0_76 = arith.constant 0 : index
    %c0_77 = arith.constant 0 : index
    %c0_78 = arith.constant 0 : index
    %64 = vector.load %arg14[%c0_76, %c0_77, %c0_78] : memref<4x16x768xf32, #tpu.memory_space<vmem>>, vector<4x16x768xf32>
    %65 = vector.shape_cast %64 : vector<4x16x768xf32> to vector<64x768xf32>
    %c0_79 = arith.constant 0 : index
    %c0_80 = arith.constant 0 : index
    %c0_81 = arith.constant 0 : index
    %66 = vector.load %arg10[%c0_79, %c0_80, %c0_81] : memref<3x768x128xf32, #tpu.memory_space<vmem>>, vector<1x768x128xf32>
    %67 = vector.shape_cast %66 : vector<1x768x128xf32> to vector<768x128xf32>
    %cst_82 = arith.constant dense<0.000000e+00> : vector<64x128xf32>
    %68 = tpu.matmul %65, %67, %cst_82 {dimension_numbers = #tpu.dot_dimension_numbers<[1], [0], [0], [1], [0, 0, 1, 1], [], []>} : vector<64x768xf32>, vector<768x128xf32>, vector<64x128xf32> -> vector<64x128xf32>
    %c0_83 = arith.constant 0 : index
    %c0_84 = arith.constant 0 : index
    %69 = vector.load %arg15[%c0_83, %c0_84] : memref<64x128xf32, #tpu.memory_space<vmem>>, vector<64x128xf32>
    tpu.vector_store %arg15[%c0_83, %c0_84], %68 {strides = array<i32>} : memref<64x128xf32, #tpu.memory_space<vmem>>, vector<64x128xf32>,
    %c0_85 = arith.constant 0 : index
    %c0_86 = arith.constant 0 : index
    %70 = vector.load %arg15[%c0_85, %c0_86] : memref<64x128xf32, #tpu.memory_space<vmem>>, vector<64x128xf32>
    %c1_87 = arith.constant 1 : index
    %c0_88 = arith.constant 0 : index
    %c0_89 = arith.constant 0 : index
    %71 = vector.load %arg13[%c1_87, %c0_88, %c0_89] : memref<6x18x256xf32, #tpu.memory_space<vmem>>, vector<4x16x256xf32>
    %c0_90 = arith.constant 0 : index
    %c0_91 = arith.constant 0 : index
    %c0_92 = arith.constant 0 : index
    %72 = vector.load %arg14[%c0_90, %c0_91, %c0_92] : memref<4x16x768xf32, #tpu.memory_space<vmem>>, vector<4x16x256xf32>
    tpu.vector_store %arg14[%c0_90, %c0_91, %c0_92], %71 {strides = array<i32>} : memref<4x16x768xf32, #tpu.memory_space<vmem>>, vector<4x16x256xf32>,
    %c1_93 = arith.constant 1 : index
    %c1_94 = arith.constant 1 : index
    %c0_95 = arith.constant 0 : index
    %73 = vector.load %arg13[%c1_93, %c1_94, %c0_95] : memref<6x18x256xf32, #tpu.memory_space<vmem>>, vector<4x16x256xf32>
    %c0_96 = arith.constant 0 : index
    %c0_97 = arith.constant 0 : index
    %c256_98 = arith.constant 256 : index
    %74 = vector.load %arg14[%c0_96, %c0_97, %c256_98] : memref<4x16x768xf32, #tpu.memory_space<vmem>>, vector<4x16x256xf32>
    tpu.vector_store %arg14[%c0_96, %c0_97, %c256_98], %73 {strides = array<i32>} : memref<4x16x768xf32, #tpu.memory_space<vmem>>, vector<4x16x256xf32>,
    %c1_99 = arith.constant 1 : index
    %c2_100 = arith.constant 2 : index
    %c0_101 = arith.constant 0 : index
    %75 = vector.load %arg13[%c1_99, %c2_100, %c0_101] : memref<6x18x256xf32, #tpu.memory_space<vmem>>, vector<4x16x256xf32>
    %c0_102 = arith.constant 0 : index
    %c0_103 = arith.constant 0 : index
    %c512_104 = arith.constant 512 : index
    %76 = vector.load %arg14[%c0_102, %c0_103, %c512_104] : memref<4x16x768xf32, #tpu.memory_space<vmem>>, vector<4x16x256xf32>
    tpu.vector_store %arg14[%c0_102, %c0_103, %c512_104], %75 {strides = array<i32>} : memref<4x16x768xf32, #tpu.memory_space<vmem>>, vector<4x16x256xf32>,
    %c0_105 = arith.constant 0 : index
    %c0_106 = arith.constant 0 : index
    %c0_107 = arith.constant 0 : index
    %77 = vector.load %arg14[%c0_105, %c0_106, %c0_107] : memref<4x16x768xf32, #tpu.memory_space<vmem>>, vector<4x16x768xf32>
    %78 = vector.shape_cast %77 : vector<4x16x768xf32> to vector<64x768xf32>
    %c1_108 = arith.constant 1 : index
    %c0_109 = arith.constant 0 : index
    %c0_110 = arith.constant 0 : index
    %79 = vector.load %arg10[%c1_108, %c0_109, %c0_110] : memref<3x768x128xf32, #tpu.memory_space<vmem>>, vector<1x768x128xf32>
    %80 = vector.shape_cast %79 : vector<1x768x128xf32> to vector<768x128xf32>
    %cst_111 = arith.constant dense<0.000000e+00> : vector<64x128xf32>
    %81 = tpu.matmul %78, %80, %cst_111 {dimension_numbers = #tpu.dot_dimension_numbers<[1], [0], [0], [1], [0, 0, 1, 1], [], []>} : vector<64x768xf32>, vector<768x128xf32>, vector<64x128xf32> -> vector<64x128xf32>
    %82 = arith.addf %70, %81 : vector<64x128xf32>
    %c0_112 = arith.constant 0 : index
    %c0_113 = arith.constant 0 : index
    %83 = vector.load %arg15[%c0_112, %c0_113] : memref<64x128xf32, #tpu.memory_space<vmem>>, vector<64x128xf32>
    tpu.vector_store %arg15[%c0_112, %c0_113], %82 {strides = array<i32>} : memref<64x128xf32, #tpu.memory_space<vmem>>, vector<64x128xf32>,
    %c0_114 = arith.constant 0 : index
    %c0_115 = arith.constant 0 : index
    %84 = vector.load %arg15[%c0_114, %c0_115] : memref<64x128xf32, #tpu.memory_space<vmem>>, vector<64x128xf32>
    %c2_116 = arith.constant 2 : index
    %c0_117 = arith.constant 0 : index
    %c0_118 = arith.constant 0 : index
    %85 = vector.load %arg13[%c2_116, %c0_117, %c0_118] : memref<6x18x256xf32, #tpu.memory_space<vmem>>, vector<4x16x256xf32>
    %c0_119 = arith.constant 0 : index
    %c0_120 = arith.constant 0 : index
    %c0_121 = arith.constant 0 : index
    %86 = vector.load %arg14[%c0_119, %c0_120, %c0_121] : memref<4x16x768xf32, #tpu.memory_space<vmem>>, vector<4x16x256xf32>
    tpu.vector_store %arg14[%c0_119, %c0_120, %c0_121], %85 {strides = array<i32>} : memref<4x16x768xf32, #tpu.memory_space<vmem>>, vector<4x16x256xf32>,
    %c2_122 = arith.constant 2 : index
    %c1_123 = arith.constant 1 : index
    %c0_124 = arith.constant 0 : index
    %87 = vector.load %arg13[%c2_122, %c1_123, %c0_124] : memref<6x18x256xf32, #tpu.memory_space<vmem>>, vector<4x16x256xf32>
    %c0_125 = arith.constant 0 : index
    %c0_126 = arith.constant 0 : index
    %c256_127 = arith.constant 256 : index
    %88 = vector.load %arg14[%c0_125, %c0_126, %c256_127] : memref<4x16x768xf32, #tpu.memory_space<vmem>>, vector<4x16x256xf32>
    tpu.vector_store %arg14[%c0_125, %c0_126, %c256_127], %87 {strides = array<i32>} : memref<4x16x768xf32, #tpu.memory_space<vmem>>, vector<4x16x256xf32>,
    %c2_128 = arith.constant 2 : index
    %c2_129 = arith.constant 2 : index
    %c0_130 = arith.constant 0 : index
    %89 = vector.load %arg13[%c2_128, %c2_129, %c0_130] : memref<6x18x256xf32, #tpu.memory_space<vmem>>, vector<4x16x256xf32>
    %c0_131 = arith.constant 0 : index
    %c0_132 = arith.constant 0 : index
    %c512_133 = arith.constant 512 : index
    %90 = vector.load %arg14[%c0_131, %c0_132, %c512_133] : memref<4x16x768xf32, #tpu.memory_space<vmem>>, vector<4x16x256xf32>
    tpu.vector_store %arg14[%c0_131, %c0_132, %c512_133], %89 {strides = array<i32>} : memref<4x16x768xf32, #tpu.memory_space<vmem>>, vector<4x16x256xf32>,
    %c0_134 = arith.constant 0 : index
    %c0_135 = arith.constant 0 : index
    %c0_136 = arith.constant 0 : index
    %91 = vector.load %arg14[%c0_134, %c0_135, %c0_136] : memref<4x16x768xf32, #tpu.memory_space<vmem>>, vector<4x16x768xf32>
    %92 = vector.shape_cast %91 : vector<4x16x768xf32> to vector<64x768xf32>
    %c2_137 = arith.constant 2 : index
    %c0_138 = arith.constant 0 : index
    %c0_139 = arith.constant 0 : index
    %93 = vector.load %arg10[%c2_137, %c0_138, %c0_139] : memref<3x768x128xf32, #tpu.memory_space<vmem>>, vector<1x768x128xf32>
    %94 = vector.shape_cast %93 : vector<1x768x128xf32> to vector<768x128xf32>
    %cst_140 = arith.constant dense<0.000000e+00> : vector<64x128xf32>
    %95 = tpu.matmul %92, %94, %cst_140 {dimension_numbers = #tpu.dot_dimension_numbers<[1], [0], [0], [1], [0, 0, 1, 1], [], []>} : vector<64x768xf32>, vector<768x128xf32>, vector<64x128xf32> -> vector<64x128xf32>
    %96 = arith.addf %84, %95 : vector<64x128xf32>
    %c0_141 = arith.constant 0 : index
    %c0_142 = arith.constant 0 : index
    %97 = vector.load %arg11[%c0_141, %c0_142] : memref<1x128xf32, #tpu.memory_space<vmem>>, vector<1x128xf32>
    %98 = vector.broadcast %97 : vector<1x128xf32> to vector<64x128xf32>
    %99 = arith.addf %96, %98 : vector<64x128xf32>
    %cst_143 = arith.constant 0.000000e+00 : f32
    %100 = vector.broadcast %cst_143 : f32 to vector<64x128xf32>
    %101 = arith.maximumf %99, %100 : vector<64x128xf32>
    %102 = vector.shape_cast %101 : vector<64x128xf32> to vector<4x16x128xf32>
    %c0_144 = arith.constant 0 : index
    %c0_145 = arith.constant 0 : index
    %c0_146 = arith.constant 0 : index
    %c0_147 = arith.constant 0 : index
    %103 = vector.load %arg12[%c0_144, %c0_145, %c0_146, %c0_147] : memref<1x4x16x128xf32, #tpu.memory_space<vmem>>, vector<1x4x16x128xf32>
    %104 = vector.shape_cast %103 : vector<1x4x16x128xf32> to vector<4x16x128xf32>
    %105 = vector.shape_cast %102 : vector<4x16x128xf32> to vector<1x4x16x128xf32>
    tpu.vector_store %arg12[%c0_144, %c0_145, %c0_146, %c0_147], %105 {strides = array<i32>} : memref<1x4x16x128xf32, #tpu.memory_space<vmem>>, vector<1x4x16x128xf32>,
    return
  }
  func.func @transform_0(%arg0: i32, %arg1: i32) -> (i32, i32, i32, i32) {
    %c0_i32 = arith.constant 0 : i32
    %c0_i32_0 = arith.constant 0 : i32
    %c0_i32_1 = arith.constant 0 : i32
    return %arg0, %arg1, %c0_i32, %c0_i32_0 : i32, i32, i32, i32
  }
  func.func @transform_1(%arg0: i32, %arg1: i32) -> (i32, i32, i32, i32) {
    %c2_i32 = arith.constant 2 : i32
    %0 = arith.muli %arg1, %c2_i32 : i32
    %c1_i32 = arith.constant 1 : i32
    %1 = arith.subi %0, %c1_i32 : i32
    %c0_i32 = arith.constant 0 : i32
    %2 = arith.maxsi %1, %c0_i32 : i32
    %c0_i32_0 = arith.constant 0 : i32
    %c0_i32_1 = arith.constant 0 : i32
    %c0_i32_2 = arith.constant 0 : i32
    return %arg0, %2, %c0_i32_0, %c0_i32_1 : i32, i32, i32, i32
  }
  func.func @transform_2(%arg0: i32, %arg1: i32) -> (i32, i32, i32, i32) {
    %c1_i32 = arith.constant 1 : i32
    %0 = arith.addi %arg1, %c1_i32 : i32
    %c2_i32 = arith.constant 2 : i32
    %1 = arith.muli %0, %c2_i32 : i32
    %c7_i32 = arith.constant 7 : i32
    %2 = arith.minsi %1, %c7_i32 : i32
    %c0_i32 = arith.constant 0 : i32
    %c0_i32_0 = arith.constant 0 : i32
    %c0_i32_1 = arith.constant 0 : i32
    return %arg0, %2, %c0_i32, %c0_i32_0 : i32, i32, i32, i32
  }
  func.func @transform_3(%arg0: i32, %arg1: i32) -> (i32, i32, i32, i32) {
    %c0_i32 = arith.constant 0 : i32
    %c0_i32_0 = arith.constant 0 : i32
    %c0_i32_1 = arith.constant 0 : i32
    return %arg0, %arg1, %c0_i32, %c0_i32_0 : i32, i32, i32, i32
  }
  func.func @transform_4(%arg0: i32, %arg1: i32) -> (i32, i32, i32, i32) {
    %c4_i32 = arith.constant 4 : i32
    %0 = arith.muli %arg1, %c4_i32 : i32
    %c1_i32 = arith.constant 1 : i32
    %1 = arith.subi %0, %c1_i32 : i32
    %c0_i32 = arith.constant 0 : i32
    %2 = arith.maxsi %1, %c0_i32 : i32
    %c0_i32_0 = arith.constant 0 : i32
    %c0_i32_1 = arith.constant 0 : i32
    %c0_i32_2 = arith.constant 0 : i32
    return %arg0, %2, %c0_i32_0, %c0_i32_1 : i32, i32, i32, i32
  }
  func.func @transform_5(%arg0: i32, %arg1: i32) -> (i32, i32, i32, i32) {
    %c1_i32 = arith.constant 1 : i32
    %0 = arith.addi %arg1, %c1_i32 : i32
    %c4_i32 = arith.constant 4 : i32
    %1 = arith.muli %0, %c4_i32 : i32
    %c15_i32 = arith.constant 15 : i32
    %2 = arith.minsi %1, %c15_i32 : i32
    %c0_i32 = arith.constant 0 : i32
    %c0_i32_0 = arith.constant 0 : i32
    %c0_i32_1 = arith.constant 0 : i32
    return %arg0, %2, %c0_i32, %c0_i32_0 : i32, i32, i32, i32
  }
  func.func @transform_6(%arg0: i32, %arg1: i32) -> (i32, i32, i32) {
    %c0_i32 = arith.constant 0 : i32
    %c0_i32_0 = arith.constant 0 : i32
    %c0_i32_1 = arith.constant 0 : i32
    %c0_i32_2 = arith.constant 0 : i32
    return %c0_i32, %c0_i32_0, %c0_i32_1 : i32, i32, i32
  }
  func.func @transform_7(%arg0: i32, %arg1: i32) -> (i32, i32) {
    %c0_i32 = arith.constant 0 : i32
    %c0_i32_0 = arith.constant 0 : i32
    %c0_i32_1 = arith.constant 0 : i32
    return %c0_i32, %c0_i32_0 : i32, i32
  }
  func.func @transform_8(%arg0: i32, %arg1: i32) -> (i32, i32, i32) {
    %c0_i32 = arith.constant 0 : i32
    %c0_i32_0 = arith.constant 0 : i32
    %c0_i32_1 = arith.constant 0 : i32
    %c0_i32_2 = arith.constant 0 : i32
    return %c0_i32, %c0_i32_0, %c0_i32_1 : i32, i32, i32
  }
  func.func @transform_9(%arg0: i32, %arg1: i32) -> (i32, i32) {
    %c0_i32 = arith.constant 0 : i32
    %c0_i32_0 = arith.constant 0 : i32
    %c0_i32_1 = arith.constant 0 : i32
    return %c0_i32, %c0_i32_0 : i32, i32
  }
  func.func @transform_10(%arg0: i32, %arg1: i32) -> (i32, i32, i32, i32) {
    %c0_i32 = arith.constant 0 : i32
    %c0_i32_0 = arith.constant 0 : i32
    %c0_i32_1 = arith.constant 0 : i32
    return %arg0, %arg1, %c0_i32, %c0_i32_0 : i32, i32, i32, i32
  }
}

</mosaic_0001>

<llo_original>
// kernel: tpu_custom_call.1
$region0: #{tpu_custom_call.1}
  #allocation0 [shape = 'u32[]', space=smem, size = 0x4, offset = 0x4, fixed_abs, tag = 'smem constant byte address 0x4 - core index']
  #allocation1 [shape = 'u32[144,128]{1,0:T(1,128)}', space=vmem, size = 0x12000, scoped, tag = 'internal scratch']
  #allocation2 [shape = 'f32[6,18,256]{2,1,0:T(8,128)}', space=vmem, size = 0x24000, scoped, tag = 'scratch operand']
  #allocation3 [shape = 'f32[4,16,768]{2,1,0:T(8,128)}', space=vmem, size = 0x30000, scoped, tag = 'scratch operand']
  #allocation4 [shape = 'f32[64,128]{1,0:T(8,128)}', space=vmem, size = 0x8000, scoped, tag = 'scratch operand']
  %s0 = inlined_call_operand.hbm [shape: f32[2,8,8,8], index: 0, kind: input, shape index: {}]
  %s1 = inlined_call_operand.hbm [shape: f32[2,8,8,8], index: 1, kind: input, shape index: {}]
  %s2 = inlined_call_operand.hbm [shape: f32[2,8,8,8], index: 2, kind: input, shape index: {}]
  %s3 = inlined_call_operand.vmem [shape: f32[2,16,16,4], index: 3, kind: input, shape index: {}]
  %s4 = inlined_call_operand.vmem [shape: f32[2,16,16,4], index: 4, kind: input, shape index: {}]
  %s5 = inlined_call_operand.vmem [shape: f32[2,16,16,4], index: 5, kind: input, shape index: {}]
  %s6 = inlined_call_operand.hbm [shape: f32[2,8,256], index: 6, kind: input, shape index: {}]
  %s7 = inlined_call_operand.hbm [shape: f32[1,256], index: 7, kind: input, shape index: {}]
  %s8 = inlined_call_operand.hbm [shape: f32[3,768,128], index: 8, kind: input, shape index: {}]
  %s9 = inlined_call_operand.hbm [shape: f32[1,128], index: 9, kind: input, shape index: {}]
  %s10 = inlined_call_operand.hbm [shape: f32[2,16,16,128], index: 10, kind: output, shape index: {}]
  %s11 = sld [smem:[#allocation0]]
  $region109: #{tpu_custom_call.1} parent=0
    _
  %s13 = ssub.s32 1, %s11
  %s14 = scalar_select 0, %s13, %s11
  $region1: #{tpu_custom_call.1} parent=0
    #allocation5 [shape = 'u8[16384]{0}', space=vmem, size = 0x4000, scoped, tag = 'input window, operand 0']
    #allocation6 [shape = 's32[2]{0}', space=sflag, size = 0x8, scoped, tag = 'scoped memory for tpu_custom_call.1']
    #allocation7 [shape = 's32[2]{0}', space=sflag, size = 0x8, scoped, tag = 'scoped memory for tpu_custom_call.1']
    #allocation8 [shape = 'u8[8192]{0}', space=vmem, size = 0x2000, scoped, tag = 'input window, operand 1']
    #allocation9 [shape = 's32[2]{0}', space=sflag, size = 0x8, scoped, tag = 'scoped memory for tpu_custom_call.1']
    #allocation10 [shape = 'u8[8192]{0}', space=vmem, size = 0x2000, scoped, tag = 'input window, operand 2']
    #allocation11 [shape = 'u8[16384]{0}', space=vmem, size = 0x4000, scoped, tag = 'input window, operand 6, single buffered']
    #allocation12 [shape = 's32[1]{0}', space=sflag, size = 0x4, scoped, tag = 'scoped memory for tpu_custom_call.1']
    #allocation13 [shape = 'u8[1024]{0}', space=vmem, size = 0x400, scoped, tag = 'input window, operand 7, single buffered']
    #allocation14 [shape = 'u8[1179648]{0}', space=vmem, size = 0x120000, scoped, tag = 'input window, operand 8, single buffered']
    #allocation15 [shape = 's32[1]{0}', space=sflag, size = 0x4, scoped, tag = 'scoped memory for tpu_custom_call.1']
    #allocation16 [shape = 'u8[512]{0}', space=vmem, size = 0x400, scoped, tag = 'input window, operand 9, single buffered']
    #allocation17 [shape = 'u8[65536]{0}', space=vmem, size = 0x10000, scoped, tag = 'output window, operand 0']
    %15 = vsyncpa [#allocation6], 0
    %s16 = scalar_lea.sflag [#allocation6], 1
    %17 = vsyncpa %s16, 0
    %18 = vsyncpa [#allocation9], 0
    %s19 = scalar_lea.sflag [#allocation9], 1
    %20 = vsyncpa %s19, 0
    %21 = vsyncpa [#allocation12], 0
    %22 = vsyncpa [#allocation15], 0
    %23 = vsyncpa [#allocation7], 0
    %s24 = scalar_lea.sflag [#allocation7], 1
    %25 = vsyncpa %s24, 0
    loop: start=0, step=1, limit=10
    $region2: #{tpu_custom_call.1} parent=1 // loop_pre_header
      _
    $region3: #{tpu_custom_call.1} parent=1 // loop_header
      %s27 = sphi 0, %s31
      %p28 = scmp.ge.s32.totalorder %s27, 10
      %s34 = sphi 0, %s46
      %s35 = sphi 0, %s42
      %s36 = sphi 0, %s34
      %s37 = sphi 0, %s35
      %s38 = sphi 0, %s36
      %s39 = sphi 0, %s37
      %s51 = sphi 0, %s53
      %s54 = sphi 0, %s51
      %s55 = sphi 0, %s54
      %s71 = sphi 0, %s55
      %s87 = sphi 0, %s89
      %s90 = sphi 0, %s87
      %s91 = sphi 0, %s90
      %s107 = sphi 0, %s91
      %s123 = sphi 0, %s125
      %s126 = sphi 0, %s123
      %s127 = sphi 0, %s126
      %s143 = sphi 0, %s127
      %s151 = sphi 0, %s153
      %s154 = sphi 0, %s151
      %s155 = sphi 0, %s154
      %s171 = sphi 0, %s155
      %s187 = sphi 0, %s189
      %s190 = sphi 0, %s187
      %s191 = sphi 0, %s190
      %s207 = sphi 0, %s191
      %s223 = sphi 0, %s225
      %s226 = sphi 0, %s223
      %s227 = sphi 0, %s226
      %s243 = sphi 0, %s227
      %s247 = sphi 0, %s247
      %s249 = sphi 0, %s247
      %s250 = sphi 0, %s249
      %s264 = sphi 0, %s250
      %s268 = sphi 0, %s268
      %s270 = sphi 0, %s268
      %s271 = sphi 0, %s270
      %s285 = sphi 0, %s271
      %s289 = sphi 0, %s289
      %s291 = sphi 0, %s289
      %s292 = sphi 0, %s291
      %s306 = sphi 0, %s292
      %s310 = sphi 0, %s310
      %s312 = sphi 0, %s310
      %s313 = sphi 0, %s312
      %s327 = sphi 0, %s313
      %s335 = sphi 0, %s337
      %s338 = sphi 0, %s335
      %s339 = sphi 0, %s338
      %s355 = sphi 0, %s339
    $region4: #{tpu_custom_call.1} parent=1 // loop_header_branch
      %30 = sbr.rel (%p28) target = $region8
    $region5: #{tpu_custom_call.1} parent=1 // loop_body
      %s32 = ssub.s32 %s27, 1
      %s33 = ssub.s32 %s27, 2
      %s40 = sadd.s32 1, %s35
      %p41 = scmp.ge.s32.totalorder %s40, 4
      %s42 = scalar_select %p41, 0, %s40
      %s43 = sadd.s32 1, %s34
      %s44 = scalar_select %p41, %s43, %s34
      %p45 = scmp.ge.s32.totalorder %s44, 2
      %s46 = scalar_select %p45, 0, %s44
      %s47 = ssub.s32 %s34, %s46
      %s48 = ssub.s32 %s35, %s42
      %s49 = sor.u32 %s47, %s48
      %p50 = scmp.eq.s32.totalorder %s49, 0
      %s52 = sadd.s32 %s51, 1
      %s53 = scalar_select %p50, %s51, %s52
      %p56 = pneg %p50
      %p57 = scmp.eq.s32.totalorder %s27, 7
      %p58 = por %p56, %p57
      %p59 = scmp.ne.s32.totalorder %s51, %s54
      %p60 = scmp.eq.s32.totalorder %s27, 0
      %p61 = por %p59, %p60
      %p62 = scmp.ne.s32.totalorder %s51, %s54
      %p63 = scmp.eq.s32.totalorder %s32, 7
      %p64 = por %p62, %p63
      %p65 = scmp.ne.s32.totalorder %s54, %s55
      %p66 = scmp.eq.s32.totalorder %s32, 0
      %p67 = por %p65, %p66
      %p68 = scmp.ne.s32.totalorder %s54, %s55
      %p69 = scmp.eq.s32.totalorder %s33, 7
      %p70 = por %p68, %p69
      %p72 = scmp.ne.s32.totalorder %s55, %s71
      %p73 = scmp.eq.s32.totalorder %s33, 0
      %p74 = por %p72, %p73
      %s75 = smul.u32 %s35, 2
      %s76 = ssub.s32 %s75, 1
      %p77 = scmp.gt.s32.totalorder %s76, 0
      %s78 = scalar_select %p77, %s76, 0
      %s79 = smul.u32 %s42, 2
      %s80 = ssub.s32 %s79, 1
      %p81 = scmp.gt.s32.totalorder %s80, 0
      %s82 = scalar_select %p81, %s80, 0
      %s83 = ssub.s32 %s34, %s46
      %s84 = ssub.s32 %s78, %s82
      %s85 = sor.u32 %s83, %s84
      %p86 = scmp.eq.s32.totalorder %s85, 0
      %s88 = sadd.s32 %s87, 1
      %s89 = scalar_select %p86, %s87, %s88
      %p92 = pneg %p86
      %p93 = scmp.eq.s32.totalorder %s27, 7
      %p94 = por %p92, %p93
      %p95 = scmp.ne.s32.totalorder %s87, %s90
      %p96 = scmp.eq.s32.totalorder %s27, 0
      %p97 = por %p95, %p96
      %p98 = scmp.ne.s32.totalorder %s87, %s90
      %p99 = scmp.eq.s32.totalorder %s32, 7
      %p100 = por %p98, %p99
      %p101 = scmp.ne.s32.totalorder %s90, %s91
      %p102 = scmp.eq.s32.totalorder %s32, 0
      %p103 = por %p101, %p102
      %p104 = scmp.ne.s32.totalorder %s90, %s91
      %p105 = scmp.eq.s32.totalorder %s33, 7
      %p106 = por %p104, %p105
      %p108 = scmp.ne.s32.totalorder %s91, %s107
      %p109 = scmp.eq.s32.totalorder %s33, 0
      %p110 = por %p108, %p109
      %s111 = sadd.s32 %s35, 1
      %s112 = smul.u32 %s111, 2
      %p113 = scmp.lt.s32.totalorder %s112, 7
      %s114 = scalar_select %p113, %s112, 7
      %s115 = sadd.s32 %s42, 1
      %s116 = smul.u32 %s115, 2
      %p117 = scmp.lt.s32.totalorder %s116, 7
      %s118 = scalar_select %p117, %s116, 7
      %s119 = ssub.s32 %s34, %s46
      %s120 = ssub.s32 %s114, %s118
      %s121 = sor.u32 %s119, %s120
      %p122 = scmp.eq.s32.totalorder %s121, 0
      %s124 = sadd.s32 %s123, 1
      %s125 = scalar_select %p122, %s123, %s124
      %p128 = pneg %p122
      %p129 = scmp.eq.s32.totalorder %s27, 7
      %p130 = por %p128, %p129
      %p131 = scmp.ne.s32.totalorder %s123, %s126
      %p132 = scmp.eq.s32.totalorder %s27, 0
      %p133 = por %p131, %p132
      %p134 = scmp.ne.s32.totalorder %s123, %s126
      %p135 = scmp.eq.s32.totalorder %s32, 7
      %p136 = por %p134, %p135
      %p137 = scmp.ne.s32.totalorder %s126, %s127
      %p138 = scmp.eq.s32.totalorder %s32, 0
      %p139 = por %p137, %p138
      %p140 = scmp.ne.s32.totalorder %s126, %s127
      %p141 = scmp.eq.s32.totalorder %s33, 7
      %p142 = por %p140, %p141
      %p144 = scmp.ne.s32.totalorder %s127, %s143
      %p145 = scmp.eq.s32.totalorder %s33, 0
      %p146 = por %p144, %p145
      %s147 = ssub.s32 %s34, %s46
      %s148 = ssub.s32 %s35, %s42
      %s149 = sor.u32 %s147, %s148
      %p150 = scmp.eq.s32.totalorder %s149, 0
      %s152 = sadd.s32 %s151, 1
      %s153 = scalar_select %p150, %s151, %s152
      %p156 = pneg %p150
      %p157 = scmp.eq.s32.totalorder %s27, 7
      %p158 = por %p156, %p157
      %p159 = scmp.ne.s32.totalorder %s151, %s154
      %p160 = scmp.eq.s32.totalorder %s27, 0
      %p161 = por %p159, %p160
      %p162 = scmp.ne.s32.totalorder %s151, %s154
      %p163 = scmp.eq.s32.totalorder %s32, 7
      %p164 = por %p162, %p163
      %p165 = scmp.ne.s32.totalorder %s154, %s155
      %p166 = scmp.eq.s32.totalorder %s32, 0
      %p167 = por %p165, %p166
      %p168 = scmp.ne.s32.totalorder %s154, %s155
      %p169 = scmp.eq.s32.totalorder %s33, 7
      %p170 = por %p168, %p169
      %p172 = scmp.ne.s32.totalorder %s155, %s171
      %p173 = scmp.eq.s32.totalorder %s33, 0
      %p174 = por %p172, %p173
      %s175 = smul.u32 %s35, 4
      %s176 = ssub.s32 %s175, 1
      %p177 = scmp.gt.s32.totalorder %s176, 0
      %s178 = scalar_select %p177, %s176, 0
      %s179 = smul.u32 %s42, 4
      %s180 = ssub.s32 %s179, 1
      %p181 = scmp.gt.s32.totalorder %s180, 0
      %s182 = scalar_select %p181, %s180, 0
      %s183 = ssub.s32 %s34, %s46
      %s184 = ssub.s32 %s178, %s182
      %s185 = sor.u32 %s183, %s184
      %p186 = scmp.eq.s32.totalorder %s185, 0
      %s188 = sadd.s32 %s187, 1
      %s189 = scalar_select %p186, %s187, %s188
      %p192 = pneg %p186
      %p193 = scmp.eq.s32.totalorder %s27, 7
      %p194 = por %p192, %p193
      %p195 = scmp.ne.s32.totalorder %s187, %s190
      %p196 = scmp.eq.s32.totalorder %s27, 0
      %p197 = por %p195, %p196
      %p198 = scmp.ne.s32.totalorder %s187, %s190
      %p199 = scmp.eq.s32.totalorder %s32, 7
      %p200 = por %p198, %p199
      %p201 = scmp.ne.s32.totalorder %s190, %s191
      %p202 = scmp.eq.s32.totalorder %s32, 0
      %p203 = por %p201, %p202
      %p204 = scmp.ne.s32.totalorder %s190, %s191
      %p205 = scmp.eq.s32.totalorder %s33, 7
      %p206 = por %p204, %p205
      %p208 = scmp.ne.s32.totalorder %s191, %s207
      %p209 = scmp.eq.s32.totalorder %s33, 0
      %p210 = por %p208, %p209
      %s211 = sadd.s32 %s35, 1
      %s212 = smul.u32 %s211, 4
      %p213 = scmp.lt.s32.totalorder %s212, 15
      %s214 = scalar_select %p213, %s212, 15
      %s215 = sadd.s32 %s42, 1
      %s216 = smul.u32 %s215, 4
      %p217 = scmp.lt.s32.totalorder %s216, 15
      %s218 = scalar_select %p217, %s216, 15
      %s219 = ssub.s32 %s34, %s46
      %s220 = ssub.s32 %s214, %s218
      %s221 = sor.u32 %s219, %s220
      %p222 = scmp.eq.s32.totalorder %s221, 0
      %s224 = sadd.s32 %s223, 1
      %s225 = scalar_select %p222, %s223, %s224
      %p228 = pneg %p222
      %p229 = scmp.eq.s32.totalorder %s27, 7
      %p230 = por %p228, %p229
      %p231 = scmp.ne.s32.totalorder %s223, %s226
      %p232 = scmp.eq.s32.totalorder %s27, 0
      %p233 = por %p231, %p232
      %p234 = scmp.ne.s32.totalorder %s223, %s226
      %p235 = scmp.eq.s32.totalorder %s32, 7
      %p236 = por %p234, %p235
      %p237 = scmp.ne.s32.totalorder %s226, %s227
      %p238 = scmp.eq.s32.totalorder %s32, 0
      %p239 = por %p237, %p238
      %p240 = scmp.ne.s32.totalorder %s226, %s227
      %p241 = scmp.eq.s32.totalorder %s33, 7
      %p242 = por %p240, %p241
      %p244 = scmp.ne.s32.totalorder %s227, %s243
      %p245 = scmp.eq.s32.totalorder %s33, 0
      %p246 = por %p244, %p245
      %s248 = sadd.s32 %s247, 1
      %p251 = scmp.eq.s32.totalorder %s27, 7
      %p252 = scmp.ne.s32.totalorder %s247, %s249
      %p253 = scmp.eq.s32.totalorder %s27, 0
      %p254 = por %p252, %p253
      %p255 = scmp.ne.s32.totalorder %s247, %s249
      %p256 = scmp.eq.s32.totalorder %s32, 7
      %p257 = por %p255, %p256
      %p258 = scmp.ne.s32.totalorder %s249, %s250
      %p259 = scmp.eq.s32.totalorder %s32, 0
      %p260 = por %p258, %p259
      %p261 = scmp.ne.s32.totalorder %s249, %s250
      %p262 = scmp.eq.s32.totalorder %s33, 7
      %p263 = por %p261, %p262
      %p265 = scmp.ne.s32.totalorder %s250, %s264
      %p266 = scmp.eq.s32.totalorder %s33, 0
      %p267 = por %p265, %p266
      %s269 = sadd.s32 %s268, 1
      %p272 = scmp.eq.s32.totalorder %s27, 7
      %p273 = scmp.ne.s32.totalorder %s268, %s270
      %p274 = scmp.eq.s32.totalorder %s27, 0
      %p275 = por %p273, %p274
      %p276 = scmp.ne.s32.totalorder %s268, %s270
      %p277 = scmp.eq.s32.totalorder %s32, 7
      %p278 = por %p276, %p277
      %p279 = scmp.ne.s32.totalorder %s270, %s271
      %p280 = scmp.eq.s32.totalorder %s32, 0
      %p281 = por %p279, %p280
      %p282 = scmp.ne.s32.totalorder %s270, %s271
      %p283 = scmp.eq.s32.totalorder %s33, 7
      %p284 = por %p282, %p283
      %p286 = scmp.ne.s32.totalorder %s271, %s285
      %p287 = scmp.eq.s32.totalorder %s33, 0
      %p288 = por %p286, %p287
      %s290 = sadd.s32 %s289, 1
      %p293 = scmp.eq.s32.totalorder %s27, 7
      %p294 = scmp.ne.s32.totalorder %s289, %s291
      %p295 = scmp.eq.s32.totalorder %s27, 0
      %p296 = por %p294, %p295
      %p297 = scmp.ne.s32.totalorder %s289, %s291
      %p298 = scmp.eq.s32.totalorder %s32, 7
      %p299 = por %p297, %p298
      %p300 = scmp.ne.s32.totalorder %s291, %s292
      %p301 = scmp.eq.s32.totalorder %s32, 0
      %p302 = por %p300, %p301
      %p303 = scmp.ne.s32.totalorder %s291, %s292
      %p304 = scmp.eq.s32.totalorder %s33, 7
      %p305 = por %p303, %p304
      %p307 = scmp.ne.s32.totalorder %s292, %s306
      %p308 = scmp.eq.s32.totalorder %s33, 0
      %p309 = por %p307, %p308
      %s311 = sadd.s32 %s310, 1
      %p314 = scmp.eq.s32.totalorder %s27, 7
      %p315 = scmp.ne.s32.totalorder %s310, %s312
      %p316 = scmp.eq.s32.totalorder %s27, 0
      %p317 = por %p315, %p316
      %p318 = scmp.ne.s32.totalorder %s310, %s312
      %p319 = scmp.eq.s32.totalorder %s32, 7
      %p320 = por %p318, %p319
      %p321 = scmp.ne.s32.totalorder %s312, %s313
      %p322 = scmp.eq.s32.totalorder %s32, 0
      %p323 = por %p321, %p322
      %p324 = scmp.ne.s32.totalorder %s312, %s313
      %p325 = scmp.eq.s32.totalorder %s33, 7
      %p326 = por %p324, %p325
      %p328 = scmp.ne.s32.totalorder %s313, %s327
      %p329 = scmp.eq.s32.totalorder %s33, 0
      %p330 = por %p328, %p329
      %s331 = ssub.s32 %s34, %s46
      %s332 = ssub.s32 %s35, %s42
      %s333 = sor.u32 %s331, %s332
      %p334 = scmp.eq.s32.totalorder %s333, 0
      %s336 = sadd.s32 %s335, 1
      %s337 = scalar_select %p334, %s335, %s336
      %p340 = pneg %p334
      %p341 = scmp.eq.s32.totalorder %s27, 7
      %p342 = por %p340, %p341
      %p343 = scmp.ne.s32.totalorder %s335, %s338
      %p344 = scmp.eq.s32.totalorder %s27, 0
      %p345 = por %p343, %p344
      %p346 = scmp.ne.s32.totalorder %s335, %s338
      %p347 = scmp.eq.s32.totalorder %s32, 7
      %p348 = por %p346, %p347
      %p349 = scmp.ne.s32.totalorder %s338, %s339
      %p350 = scmp.eq.s32.totalorder %s32, 0
      %p351 = por %p349, %p350
      %p352 = scmp.ne.s32.totalorder %s338, %s339
      %p353 = scmp.eq.s32.totalorder %s33, 7
      %p354 = por %p352, %p353
      %p356 = scmp.ne.s32.totalorder %s339, %s355
      %p357 = scmp.eq.s32.totalorder %s33, 0
      %p358 = por %p356, %p357
      %p359 = scmp.le.s32.totalorder 1, %s27
      %p360 = scmp.lt.s32.totalorder %s27, 9
      %p361 = pnand %p359, %p360
      %p362 = pneg %p361
      // Predicated region
      $region9: #{tpu_custom_call.1} parent=5 // pred_check
        _
      $region10: #{tpu_custom_call.1} parent=5 // pred_check_branch
        %364 = sbr.rel (%p361) target = $region12
      $region11: #{tpu_custom_call.1} parent=5 // pred_region
        %s365 = ssub.s32 %s27, 1
        // Predicated region
        $region13: #{tpu_custom_call.1} parent=11 // pred_check
          %p366 = pneg %p260
        $region14: #{tpu_custom_call.1} parent=11 // pred_check_branch
          %368 = sbr.rel (%p366) target = $region16
        $region15: #{tpu_custom_call.1} parent=11 // pred_region
          %s370 = ssub.s32 512, 512
          %371 = vsyncadd [#allocation12], %s370
          %s372 = sshll.u32 [#allocation11], 4
          %s373 = int_to_ptr.vmem [resolvable:$true] %s372
          %378 = dma.hbm_to_vmem [thread:$0]  %s6, 512, %s373, [#allocation12], 256, 256, 16
        $region16: #{tpu_custom_call.1} parent=11 // pred_fallthru
          _
        // Predicated region
        $region17: #{tpu_custom_call.1} parent=11 // pred_check
          %p379 = pneg %p281
        $region18: #{tpu_custom_call.1} parent=11 // pred_check_branch
          %381 = sbr.rel (%p379) target = $region20
        $region19: #{tpu_custom_call.1} parent=11 // pred_region
          %s383 = ssub.s32 32, 32
          %384 = vsyncadd [#allocation12], %s383
          %s386 = sshll.u32 [#allocation13], 4
          %s387 = int_to_ptr.vmem [resolvable:$true] %s386
          %389 = dma.hbm_to_vmem [thread:$0]  %s7, 32, %s387, [#allocation12]
        $region20: #{tpu_custom_call.1} parent=11 // pred_fallthru
          _
        // Predicated region
        $region21: #{tpu_custom_call.1} parent=11 // pred_check
          %p390 = pneg %p302
        $region22: #{tpu_custom_call.1} parent=11 // pred_check_branch
          %392 = sbr.rel (%p390) target = $region24
        $region23: #{tpu_custom_call.1} parent=11 // pred_region
          %s394 = ssub.s32 36864, 36864
          %395 = vsyncadd [#allocation15], %s394
          %s396 = sshll.u32 [#allocation14], 4
          %s397 = int_to_ptr.vmem [resolvable:$true] %s396
          %402 = dma.hbm_to_vmem [thread:$0]  %s8, 36864, %s397, [#allocation15], 128, 128, 8
        $region24: #{tpu_custom_call.1} parent=11 // pred_fallthru
          _
        // Predicated region
        $region25: #{tpu_custom_call.1} parent=11 // pred_check
          %p403 = pneg %p323
        $region26: #{tpu_custom_call.1} parent=11 // pred_check_branch
          %405 = sbr.rel (%p403) target = $region28
        $region27: #{tpu_custom_call.1} parent=11 // pred_region
          %s407 = ssub.s32 16, 16
          %408 = vsyncadd [#allocation15], %s407
          %s410 = sshll.u32 [#allocation16], 4
          %s411 = int_to_ptr.vmem [resolvable:$true] %s410
          %413 = dma.hbm_to_vmem [thread:$0]  %s9, 16, %s411, [#allocation15]
        $region28: #{tpu_custom_call.1} parent=11 // pred_fallthru
          _
      $region12: #{tpu_custom_call.1} parent=5 // pred_fallthru
        _
      %p414 = scmp.lt.s32.totalorder %s27, 8
      // Predicated region
      $region29: #{tpu_custom_call.1} parent=5 // pred_check
        %p415 = pneg %p414
      $region30: #{tpu_custom_call.1} parent=5 // pred_check_branch
        %417 = sbr.rel (%p415) target = $region32
      $region31: #{tpu_custom_call.1} parent=5 // pred_region
        // Predicated region
        $region33: #{tpu_custom_call.1} parent=31 // pred_check
          %p418 = pneg %p61
        $region34: #{tpu_custom_call.1} parent=31 // pred_check_branch
          %420 = sbr.rel (%p418) target = $region36
        $region35: #{tpu_custom_call.1} parent=31 // pred_region
          %s421 = sand.u32 %s51, 1
          %s422 = scalar_lea.sflag [#allocation6], %s421
          %s423 = sand.u32 %s51, 1
          %s424 = smul.addr %s423, 16
          %s425 = scalar_lea.vmem [#allocation5], %s424
          %s426 = smul.u32 2, %s35
          %s428 = ssub.s32 256, 256
          %429 = vsyncadd %s422, %s428
          %s430 = smul.addr %s34, 8
          %s431 = sadd.s32 %s426, %s430
          %s432 = smul.addr %s431, 128
          %s433 = scalar_lea.hbm %s0, %s432
          %s434 = sshll.u32 %s425, 4
          %s435 = int_to_ptr.vmem [resolvable:$true] %s434
          %440 = dma.hbm_to_vmem [thread:$0]  %s433, 256, %s435, %s422, 128, 128, 8
        $region36: #{tpu_custom_call.1} parent=31 // pred_fallthru
          _
        // Predicated region
        $region37: #{tpu_custom_call.1} parent=31 // pred_check
          %p441 = pneg %p97
        $region38: #{tpu_custom_call.1} parent=31 // pred_check_branch
          %443 = sbr.rel (%p441) target = $region40
        $region39: #{tpu_custom_call.1} parent=31 // pred_region
          %s444 = sand.u32 %s27, 1
          %s445 = scalar_lea.sflag [#allocation9], %s444
          %s446 = sand.u32 %s87, 1
          %s447 = smul.addr %s446, 8
          %s448 = scalar_lea.vmem [#allocation8], %s447
          %s449 = smul.u32 %s35, 2
          %s450 = ssub.s32 %s449, 1
          %p451 = scmp.gt.s32.totalorder %s450, 0
          %s452 = scalar_select %p451, %s450, 0
          %s454 = ssub.s32 128, 128
          %455 = vsyncadd %s445, %s454
          %s456 = smul.addr %s34, 8
          %s457 = sadd.s32 %s452, %s456
          %s458 = smul.addr %s457, 128
          %s459 = scalar_lea.hbm %s1, %s458
          %s461 = sshll.u32 %s448, 4
          %s462 = int_to_ptr.vmem [resolvable:$true] %s461
          %464 = dma.hbm_to_vmem [thread:$0]  %s459, 128, %s462, %s445
        $region40: #{tpu_custom_call.1} parent=31 // pred_fallthru
          _
        // Predicated region
        $region41: #{tpu_custom_call.1} parent=31 // pred_check
          %p465 = pneg %p133
        $region42: #{tpu_custom_call.1} parent=31 // pred_check_branch
          %467 = sbr.rel (%p465) target = $region44
        $region43: #{tpu_custom_call.1} parent=31 // pred_region
          %s468 = sand.u32 %s27, 1
          %s469 = scalar_lea.sflag [#allocation9], %s468
          %s470 = sand.u32 %s123, 1
          %s471 = smul.addr %s470, 8
          %s472 = scalar_lea.vmem [#allocation10], %s471
          %s473 = sadd.s32 %s35, 1
          %s474 = smul.u32 %s473, 2
          %p475 = scmp.lt.s32.totalorder %s474, 7
          %s476 = scalar_select %p475, %s474, 7
          %s478 = ssub.s32 128, 128
          %479 = vsyncadd %s469, %s478
          %s480 = smul.addr %s34, 8
          %s481 = sadd.s32 %s476, %s480
          %s482 = smul.addr %s481, 128
          %s483 = scalar_lea.hbm %s2, %s482
          %s485 = sshll.u32 %s472, 4
          %s486 = int_to_ptr.vmem [resolvable:$true] %s485
          %488 = dma.hbm_to_vmem [thread:$0]  %s483, 128, %s486, %s469
        $region44: #{tpu_custom_call.1} parent=31 // pred_fallthru
          _
        // Predicated region
        $region45: #{tpu_custom_call.1} parent=31 // pred_check
          %p489 = pneg %p161
        $region46: #{tpu_custom_call.1} parent=31 // pred_check_branch
          %491 = sbr.rel (%p489) target = $region48
        $region47: #{tpu_custom_call.1} parent=31 // pred_region
          %s492 = smul.u32 4, %s35
          %p493 = scmp.lt.s32.totalorder %s34, 1
          %s494 = scalar_select %p493, %s34, 1
          %p495 = scmp.lt.s32.totalorder %s492, 15
          %s496 = scalar_select %p495, %s492, 15
          %s497 = smul.addr %s496, 2
          %s498 = smul.addr %s494, 32
          %s499 = sadd.s32 %s497, %s498
          %s500 = smul.addr %s499, 8
          %s501 = scalar_lea.vmem %s3, %s500
          %s502 = smul.u32 4, %s35
        $region48: #{tpu_custom_call.1} parent=31 // pred_fallthru
          _
        // Predicated region
        $region49: #{tpu_custom_call.1} parent=31 // pred_check
          %p503 = pneg %p197
        $region50: #{tpu_custom_call.1} parent=31 // pred_check_branch
          %505 = sbr.rel (%p503) target = $region52
        $region51: #{tpu_custom_call.1} parent=31 // pred_region
          %s506 = smul.u32 %s35, 4
          %s507 = ssub.s32 %s506, 1
          %p508 = scmp.gt.s32.totalorder %s507, 0
          %s509 = scalar_select %p508, %s507, 0
          %p510 = scmp.lt.s32.totalorder %s34, 1
          %s511 = scalar_select %p510, %s34, 1
          %p512 = scmp.lt.s32.totalorder %s509, 15
          %s513 = scalar_select %p512, %s509, 15
          %s514 = smul.addr %s513, 2
          %s515 = smul.addr %s511, 32
          %s516 = sadd.s32 %s514, %s515
          %s517 = smul.addr %s516, 8
          %s518 = scalar_lea.vmem %s4, %s517
          %s519 = smul.u32 %s35, 4
          %s520 = ssub.s32 %s519, 1
          %p521 = scmp.gt.s32.totalorder %s520, 0
          %s522 = scalar_select %p521, %s520, 0
        $region52: #{tpu_custom_call.1} parent=31 // pred_fallthru
          _
        // Predicated region
        $region53: #{tpu_custom_call.1} parent=31 // pred_check
          %p523 = pneg %p233
        $region54: #{tpu_custom_call.1} parent=31 // pred_check_branch
          %525 = sbr.rel (%p523) target = $region56
        $region55: #{tpu_custom_call.1} parent=31 // pred_region
          %s526 = sadd.s32 %s35, 1
          %s527 = smul.u32 %s526, 4
          %p528 = scmp.lt.s32.totalorder %s527, 15
          %s529 = scalar_select %p528, %s527, 15
          %p530 = scmp.lt.s32.totalorder %s34, 1
          %s531 = scalar_select %p530, %s34, 1
          %p532 = scmp.lt.s32.totalorder %s529, 15
          %s533 = scalar_select %p532, %s529, 15
          %s534 = smul.addr %s533, 2
          %s535 = smul.addr %s531, 32
          %s536 = sadd.s32 %s534, %s535
          %s537 = smul.addr %s536, 8
          %s538 = scalar_lea.vmem %s5, %s537
          %s539 = sadd.s32 %s35, 1
          %s540 = smul.u32 %s539, 4
          %p541 = scmp.lt.s32.totalorder %s540, 15
          %s542 = scalar_select %p541, %s540, 15
        $region56: #{tpu_custom_call.1} parent=31 // pred_fallthru
          _
      $region32: #{tpu_custom_call.1} parent=5 // pred_fallthru
        _
      %p543 = scmp.le.s32.totalorder 1, %s27
      %p544 = scmp.lt.s32.totalorder %s27, 9
      %p545 = pnand %p543, %p544
      %p546 = pneg %p545
      // Predicated region
      $region57: #{tpu_custom_call.1} parent=5 // pred_check
        _
      $region58: #{tpu_custom_call.1} parent=5 // pred_check_branch
        %548 = sbr.rel (%p545) target = $region60
      $region59: #{tpu_custom_call.1} parent=5 // pred_region
        %s549 = ssub.s32 %s27, 1
        %s550 = sand.u32 %s54, 1
        %s551 = scalar_lea.sflag [#allocation6], %s550
        %s552 = sand.u32 %s54, 1
        %s553 = smul.addr %s552, 16
        %s554 = scalar_lea.vmem [#allocation5], %s553
        // Predicated region
        $region61: #{tpu_custom_call.1} parent=59 // pred_check
          %p555 = pneg %p67
        $region62: #{tpu_custom_call.1} parent=59 // pred_check_branch
          %557 = sbr.rel (%p555) target = $region64
        $region63: #{tpu_custom_call.1} parent=59 // pred_region
          %558 = dma.done %s551, 256
        $region64: #{tpu_custom_call.1} parent=59 // pred_fallthru
          _
        %s559 = sand.u32 %s32, 1
        %s560 = scalar_lea.sflag [#allocation9], %s559
        %s561 = sand.u32 %s90, 1
        %s562 = smul.addr %s561, 8
        %s563 = scalar_lea.vmem [#allocation8], %s562
        // Predicated region
        $region65: #{tpu_custom_call.1} parent=59 // pred_check
          %p564 = pneg %p103
        $region66: #{tpu_custom_call.1} parent=59 // pred_check_branch
          %566 = sbr.rel (%p564) target = $region68
        $region67: #{tpu_custom_call.1} parent=59 // pred_region
          %567 = dma.done %s560, 128
        $region68: #{tpu_custom_call.1} parent=59 // pred_fallthru
          _
        %s568 = sand.u32 %s32, 1
        %s569 = scalar_lea.sflag [#allocation9], %s568
        %s570 = sand.u32 %s126, 1
        %s571 = smul.addr %s570, 8
        %s572 = scalar_lea.vmem [#allocation10], %s571
        // Predicated region
        $region69: #{tpu_custom_call.1} parent=59 // pred_check
          %p573 = pneg %p139
        $region70: #{tpu_custom_call.1} parent=59 // pred_check_branch
          %575 = sbr.rel (%p573) target = $region72
        $region71: #{tpu_custom_call.1} parent=59 // pred_region
          %576 = dma.done %s569, 128
        $region72: #{tpu_custom_call.1} parent=59 // pred_fallthru
          _
        // Predicated region
        $region73: #{tpu_custom_call.1} parent=59 // pred_check
          %p577 = pneg %p260
        $region74: #{tpu_custom_call.1} parent=59 // pred_check_branch
          %579 = sbr.rel (%p577) target = $region76
        $region75: #{tpu_custom_call.1} parent=59 // pred_region
          %580 = dma.done [#allocation12], 512
        $region76: #{tpu_custom_call.1} parent=59 // pred_fallthru
          _
        // Predicated region
        $region77: #{tpu_custom_call.1} parent=59 // pred_check
          %p581 = pneg %p281
        $region78: #{tpu_custom_call.1} parent=59 // pred_check_branch
          %583 = sbr.rel (%p581) target = $region80
        $region79: #{tpu_custom_call.1} parent=59 // pred_region
          %584 = dma.done [#allocation12], 32
        $region80: #{tpu_custom_call.1} parent=59 // pred_fallthru
          _
        // Predicated region
        $region81: #{tpu_custom_call.1} parent=59 // pred_check
          %p585 = pneg %p302
        $region82: #{tpu_custom_call.1} parent=59 // pred_check_branch
          %587 = sbr.rel (%p585) target = $region84
        $region83: #{tpu_custom_call.1} parent=59 // pred_region
          %588 = dma.done [#allocation15], 36864
        $region84: #{tpu_custom_call.1} parent=59 // pred_fallthru
          _
        // Predicated region
        $region85: #{tpu_custom_call.1} parent=59 // pred_check
          %p589 = pneg %p323
        $region86: #{tpu_custom_call.1} parent=59 // pred_check_branch
          %591 = sbr.rel (%p589) target = $region88
        $region87: #{tpu_custom_call.1} parent=59 // pred_region
          %592 = dma.done [#allocation15], 16
        $region88: #{tpu_custom_call.1} parent=59 // pred_fallthru
          _
        %s593 = sand.u32 %s54, 1
        %s594 = scalar_lea.sflag [#allocation6], %s593
        %s595 = sand.u32 %s54, 1
        %s596 = smul.addr %s595, 16
        %s597 = scalar_lea.vmem [#allocation5], %s596
        %p598 = pneg %p67
        %p599 = pneg %p64
        %s600 = sand.u32 %s32, 1
        %s601 = scalar_lea.sflag [#allocation9], %s600
        %s602 = sand.u32 %s90, 1
        %s603 = smul.addr %s602, 8
        %s604 = scalar_lea.vmem [#allocation8], %s603
        %p605 = pneg %p103
        %p606 = pneg %p100
        %s607 = sand.u32 %s32, 1
        %s608 = scalar_lea.sflag [#allocation9], %s607
        %s609 = sand.u32 %s126, 1
        %s610 = smul.addr %s609, 8
        %s611 = scalar_lea.vmem [#allocation10], %s610
        %p612 = pneg %p139
        %p613 = pneg %p136
        %s614 = smul.u32 4, %s37
        %p615 = scmp.lt.s32.totalorder %s36, 1
        %s616 = scalar_select %p615, %s36, 1
        %p617 = scmp.lt.s32.totalorder %s614, 15
        %s618 = scalar_select %p617, %s614, 15
        %s619 = smul.addr %s618, 2
        %s620 = smul.addr %s616, 32
        %s621 = sadd.s32 %s619, %s620
        %s622 = smul.addr %s621, 8
        %s623 = scalar_lea.vmem %s3, %s622
        %p624 = pneg %p167
        %p625 = pneg %p164
        %s626 = smul.u32 %s37, 4
        %s627 = ssub.s32 %s626, 1
        %p628 = scmp.gt.s32.totalorder %s627, 0
        %s629 = scalar_select %p628, %s627, 0
        %p630 = scmp.lt.s32.totalorder %s36, 1
        %s631 = scalar_select %p630, %s36, 1
        %p632 = scmp.lt.s32.totalorder %s629, 15
        %s633 = scalar_select %p632, %s629, 15
        %s634 = smul.addr %s633, 2
        %s635 = smul.addr %s631, 32
        %s636 = sadd.s32 %s634, %s635
        %s637 = smul.addr %s636, 8
        %s638 = scalar_lea.vmem %s4, %s637
        %p639 = pneg %p203
        %p640 = pneg %p200
        %s641 = sadd.s32 %s37, 1
        %s642 = smul.u32 %s641, 4
        %p643 = scmp.lt.s32.totalorder %s642, 15
        %s644 = scalar_select %p643, %s642, 15
        %p645 = scmp.lt.s32.totalorder %s36, 1
        %s646 = scalar_select %p645, %s36, 1
        %p647 = scmp.lt.s32.totalorder %s644, 15
        %s648 = scalar_select %p647, %s644, 15
        %s649 = smul.addr %s648, 2
        %s650 = smul.addr %s646, 32
        %s651 = sadd.s32 %s649, %s650
        %s652 = smul.addr %s651, 8
        %s653 = scalar_lea.vmem %s5, %s652
        %p654 = pneg %p239
        %p655 = pneg %p236
        %p656 = pneg %p260
        %p657 = pneg %p257
        %p658 = pneg %p281
        %p659 = pneg %p278
        %p660 = pneg %p302
        %p661 = pneg %p299
        %p662 = pneg %p323
        %p663 = pneg %p320
        %p664 = pneg %p351
        %p665 = pneg %p348
        %s666 = sand.u32 %s338, 1
        %s667 = scalar_lea.sflag [#allocation7], %s666
        %s668 = sand.u32 %s338, 1
        %s669 = smul.addr %s668, 64
        %s670 = scalar_lea.vmem [#allocation17], %s669
        %s671 = smul.u32 2, %s37
        %s672 = smul.u32 %s37, 2
        %s673 = ssub.s32 %s672, 1
        %p674 = scmp.gt.s32.totalorder %s673, 0
        %s675 = scalar_select %p674, %s673, 0
        %s676 = sadd.s32 %s37, 1
        %s677 = smul.u32 %s676, 2
        %p678 = scmp.lt.s32.totalorder %s677, 7
        %s679 = scalar_select %p678, %s677, 7
        %s680 = smul.u32 4, %s37
        %p681 = scmp.lt.s32.totalorder %s36, 1
        %s682 = scalar_select %p681, %s36, 1
        %p683 = scmp.lt.s32.totalorder %s680, 15
        %s684 = scalar_select %p683, %s680, 15
        %s685 = smul.addr %s684, 2
        %s686 = smul.addr %s682, 32
        %s687 = sadd.s32 %s685, %s686
        %s688 = smul.addr %s687, 8
        %s689 = scalar_lea.vmem %s3, %s688
        %s690 = smul.u32 4, %s37
        %s691 = smul.u32 %s37, 4
        %s692 = ssub.s32 %s691, 1
        %p693 = scmp.gt.s32.totalorder %s692, 0
        %s694 = scalar_select %p693, %s692, 0
        %p695 = scmp.lt.s32.totalorder %s36, 1
        %s696 = scalar_select %p695, %s36, 1
        %p697 = scmp.lt.s32.totalorder %s694, 15
        %s698 = scalar_select %p697, %s694, 15
        %s699 = smul.addr %s698, 2
        %s700 = smul.addr %s696, 32
        %s701 = sadd.s32 %s699, %s700
        %s702 = smul.addr %s701, 8
        %s703 = scalar_lea.vmem %s4, %s702
        %s704 = smul.u32 %s37, 4
        %s705 = ssub.s32 %s704, 1
        %p706 = scmp.gt.s32.totalorder %s705, 0
        %s707 = scalar_select %p706, %s705, 0
        %s708 = sadd.s32 %s37, 1
        %s709 = smul.u32 %s708, 4
        %p710 = scmp.lt.s32.totalorder %s709, 15
        %s711 = scalar_select %p710, %s709, 15
        %p712 = scmp.lt.s32.totalorder %s36, 1
        %s713 = scalar_select %p712, %s36, 1
        %p714 = scmp.lt.s32.totalorder %s711, 15
        %s715 = scalar_select %p714, %s711, 15
        %s716 = smul.addr %s715, 2
        %s717 = smul.addr %s713, 32
        %s718 = sadd.s32 %s716, %s717
        %s719 = smul.addr %s718, 8
        %s720 = scalar_lea.vmem %s5, %s719
        %s721 = sadd.s32 %s37, 1
        %s722 = smul.u32 %s721, 4
        %p723 = scmp.lt.s32.totalorder %s722, 15
        %s724 = scalar_select %p723, %s722, 15
        %s725 = smul.u32 4, %s37
        %v726 = vld [vmem:[%s563] sm:$0xff]
        %v727 = vld [vmem:[%s554] sm:$0xff]
        %v728 = vld [vmem:[%s554 + $0x8] sm:$0xff]
        %v729 = vld [vmem:[%s572] sm:$0xff]
        %v730 = vld [vmem:[#allocation11] sm:$0xff]
        %v731 = vld [vmem:[#allocation11 + $0x8] sm:$0xff]
        %v732 = vld [vmem:[#allocation13] sm:$0x3]
        %v734 = vlaneseq
        %v735 = vshrl.u32 %v734, 7
        %v736 = vsub.s32 0, %v735
        %v737 = vrot.slane %v732, %v736
        %v738 = vlaneseq
        %v739 = vshrl.u32 %v738, 7
        %v740 = vsub.s32 1, %v739
        %v741 = vrot.slane %v732, %v740
        %vm744 = vcmask 64512
        %v746 = vsel %vm744, %v726, 0
        %v749 = vsel %vm744, %v727, 0
        %v752 = vsel %vm744, %v728, 0
        %v755 = vsel %vm744, %v729, 0
        %757 = vmatprep.subr.mxu0 %v731
        %758 = vmatpush1.msra.mxu0 %v730
        %759 = vmatprep.subr.mxu0 0.0
        %760 = vmatpush1.msra.mxu0 0.0
        %761 = vmatprep.subr.mxu0 0.0
        %762 = vmatpush1.msra.mxu0 0.0
        %763 = vmatprep.subr.mxu0 0.0
        %764 = vmatpush1.msra.mxu0 0.0
        %765 = vmatprep.subr.mxu0 0.0
        %766 = vmatpush1.msra.mxu0 0.0
        %767 = vmatprep.subr.mxu0 0.0
        %768 = vmatpush1.msra.mxu0 0.0
        %769 = vmatprep.subr.mxu0 0.0
        %770 = vmatpush1.msra.mxu0 0.0
        %771 = vmatprep.subr.mxu0 0.0
        %772 = vmatpush1.msra.mxu0 0.0
        %773 = vmatprep.subr.mxu0 0.0
        %774 = vmatpush1.msra.mxu0 0.0
        %775 = vmatprep.subr.mxu0 0.0
        %776 = vmatpush1.msra.mxu0 0.0
        %777 = vmatprep.subr.mxu0 0.0
        %778 = vmatpush1.msra.mxu0 0.0
        %779 = vmatprep.subr.mxu0 0.0
        %780 = vmatpush1.msra.mxu0 0.0
        %781 = vmatprep.subr.mxu0 0.0
        %782 = vmatpush1.msra.mxu0 0.0
        %783 = vmatprep.subr.mxu0 0.0
        %784 = vmatpush1.msra.mxu0 0.0
        %785 = vmatprep.subr.mxu0 0.0
        %786 = vmatpush1.msra.mxu0 0.0
        %787 = vmatprep.subr.mxu0 0.0
        %788 = vmatpush1.msra.mxu0 0.0
        %789 = vmatprep.subr.mxu0 0.0
        %790 = vmatpush1.msra.mxu0 0.0
        %791 = vmatprep.subr.mxu0 0.0
        %792 = vmatpush1.msra.mxu0 0.0
        %793 = vmatprep.subr.mxu0 0.0
        %794 = vmatpush1.msra.mxu0 0.0
        %795 = vmatprep.subr.mxu0 0.0
        %796 = vmatpush1.msra.mxu0 0.0
        %797 = vmatprep.subr.mxu0 0.0
        %798 = vmatpush1.msra.mxu0 0.0
        %799 = vmatprep.subr.mxu0 0.0
        %800 = vmatpush1.msra.mxu0 0.0
        %801 = vmatprep.subr.mxu0 0.0
        %802 = vmatpush1.msra.mxu0 0.0
        %803 = vmatprep.subr.mxu0 0.0
        %804 = vmatpush1.msra.mxu0 0.0
        %805 = vmatprep.subr.mxu0 0.0
        %806 = vmatpush1.msra.mxu0 0.0
        %807 = vmatprep.subr.mxu0 0.0
        %808 = vmatpush1.msra.mxu0 0.0
        %809 = vmatprep.subr.mxu0 0.0
        %810 = vmatpush1.msra.mxu0 0.0
        %811 = vmatprep.subr.mxu0 0.0
        %812 = vmatpush1.msra.mxu0 0.0
        %813 = vmatprep.subr.mxu0 0.0
        %814 = vmatpush1.msra.mxu0 0.0
        %815 = vmatprep.subr.mxu0 0.0
        %816 = vmatpush1.msra.mxu0 0.0
        %817 = vmatprep.subr.mxu0 0.0
        %818 = vmatpush1.msra.mxu0 0.0
        %819 = vmatprep.subr.mxu0 0.0
        %820 = vmatpush1.msra.mxu0 0.0
        %821 = vmatprep.mubr.f32.mxu0 0.0
        %822 = vmatmul.mubr.f32.gmra.mrb[0].mxu0 %v746
        %v823 = vpop.f32.mrb[0].mxu0
        %v824 = vpop.f32.mrb[0].mxu0
        %825 = vmatprep.mubr.f32.mxu0 0.0
        %826 = vmatmul.mubr.f32.gmra.mrb[0].mxu0 %v749
        %v827 = vpop.f32.mrb[0].mxu0
        %v828 = vadd.f32 %v737, %v827
        %v829 = vpop.f32.mrb[0].mxu0
        %v830 = vadd.f32 %v741, %v829
        %831 = vmatprep.mubr.f32.mxu0 0.0
        %832 = vmatmul.mubr.f32.gmra.mrb[0].mxu0 %v752
        %v833 = vpop.f32.mrb[0].mxu0
        %v834 = vadd.f32 %v737, %v833
        %v835 = vpop.f32.mrb[0].mxu0
        %v836 = vadd.f32 %v741, %v835
        %837 = vmatprep.mubr.f32.mxu0 0.0
        %838 = vmatmul.mubr.f32.gmra.mrb[0].mxu0 %v755
        %v839 = vpop.f32.mrb[0].mxu0
        %v840 = vadd.f32 %v737, %v839
        %v841 = vpop.f32.mrb[0].mxu0
        %v842 = vadd.f32 %v741, %v841
        %843 = vdwg.mxu0
        %v850 = vcombine.low %v828, %v830
        %v851 = vcombine.high %v828, %v830
        %v852 = vcombine.low %v834, %v836
        %v853 = vcombine.high %v834, %v836
        %v854 = vcombine.low %v840, %v842
        %v855 = vcombine.high %v840, %v842
        %v863 = vunpack.c.l.s4 1935823168
        %v864 = vunpack.c.0.s8 %v863
        %v865 = vlaneseq
        %v866 = vshrl.u32 %v865, 7
        %v867 = vsub.s32 %v864, %v866
        %v868 = vrot.slane %v850, %v867
        %v870 = vunpack.c.l.s4 1935823168
        %v871 = vunpack.c.0.s8 %v870
        %v872 = vlaneseq
        %v873 = vshrl.u32 %v872, 7
        %v874 = vsub.s32 %v871, %v873
        %v875 = vrot.slane %v851, %v874
        %v877 = vunpack.c.l.s4 1935823168
        %v878 = vunpack.c.0.s8 %v877
        %v879 = vlaneseq
        %v880 = vshrl.u32 %v879, 7
        %v881 = vsub.s32 %v878, %v880
        %v882 = vrot.slane %v852, %v881
        %v884 = vunpack.c.l.s4 1935823168
        %v885 = vunpack.c.0.s8 %v884
        %v886 = vlaneseq
        %v887 = vshrl.u32 %v886, 7
        %v888 = vsub.s32 %v885, %v887
        %v889 = vrot.slane %v853, %v888
        %v891 = vunpack.c.l.s4 1935823168
        %v892 = vunpack.c.0.s8 %v891
        %v893 = vlaneseq
        %v894 = vshrl.u32 %v893, 7
        %v895 = vsub.s32 %v892, %v894
        %v896 = vrot.slane %v854, %v895
        %v898 = vunpack.c.l.s4 1935823168
        %v899 = vunpack.c.0.s8 %v898
        %v900 = vlaneseq
        %v901 = vshrl.u32 %v900, 7
        %v902 = vsub.s32 %v899, %v901
        %v903 = vrot.slane %v855, %v902
        %s904 = scalar_lea.vmem [#allocation11], 16
        %v905 = vld [vmem:[%s904] sm:$0xff]
        %v906 = vld [vmem:[%s904 + $0x8] sm:$0xff]
        %907 = vmatprep.subr.mxu0 %v906
        %908 = vmatpush1.msra.mxu0 %v905
        %909 = vmatprep.subr.mxu0 0.0
        %910 = vmatpush1.msra.mxu0 0.0
        %911 = vmatprep.subr.mxu0 0.0
        %912 = vmatpush1.msra.mxu0 0.0
        %913 = vmatprep.subr.mxu0 0.0
        %914 = vmatpush1.msra.mxu0 0.0
        %915 = vmatprep.subr.mxu0 0.0
        %916 = vmatpush1.msra.mxu0 0.0
        %917 = vmatprep.subr.mxu0 0.0
        %918 = vmatpush1.msra.mxu0 0.0
        %919 = vmatprep.subr.mxu0 0.0
        %920 = vmatpush1.msra.mxu0 0.0
        %921 = vmatprep.subr.mxu0 0.0
        %922 = vmatpush1.msra.mxu0 0.0
        %923 = vmatprep.subr.mxu0 0.0
        %924 = vmatpush1.msra.mxu0 0.0
        %925 = vmatprep.subr.mxu0 0.0
        %926 = vmatpush1.msra.mxu0 0.0
        %927 = vmatprep.subr.mxu0 0.0
        %928 = vmatpush1.msra.mxu0 0.0
        %929 = vmatprep.subr.mxu0 0.0
        %930 = vmatpush1.msra.mxu0 0.0
        %931 = vmatprep.subr.mxu0 0.0
        %932 = vmatpush1.msra.mxu0 0.0
        %933 = vmatprep.subr.mxu0 0.0
        %934 = vmatpush1.msra.mxu0 0.0
        %935 = vmatprep.subr.mxu0 0.0
        %936 = vmatpush1.msra.mxu0 0.0
        %937 = vmatprep.subr.mxu0 0.0
        %938 = vmatpush1.msra.mxu0 0.0
        %939 = vmatprep.subr.mxu0 0.0
        %940 = vmatpush1.msra.mxu0 0.0
        %941 = vmatprep.subr.mxu0 0.0
        %942 = vmatpush1.msra.mxu0 0.0
        %943 = vmatprep.subr.mxu0 0.0
        %944 = vmatpush1.msra.mxu0 0.0
        %945 = vmatprep.subr.mxu0 0.0
        %946 = vmatpush1.msra.mxu0 0.0
        %947 = vmatprep.subr.mxu0 0.0
        %948 = vmatpush1.msra.mxu0 0.0
        %949 = vmatprep.subr.mxu0 0.0
        %950 = vmatpush1.msra.mxu0 0.0
        %951 = vmatprep.subr.mxu0 0.0
        %952 = vmatpush1.msra.mxu0 0.0
        %953 = vmatprep.subr.mxu0 0.0
        %954 = vmatpush1.msra.mxu0 0.0
        %955 = vmatprep.subr.mxu0 0.0
        %956 = vmatpush1.msra.mxu0 0.0
        %957 = vmatprep.subr.mxu0 0.0
        %958 = vmatpush1.msra.mxu0 0.0
        %959 = vmatprep.subr.mxu0 0.0
        %960 = vmatpush1.msra.mxu0 0.0
        %961 = vmatprep.subr.mxu0 0.0
        %962 = vmatpush1.msra.mxu0 0.0
        %963 = vmatprep.subr.mxu0 0.0
        %964 = vmatpush1.msra.mxu0 0.0
        %965 = vmatprep.subr.mxu0 0.0
        %966 = vmatpush1.msra.mxu0 0.0
        %967 = vmatprep.subr.mxu0 0.0
        %968 = vmatpush1.msra.mxu0 0.0
        %969 = vmatprep.subr.mxu0 0.0
        %970 = vmatpush1.msra.mxu0 0.0
        %971 = vmatprep.mubr.f32.mxu0 0.0
        %972 = vmatmul.mubr.f32.gmra.mrb[0].mxu0 %v746
        %v973 = vpop.f32.mrb[0].mxu0
        %v974 = vadd.f32 %v737, %v973
        %v975 = vpop.f32.mrb[0].mxu0
        %v976 = vadd.f32 %v741, %v975
        %977 = vmatprep.mubr.f32.mxu0 0.0
        %978 = vmatmul.mubr.f32.gmra.mrb[0].mxu0 %v749
        %v979 = vpop.f32.mrb[0].mxu0
        %v980 = vadd.f32 %v737, %v979
        %v981 = vpop.f32.mrb[0].mxu0
        %v982 = vadd.f32 %v741, %v981
        %983 = vmatprep.mubr.f32.mxu0 0.0
        %984 = vmatmul.mubr.f32.gmra.mrb[0].mxu0 %v752
        %v985 = vpop.f32.mrb[0].mxu0
        %v986 = vadd.f32 %v737, %v985
        %v987 = vpop.f32.mrb[0].mxu0
        %v988 = vadd.f32 %v741, %v987
        %989 = vmatprep.mubr.f32.mxu0 0.0
        %990 = vmatmul.mubr.f32.gmra.mrb[0].mxu0 %v755
        %v991 = vpop.f32.mrb[0].mxu0
        %v992 = vpop.f32.mrb[0].mxu0
        %993 = vdwg.mxu0
        %v1000 = vcombine.low %v974, %v976
        %v1001 = vcombine.high %v974, %v976
        %v1002 = vcombine.low %v980, %v982
        %v1003 = vcombine.high %v980, %v982
        %v1004 = vcombine.low %v986, %v988
        %v1005 = vcombine.high %v986, %v988
        %v1013 = vunpack.c.l.s4 1935823168
        %v1014 = vunpack.c.0.s8 %v1013
        %v1015 = vlaneseq
        %v1016 = vshrl.u32 %v1015, 7
        %v1017 = vsub.s32 %v1014, %v1016
        %v1018 = vrot.slane %v1000, %v1017
        %v1020 = vunpack.c.l.s4 1935823168
        %v1021 = vunpack.c.0.s8 %v1020
        %v1022 = vlaneseq
        %v1023 = vshrl.u32 %v1022, 7
        %v1024 = vsub.s32 %v1021, %v1023
        %v1025 = vrot.slane %v1001, %v1024
        %v1027 = vunpack.c.l.s4 1935823168
        %v1028 = vunpack.c.0.s8 %v1027
        %v1029 = vlaneseq
        %v1030 = vshrl.u32 %v1029, 7
        %v1031 = vsub.s32 %v1028, %v1030
        %v1032 = vrot.slane %v1002, %v1031
        %v1034 = vunpack.c.l.s4 1935823168
        %v1035 = vunpack.c.0.s8 %v1034
        %v1036 = vlaneseq
        %v1037 = vshrl.u32 %v1036, 7
        %v1038 = vsub.s32 %v1035, %v1037
        %v1039 = vrot.slane %v1003, %v1038
        %v1041 = vunpack.c.l.s4 1935823168
        %v1042 = vunpack.c.0.s8 %v1041
        %v1043 = vlaneseq
        %v1044 = vshrl.u32 %v1043, 7
        %v1045 = vsub.s32 %v1042, %v1044
        %v1046 = vrot.slane %v1004, %v1045
        %v1048 = vunpack.c.l.s4 1935823168
        %v1049 = vunpack.c.0.s8 %v1048
        %v1050 = vlaneseq
        %v1051 = vshrl.u32 %v1050, 7
        %v1052 = vsub.s32 %v1049, %v1051
        %v1053 = vrot.slane %v1005, %v1052
        %vm1062 = vcmask 1040384
        %v1063 = vrot.slane %v868, 7
        %v1064 = vrot.slane %v875, 7
        %v1065 = vsel %vm1062, %v1063, %v1064
        %v1066 = vrot.slane %v1032, 7
        %v1067 = vrot.slane %v1039, 7
        %v1068 = vsel %vm1062, %v1066, %v1067
        %v1069 = vrot.slane %v882, 7
        %v1070 = vrot.slane %v889, 7
        %v1071 = vsel %vm1062, %v1069, %v1070
        %v1072 = vrot.slane %v1046, 7
        %v1073 = vrot.slane %v1053, 7
        %v1074 = vsel %vm1062, %v1072, %v1073
        %s1087 = scalar_lea.vmem [#allocation2], 48
        %1088 = vst [vmem:[%s1087] sm:$0xfe] %v1063
        %1089 = vst [vmem:[%s1087 + $0x10] sm:$0xff] %v1065
        %1090 = vst [vmem:[%s1087 + $0x20] sm:$0x1] %v1064
        %1091 = vst [vmem:[%s1087 + $0x30] sm:$0xfe] %v1066
        %1092 = vst [vmem:[%s1087 + $0x40] sm:$0xff] %v1068
        %1093 = vst [vmem:[%s1087 + $0x50] sm:$0x1] %v1067
        %1094 = vst [vmem:[%s1087 + $0x60] sm:$0xfe] %v1069
        %1095 = vst [vmem:[%s1087 + $0x70] sm:$0xff] %v1071
        %1096 = vst [vmem:[%s1087 + $0x80] sm:$0x1] %v1070
        %1097 = vst [vmem:[%s1087 + $0x90] sm:$0xfe] %v1072
        %1098 = vst [vmem:[%s1087 + $0xa0] sm:$0xff] %v1074
        %1099 = vst [vmem:[%s1087 + $0xb0] sm:$0x1] %v1073
        %v1102 = vrot.slane %v1018, 7
        %v1103 = vrot.slane %v1025, 7
        %v1104 = vsel %vm1062, %v1102, %v1103
        %1108 = vst [vmem:[#allocation2] sm:$0xfe] %v1102
        %1109 = vst [vmem:[#allocation2 + $0x10] sm:$0xff] %v1104
        %1110 = vst [vmem:[#allocation2 + $0x20] sm:$0x1] %v1103
        %v1113 = vrot.slane %v896, 7
        %v1114 = vrot.slane %v903, 7
        %v1115 = vsel %vm1062, %v1113, %v1114
        %s1119 = scalar_lea.vmem [#allocation2], 240
        %1120 = vst [vmem:[%s1119] sm:$0xfe] %v1113
        %1121 = vst [vmem:[%s1119 + $0x10] sm:$0xff] %v1115
        %1122 = vst [vmem:[%s1119 + $0x20] sm:$0x1] %v1114
        %v1123 = vld [vmem:[%s689] sm:$0xff]
        %v1124 = vld [vmem:[%s689 + $0x8] sm:$0xff]
        %v1125 = vld [vmem:[%s689 + $0x10] sm:$0xff]
        %v1126 = vld [vmem:[%s689 + $0x18] sm:$0xff]
        %v1127 = vld [vmem:[%s689 + $0x20] sm:$0xff]
        %v1128 = vld [vmem:[%s689 + $0x28] sm:$0xff]
        %v1129 = vld [vmem:[%s689 + $0x30] sm:$0xff]
        %v1130 = vld [vmem:[%s689 + $0x38] sm:$0xff]
        %vm1131 = vcmask 31744
        %v1132 = vsel %vm1131, %v1123, 0.0
        %v1133 = vsel %vm1131, %v1124, 0.0
        %v1134 = vsel %vm1131, %v1125, 0.0
        %v1135 = vsel %vm1131, %v1126, 0.0
        %v1136 = vsel %vm1131, %v1127, 0.0
        %v1137 = vsel %vm1131, %v1128, 0.0
        %v1138 = vsel %vm1131, %v1129, 0.0
        %v1139 = vsel %vm1131, %v1130, 0.0
        %v1148 = vrot.slane %v1132, 7
        %v1149 = vrot.slane %v1133, 7
        %v1150 = vsel %vm1062, %v1148, %v1149
        %v1151 = vrot.slane %v1134, 7
        %v1152 = vrot.slane %v1135, 7
        %v1153 = vsel %vm1062, %v1151, %v1152
        %v1154 = vrot.slane %v1136, 7
        %v1155 = vrot.slane %v1137, 7
        %v1156 = vsel %vm1062, %v1154, %v1155
        %v1157 = vrot.slane %v1138, 7
        %v1158 = vrot.slane %v1139, 7
        %v1159 = vsel %vm1062, %v1157, %v1158
        %1172 = vst [vmem:[%s1087 + $0x8] sm:$0xfe] %v1148
        %1173 = vst [vmem:[%s1087 + $0x18] sm:$0xff] %v1150
        %1174 = vst [vmem:[%s1087 + $0x28] sm:$0x1] %v1149
        %1175 = vst [vmem:[%s1087 + $0x38] sm:$0xfe] %v1151
        %1176 = vst [vmem:[%s1087 + $0x48] sm:$0xff] %v1153
        %1177 = vst [vmem:[%s1087 + $0x58] sm:$0x1] %v1152
        %1178 = vst [vmem:[%s1087 + $0x68] sm:$0xfe] %v1154
        %1179 = vst [vmem:[%s1087 + $0x78] sm:$0xff] %v1156
        %1180 = vst [vmem:[%s1087 + $0x88] sm:$0x1] %v1155
        %1181 = vst [vmem:[%s1087 + $0x98] sm:$0xfe] %v1157
        %1182 = vst [vmem:[%s1087 + $0xa8] sm:$0xff] %v1159
        %1183 = vst [vmem:[%s1087 + $0xb8] sm:$0x1] %v1158
        %v1184 = vld [vmem:[%s703] sm:$0xff]
        %v1185 = vld [vmem:[%s703 + $0x8] sm:$0xff]
        %v1186 = vsel %vm1131, %v1184, 0.0
        %v1187 = vsel %vm1131, %v1185, 0.0
        %v1190 = vrot.slane %v1186, 7
        %v1191 = vrot.slane %v1187, 7
        %v1192 = vsel %vm1062, %v1190, %v1191
        %1196 = vst [vmem:[#allocation2 + $0x8] sm:$0xfe] %v1190
        %1197 = vst [vmem:[#allocation2 + $0x18] sm:$0xff] %v1192
        %1198 = vst [vmem:[#allocation2 + $0x28] sm:$0x1] %v1191
        %v1199 = vld [vmem:[%s720] sm:$0xff]
        %v1200 = vld [vmem:[%s720 + $0x8] sm:$0xff]
        %v1201 = vsel %vm1131, %v1199, 0.0
        %v1202 = vsel %vm1131, %v1200, 0.0
        %v1205 = vrot.slane %v1201, 7
        %v1206 = vrot.slane %v1202, 7
        %v1207 = vsel %vm1062, %v1205, %v1206
        %1211 = vst [vmem:[%s1119 + $0x8] sm:$0xfe] %v1205
        %1212 = vst [vmem:[%s1119 + $0x18] sm:$0xff] %v1207
        %1213 = vst [vmem:[%s1119 + $0x28] sm:$0x1] %v1206
        %v1214 = vlaneseq
        %vm1215 = vcmp.ge.s32.totalorder %v1214, 0
        %vm1216 = vcmp.lt.s32.totalorder %v1214, 256
        %vm1217 = vmand %vm1215, %vm1216
        %1218 = vst.msk [vmem:[#allocation2] ss:$8 sm:$0x3] %vm1217, 0.0
        %1219 = vst.msk [vmem:[#allocation2] ss:$8 sm:$0x0] %vm1217, 0.0
        %s1220 = scalar_lea.vmem [#allocation2], 48
        %1221 = vst.msk [vmem:[%s1220] ss:$8 sm:$0x3] %vm1217, 0.0
        %1222 = vst.msk [vmem:[%s1220] ss:$8 sm:$0x0] %vm1217, 0.0
        %s1223 = scalar_lea.vmem [#allocation2], 96
        %1224 = vst.msk [vmem:[%s1223] ss:$8 sm:$0x3] %vm1217, 0.0
        %1225 = vst.msk [vmem:[%s1223] ss:$8 sm:$0x0] %vm1217, 0.0
        %s1226 = scalar_lea.vmem [#allocation2], 144
        %1227 = vst.msk [vmem:[%s1226] ss:$8 sm:$0x3] %vm1217, 0.0
        %1228 = vst.msk [vmem:[%s1226] ss:$8 sm:$0x0] %vm1217, 0.0
        %s1229 = scalar_lea.vmem [#allocation2], 192
        %1230 = vst.msk [vmem:[%s1229] ss:$8 sm:$0x3] %vm1217, 0.0
        %1231 = vst.msk [vmem:[%s1229] ss:$8 sm:$0x0] %vm1217, 0.0
        %s1232 = scalar_lea.vmem [#allocation2], 240
        %1233 = vst.msk [vmem:[%s1232] ss:$8 sm:$0x3] %vm1217, 0.0
        %1234 = vst.msk [vmem:[%s1232] ss:$8 sm:$0x0] %vm1217, 0.0
        %s1235 = scalar_lea.vmem [#allocation2], 33
        %1236 = vst.msk [vmem:[%s1235] ss:$8 sm:$0x3] %vm1217, 0.0
        %1237 = vst.msk [vmem:[%s1235] ss:$8 sm:$0x0] %vm1217, 0.0
        %s1238 = scalar_lea.vmem [#allocation2], 81
        %1239 = vst.msk [vmem:[%s1238] ss:$8 sm:$0x3] %vm1217, 0.0
        %1240 = vst.msk [vmem:[%s1238] ss:$8 sm:$0x0] %vm1217, 0.0
        %s1241 = scalar_lea.vmem [#allocation2], 129
        %1242 = vst.msk [vmem:[%s1241] ss:$8 sm:$0x3] %vm1217, 0.0
        %1243 = vst.msk [vmem:[%s1241] ss:$8 sm:$0x0] %vm1217, 0.0
        %s1244 = scalar_lea.vmem [#allocation2], 177
        %1245 = vst.msk [vmem:[%s1244] ss:$8 sm:$0x3] %vm1217, 0.0
        %1246 = vst.msk [vmem:[%s1244] ss:$8 sm:$0x0] %vm1217, 0.0
        %s1247 = scalar_lea.vmem [#allocation2], 225
        %1248 = vst.msk [vmem:[%s1247] ss:$8 sm:$0x3] %vm1217, 0.0
        %1249 = vst.msk [vmem:[%s1247] ss:$8 sm:$0x0] %vm1217, 0.0
        %s1250 = scalar_lea.vmem [#allocation2], 273
        %1251 = vst.msk [vmem:[%s1250] ss:$8 sm:$0x3] %vm1217, 0.0
        %1252 = vst.msk [vmem:[%s1250] ss:$8 sm:$0x0] %vm1217, 0.0
        %p1253 = scmp.eq.s32.totalorder %s37, 0
        // Predicated region
        $region89: #{tpu_custom_call.1} parent=59 // pred_check
          %p1254 = pneg %p1253
        $region90: #{tpu_custom_call.1} parent=59 // pred_check_branch
          %1256 = sbr.rel (%p1254) target = $region92
        $region91: #{tpu_custom_call.1} parent=59 // pred_region
          %1257 = vst [vmem:[#allocation2] sm:$0xff] 0.0
          %1258 = vst [vmem:[#allocation2 + $0x8] sm:$0xff] 0.0
          %1259 = vst [vmem:[#allocation2 + $0x10] sm:$0xff] 0.0
          %1260 = vst [vmem:[#allocation2 + $0x18] sm:$0xff] 0.0
          %1261 = vst [vmem:[#allocation2 + $0x20] sm:$0x3] 0.0
          %1262 = vst [vmem:[#allocation2 + $0x28] sm:$0x3] 0.0
        $region92: #{tpu_custom_call.1} parent=59 // pred_fallthru
          _
        %p1263 = scmp.eq.s32.totalorder %s37, 3
        // Predicated region
        $region93: #{tpu_custom_call.1} parent=59 // pred_check
          %p1264 = pneg %p1263
        $region94: #{tpu_custom_call.1} parent=59 // pred_check_branch
          %1266 = sbr.rel (%p1264) target = $region96
        $region95: #{tpu_custom_call.1} parent=59 // pred_region
          %1267 = vst [vmem:[%s1119] sm:$0xff] 0.0
          %1268 = vst [vmem:[%s1119 + $0x8] sm:$0xff] 0.0
          %1269 = vst [vmem:[%s1119 + $0x10] sm:$0xff] 0.0
          %1270 = vst [vmem:[%s1119 + $0x18] sm:$0xff] 0.0
          %1271 = vst [vmem:[%s1119 + $0x20] sm:$0x3] 0.0
          %1272 = vst [vmem:[%s1119 + $0x28] sm:$0x3] 0.0
        $region96: #{tpu_custom_call.1} parent=59 // pred_fallthru
          _
        %v1273 = vld [vmem:[#allocation2] sm:$0xff]
        %v1274 = vld [vmem:[#allocation2 + $0x8] sm:$0xff]
        %v1275 = vld [vmem:[#allocation2 + $0x10] sm:$0xff]
        %v1276 = vld [vmem:[#allocation2 + $0x18] sm:$0xff]
        %v1277 = vld [vmem:[#allocation2 + $0x30] sm:$0xff]
        %v1278 = vld [vmem:[#allocation2 + $0x38] sm:$0xff]
        %v1279 = vld [vmem:[#allocation2 + $0x40] sm:$0xff]
        %v1280 = vld [vmem:[#allocation2 + $0x48] sm:$0xff]
        %v1281 = vld [vmem:[#allocation2 + $0x60] sm:$0xff]
        %v1282 = vld [vmem:[#allocation2 + $0x68] sm:$0xff]
        %v1283 = vld [vmem:[#allocation2 + $0x70] sm:$0xff]
        %v1284 = vld [vmem:[#allocation2 + $0x78] sm:$0xff]
        %v1285 = vld [vmem:[#allocation2 + $0x90] sm:$0xff]
        %v1286 = vld [vmem:[#allocation2 + $0x98] sm:$0xff]
        %v1287 = vld [vmem:[#allocation2 + $0xa0] sm:$0xff]
        %v1288 = vld [vmem:[#allocation2 + $0xa8] sm:$0xff]
        %1289 = vst [vmem:[#allocation3] sm:$0xff] %v1273
        %1290 = vst [vmem:[#allocation3 + $0x8] sm:$0xff] %v1274
        %1291 = vst [vmem:[#allocation3 + $0x30] sm:$0xff] %v1275
        %1292 = vst [vmem:[#allocation3 + $0x38] sm:$0xff] %v1276
        %1293 = vst [vmem:[#allocation3 + $0x60] sm:$0xff] %v1277
        %1294 = vst [vmem:[#allocation3 + $0x68] sm:$0xff] %v1278
        %1295 = vst [vmem:[#allocation3 + $0x90] sm:$0xff] %v1279
        %1296 = vst [vmem:[#allocation3 + $0x98] sm:$0xff] %v1280
        %1297 = vst [vmem:[#allocation3 + $0xc0] sm:$0xff] %v1281
        %1298 = vst [vmem:[#allocation3 + $0xc8] sm:$0xff] %v1282
        %1299 = vst [vmem:[#allocation3 + $0xf0] sm:$0xff] %v1283
        %1300 = vst [vmem:[#allocation3 + $0xf8] sm:$0xff] %v1284
        %1301 = vst [vmem:[#allocation3 + $0x120] sm:$0xff] %v1285
        %1302 = vst [vmem:[#allocation3 + $0x128] sm:$0xff] %v1286
        %1303 = vst [vmem:[#allocation3 + $0x150] sm:$0xff] %v1287
        %1304 = vst [vmem:[#allocation3 + $0x158] sm:$0xff] %v1288
        %v1305 = vld [vmem:[#allocation2] sm:$0xfe]
        %v1306 = vld [vmem:[#allocation2 + $0x8] sm:$0xfe]
        %v1307 = vld [vmem:[#allocation2 + $0x10] sm:$0xff]
        %v1308 = vld [vmem:[#allocation2 + $0x18] sm:$0xff]
        %v1309 = vld [vmem:[#allocation2 + $0x20] sm:$0x1]
        %v1310 = vld [vmem:[#allocation2 + $0x28] sm:$0x1]
        %v1311 = vld [vmem:[#allocation2 + $0x30] sm:$0xfe]
        %v1312 = vld [vmem:[#allocation2 + $0x38] sm:$0xfe]
        %v1313 = vld [vmem:[#allocation2 + $0x40] sm:$0xff]
        %v1314 = vld [vmem:[#allocation2 + $0x48] sm:$0xff]
        %v1315 = vld [vmem:[#allocation2 + $0x50] sm:$0x1]
        %v1316 = vld [vmem:[#allocation2 + $0x58] sm:$0x1]
        %v1317 = vld [vmem:[#allocation2 + $0x60] sm:$0xfe]
        %v1318 = vld [vmem:[#allocation2 + $0x68] sm:$0xfe]
        %v1319 = vld [vmem:[#allocation2 + $0x70] sm:$0xff]
        %v1320 = vld [vmem:[#allocation2 + $0x78] sm:$0xff]
        %v1321 = vld [vmem:[#allocation2 + $0x80] sm:$0x1]
        %v1322 = vld [vmem:[#allocation2 + $0x88] sm:$0x1]
        %v1323 = vld [vmem:[#allocation2 + $0x90] sm:$0xfe]
        %v1324 = vld [vmem:[#allocation2 + $0x98] sm:$0xfe]
        %v1325 = vld [vmem:[#allocation2 + $0xa0] sm:$0xff]
        %v1326 = vld [vmem:[#allocation2 + $0xa8] sm:$0xff]
        %v1327 = vld [vmem:[#allocation2 + $0xb0] sm:$0x1]
        %v1328 = vld [vmem:[#allocation2 + $0xb8] sm:$0x1]
        %vm1353 = vcmask 1046528
        %v1354 = vrot.slane %v1305, 1
        %v1355 = vrot.slane %v1307, 1
        %v1356 = vsel %vm1353, %v1354, %v1355
        %v1357 = vrot.slane %v1306, 1
        %v1358 = vrot.slane %v1308, 1
        %v1359 = vsel %vm1353, %v1357, %v1358
        %v1360 = vrot.slane %v1309, 1
        %v1361 = vsel %vm1353, %v1355, %v1360
        %v1362 = vrot.slane %v1310, 1
        %v1363 = vsel %vm1353, %v1358, %v1362
        %v1364 = vrot.slane %v1311, 1
        %v1365 = vrot.slane %v1313, 1
        %v1366 = vsel %vm1353, %v1364, %v1365
        %v1367 = vrot.slane %v1312, 1
        %v1368 = vrot.slane %v1314, 1
        %v1369 = vsel %vm1353, %v1367, %v1368
        %v1370 = vrot.slane %v1315, 1
        %v1371 = vsel %vm1353, %v1365, %v1370
        %v1372 = vrot.slane %v1316, 1
        %v1373 = vsel %vm1353, %v1368, %v1372
        %v1374 = vrot.slane %v1317, 1
        %v1375 = vrot.slane %v1319, 1
        %v1376 = vsel %vm1353, %v1374, %v1375
        %v1377 = vrot.slane %v1318, 1
        %v1378 = vrot.slane %v1320, 1
        %v1379 = vsel %vm1353, %v1377, %v1378
        %v1380 = vrot.slane %v1321, 1
        %v1381 = vsel %vm1353, %v1375, %v1380
        %v1382 = vrot.slane %v1322, 1
        %v1383 = vsel %vm1353, %v1378, %v1382
        %v1384 = vrot.slane %v1323, 1
        %v1385 = vrot.slane %v1325, 1
        %v1386 = vsel %vm1353, %v1384, %v1385
        %v1387 = vrot.slane %v1324, 1
        %v1388 = vrot.slane %v1326, 1
        %v1389 = vsel %vm1353, %v1387, %v1388
        %v1390 = vrot.slane %v1327, 1
        %v1391 = vsel %vm1353, %v1385, %v1390
        %v1392 = vrot.slane %v1328, 1
        %v1393 = vsel %vm1353, %v1388, %v1392
        %1410 = vst [vmem:[#allocation3 + $0x10] sm:$0xff] %v1356
        %1411 = vst [vmem:[#allocation3 + $0x18] sm:$0xff] %v1359
        %1412 = vst [vmem:[#allocation3 + $0x40] sm:$0xff] %v1361
        %1413 = vst [vmem:[#allocation3 + $0x48] sm:$0xff] %v1363
        %1414 = vst [vmem:[#allocation3 + $0x70] sm:$0xff] %v1366
        %1415 = vst [vmem:[#allocation3 + $0x78] sm:$0xff] %v1369
        %1416 = vst [vmem:[#allocation3 + $0xa0] sm:$0xff] %v1371
        %1417 = vst [vmem:[#allocation3 + $0xa8] sm:$0xff] %v1373
        %1418 = vst [vmem:[#allocation3 + $0xd0] sm:$0xff] %v1376
        %1419 = vst [vmem:[#allocation3 + $0xd8] sm:$0xff] %v1379
        %1420 = vst [vmem:[#allocation3 + $0x100] sm:$0xff] %v1381
        %1421 = vst [vmem:[#allocation3 + $0x108] sm:$0xff] %v1383
        %1422 = vst [vmem:[#allocation3 + $0x130] sm:$0xff] %v1386
        %1423 = vst [vmem:[#allocation3 + $0x138] sm:$0xff] %v1389
        %1424 = vst [vmem:[#allocation3 + $0x160] sm:$0xff] %v1391
        %1425 = vst [vmem:[#allocation3 + $0x168] sm:$0xff] %v1393
        %v1426 = vld [vmem:[#allocation2] sm:$0xfc]
        %v1427 = vld [vmem:[#allocation2 + $0x8] sm:$0xfc]
        %v1428 = vld [vmem:[#allocation2 + $0x10] sm:$0xff]
        %v1429 = vld [vmem:[#allocation2 + $0x18] sm:$0xff]
        %v1430 = vld [vmem:[#allocation2 + $0x20] sm:$0x3]
        %v1431 = vld [vmem:[#allocation2 + $0x28] sm:$0x3]
        %v1432 = vld [vmem:[#allocation2 + $0x30] sm:$0xfc]
        %v1433 = vld [vmem:[#allocation2 + $0x38] sm:$0xfc]
        %v1434 = vld [vmem:[#allocation2 + $0x40] sm:$0xff]
        %v1435 = vld [vmem:[#allocation2 + $0x48] sm:$0xff]
        %v1436 = vld [vmem:[#allocation2 + $0x50] sm:$0x3]
        %v1437 = vld [vmem:[#allocation2 + $0x58] sm:$0x3]
        %v1438 = vld [vmem:[#allocation2 + $0x60] sm:$0xfc]
        %v1439 = vld [vmem:[#allocation2 + $0x68] sm:$0xfc]
        %v1440 = vld [vmem:[#allocation2 + $0x70] sm:$0xff]
        %v1441 = vld [vmem:[#allocation2 + $0x78] sm:$0xff]
        %v1442 = vld [vmem:[#allocation2 + $0x80] sm:$0x3]
        %v1443 = vld [vmem:[#allocation2 + $0x88] sm:$0x3]
        %v1444 = vld [vmem:[#allocation2 + $0x90] sm:$0xfc]
        %v1445 = vld [vmem:[#allocation2 + $0x98] sm:$0xfc]
        %v1446 = vld [vmem:[#allocation2 + $0xa0] sm:$0xff]
        %v1447 = vld [vmem:[#allocation2 + $0xa8] sm:$0xff]
        %v1448 = vld [vmem:[#allocation2 + $0xb0] sm:$0x3]
        %v1449 = vld [vmem:[#allocation2 + $0xb8] sm:$0x3]
        %vm1474 = vcmask 1045504
        %v1475 = vrot.slane %v1426, 2
        %v1476 = vrot.slane %v1428, 2
        %v1477 = vsel %vm1474, %v1475, %v1476
        %v1478 = vrot.slane %v1427, 2
        %v1479 = vrot.slane %v1429, 2
        %v1480 = vsel %vm1474, %v1478, %v1479
        %v1481 = vrot.slane %v1430, 2
        %v1482 = vsel %vm1474, %v1476, %v1481
        %v1483 = vrot.slane %v1431, 2
        %v1484 = vsel %vm1474, %v1479, %v1483
        %v1485 = vrot.slane %v1432, 2
        %v1486 = vrot.slane %v1434, 2
        %v1487 = vsel %vm1474, %v1485, %v1486
        %v1488 = vrot.slane %v1433, 2
        %v1489 = vrot.slane %v1435, 2
        %v1490 = vsel %vm1474, %v1488, %v1489
        %v1491 = vrot.slane %v1436, 2
        %v1492 = vsel %vm1474, %v1486, %v1491
        %v1493 = vrot.slane %v1437, 2
        %v1494 = vsel %vm1474, %v1489, %v1493
        %v1495 = vrot.slane %v1438, 2
        %v1496 = vrot.slane %v1440, 2
        %v1497 = vsel %vm1474, %v1495, %v1496
        %v1498 = vrot.slane %v1439, 2
        %v1499 = vrot.slane %v1441, 2
        %v1500 = vsel %vm1474, %v1498, %v1499
        %v1501 = vrot.slane %v1442, 2
        %v1502 = vsel %vm1474, %v1496, %v1501
        %v1503 = vrot.slane %v1443, 2
        %v1504 = vsel %vm1474, %v1499, %v1503
        %v1505 = vrot.slane %v1444, 2
        %v1506 = vrot.slane %v1446, 2
        %v1507 = vsel %vm1474, %v1505, %v1506
        %v1508 = vrot.slane %v1445, 2
        %v1509 = vrot.slane %v1447, 2
        %v1510 = vsel %vm1474, %v1508, %v1509
        %v1511 = vrot.slane %v1448, 2
        %v1512 = vsel %vm1474, %v1506, %v1511
        %v1513 = vrot.slane %v1449, 2
        %v1514 = vsel %vm1474, %v1509, %v1513
        %1531 = vst [vmem:[#allocation3 + $0x20] sm:$0xff] %v1477
        %1532 = vst [vmem:[#allocation3 + $0x28] sm:$0xff] %v1480
        %1533 = vst [vmem:[#allocation3 + $0x50] sm:$0xff] %v1482
        %1534 = vst [vmem:[#allocation3 + $0x58] sm:$0xff] %v1484
        %1535 = vst [vmem:[#allocation3 + $0x80] sm:$0xff] %v1487
        %1536 = vst [vmem:[#allocation3 + $0x88] sm:$0xff] %v1490
        %1537 = vst [vmem:[#allocation3 + $0xb0] sm:$0xff] %v1492
        %1538 = vst [vmem:[#allocation3 + $0xb8] sm:$0xff] %v1494
        %1539 = vst [vmem:[#allocation3 + $0xe0] sm:$0xff] %v1497
        %1540 = vst [vmem:[#allocation3 + $0xe8] sm:$0xff] %v1500
        %1541 = vst [vmem:[#allocation3 + $0x110] sm:$0xff] %v1502
        %1542 = vst [vmem:[#allocation3 + $0x118] sm:$0xff] %v1504
        %1543 = vst [vmem:[#allocation3 + $0x140] sm:$0xff] %v1507
        %1544 = vst [vmem:[#allocation3 + $0x148] sm:$0xff] %v1510
        %1545 = vst [vmem:[#allocation3 + $0x170] sm:$0xff] %v1512
        %1546 = vst [vmem:[#allocation3 + $0x178] sm:$0xff] %v1514
        %v1547 = vld [vmem:[#allocation3] sm:$0xff]
        %v1548 = vld [vmem:[#allocation3 + $0x8] sm:$0xff]
        %v1549 = vld [vmem:[#allocation3 + $0x10] sm:$0xff]
        %v1550 = vld [vmem:[#allocation3 + $0x18] sm:$0xff]
        %v1551 = vld [vmem:[#allocation3 + $0x20] sm:$0xff]
        %v1552 = vld [vmem:[#allocation3 + $0x28] sm:$0xff]
        %v1553 = vld [vmem:[#allocation3 + $0x30] sm:$0xff]
        %v1554 = vld [vmem:[#allocation3 + $0x38] sm:$0xff]
        %v1555 = vld [vmem:[#allocation3 + $0x40] sm:$0xff]
        %v1556 = vld [vmem:[#allocation3 + $0x48] sm:$0xff]
        %v1557 = vld [vmem:[#allocation3 + $0x50] sm:$0xff]
        %v1558 = vld [vmem:[#allocation3 + $0x58] sm:$0xff]
        %v1559 = vld [vmem:[#allocation3 + $0x60] sm:$0xff]
        %v1560 = vld [vmem:[#allocation3 + $0x68] sm:$0xff]
        %v1561 = vld [vmem:[#allocation3 + $0x70] sm:$0xff]
        %v1562 = vld [vmem:[#allocation3 + $0x78] sm:$0xff]
        %v1563 = vld [vmem:[#allocation3 + $0x80] sm:$0xff]
        %v1564 = vld [vmem:[#allocation3 + $0x88] sm:$0xff]
        %v1565 = vld [vmem:[#allocation3 + $0x90] sm:$0xff]
        %v1566 = vld [vmem:[#allocation3 + $0x98] sm:$0xff]
        %v1567 = vld [vmem:[#allocation3 + $0xa0] sm:$0xff]
        %v1568 = vld [vmem:[#allocation3 + $0xa8] sm:$0xff]
        %v1569 = vld [vmem:[#allocation3 + $0xb0] sm:$0xff]
        %v1570 = vld [vmem:[#allocation3 + $0xb8] sm:$0xff]
        %v1571 = vld [vmem:[#allocation3 + $0xc0] sm:$0xff]
        %v1572 = vld [vmem:[#allocation3 + $0xc8] sm:$0xff]
        %v1573 = vld [vmem:[#allocation3 + $0xd0] sm:$0xff]
        %v1574 = vld [vmem:[#allocation3 + $0xd8] sm:$0xff]
        %v1575 = vld [vmem:[#allocation3 + $0xe0] sm:$0xff]
        %v1576 = vld [vmem:[#allocation3 + $0xe8] sm:$0xff]
        %v1577 = vld [vmem:[#allocation3 + $0xf0] sm:$0xff]
        %v1578 = vld [vmem:[#allocation3 + $0xf8] sm:$0xff]
        %v1579 = vld [vmem:[#allocation3 + $0x100] sm:$0xff]
        %v1580 = vld [vmem:[#allocation3 + $0x108] sm:$0xff]
        %v1581 = vld [vmem:[#allocation3 + $0x110] sm:$0xff]
        %v1582 = vld [vmem:[#allocation3 + $0x118] sm:$0xff]
        %v1583 = vld [vmem:[#allocation3 + $0x120] sm:$0xff]
        %v1584 = vld [vmem:[#allocation3 + $0x128] sm:$0xff]
        %v1585 = vld [vmem:[#allocation3 + $0x130] sm:$0xff]
        %v1586 = vld [vmem:[#allocation3 + $0x138] sm:$0xff]
        %v1587 = vld [vmem:[#allocation3 + $0x140] sm:$0xff]
        %v1588 = vld [vmem:[#allocation3 + $0x148] sm:$0xff]
        %v1589 = vld [vmem:[#allocation3 + $0x150] sm:$0xff]
        %v1590 = vld [vmem:[#allocation3 + $0x158] sm:$0xff]
        %v1591 = vld [vmem:[#allocation3 + $0x160] sm:$0xff]
        %v1592 = vld [vmem:[#allocation3 + $0x168] sm:$0xff]
        %v1593 = vld [vmem:[#allocation3 + $0x170] sm:$0xff]
        %v1594 = vld [vmem:[#allocation3 + $0x178] sm:$0xff]
        %v1595 = vld [vmem:[#allocation14] sm:$0xff]
        %v1596 = vld [vmem:[#allocation14 + $0x8] sm:$0xff]
        %v1597 = vld [vmem:[#allocation14 + $0x10] sm:$0xff]
        %v1598 = vld [vmem:[#allocation14 + $0x18] sm:$0xff]
        %v1599 = vld [vmem:[#allocation14 + $0x20] sm:$0xff]
        %v1600 = vld [vmem:[#allocation14 + $0x28] sm:$0xff]
        %v1601 = vld [vmem:[#allocation14 + $0x30] sm:$0xff]
        %v1602 = vld [vmem:[#allocation14 + $0x38] sm:$0xff]
        %v1603 = vld [vmem:[#allocation14 + $0x40] sm:$0xff]
        %v1604 = vld [vmem:[#allocation14 + $0x48] sm:$0xff]
        %v1605 = vld [vmem:[#allocation14 + $0x50] sm:$0xff]
        %v1606 = vld [vmem:[#allocation14 + $0x58] sm:$0xff]
        %v1607 = vld [vmem:[#allocation14 + $0x60] sm:$0xff]
        %v1608 = vld [vmem:[#allocation14 + $0x68] sm:$0xff]
        %v1609 = vld [vmem:[#allocation14 + $0x70] sm:$0xff]
        %v1610 = vld [vmem:[#allocation14 + $0x78] sm:$0xff]
        %v1611 = vld [vmem:[#allocation14 + $0x80] sm:$0xff]
        %v1612 = vld [vmem:[#allocation14 + $0x88] sm:$0xff]
        %v1613 = vld [vmem:[#allocation14 + $0x90] sm:$0xff]
        %v1614 = vld [vmem:[#allocation14 + $0x98] sm:$0xff]
        %v1615 = vld [vmem:[#allocation14 + $0xa0] sm:$0xff]
        %v1616 = vld [vmem:[#allocation14 + $0xa8] sm:$0xff]
        %v1617 = vld [vmem:[#allocation14 + $0xb0] sm:$0xff]
        %v1618 = vld [vmem:[#allocation14 + $0xb8] sm:$0xff]
        %v1619 = vld [vmem:[#allocation14 + $0xc0] sm:$0xff]
        %v1620 = vld [vmem:[#allocation14 + $0xc8] sm:$0xff]
        %v1621 = vld [vmem:[#allocation14 + $0xd0] sm:$0xff]
        %v1622 = vld [vmem:[#allocation14 + $0xd8] sm:$0xff]
        %v1623 = vld [vmem:[#allocation14 + $0xe0] sm:$0xff]
        %v1624 = vld [vmem:[#allocation14 + $0xe8] sm:$0xff]
        %v1625 = vld [vmem:[#allocation14 + $0xf0] sm:$0xff]
        %v1626 = vld [vmem:[#allocation14 + $0xf8] sm:$0xff]
        %v1627 = vld [vmem:[#allocation14 + $0x100] sm:$0xff]
        %v1628 = vld [vmem:[#allocation14 + $0x108] sm:$0xff]
        %v1629 = vld [vmem:[#allocation14 + $0x110] sm:$0xff]
        %v1630 = vld [vmem:[#allocation14 + $0x118] sm:$0xff]
        %v1631 = vld [vmem:[#allocation14 + $0x120] sm:$0xff]
        %v1632 = vld [vmem:[#allocation14 + $0x128] sm:$0xff]
        %v1633 = vld [vmem:[#allocation14 + $0x130] sm:$0xff]
        %v1634 = vld [vmem:[#allocation14 + $0x138] sm:$0xff]
        %v1635 = vld [vmem:[#allocation14 + $0x140] sm:$0xff]
        %v1636 = vld [vmem:[#allocation14 + $0x148] sm:$0xff]
        %v1637 = vld [vmem:[#allocation14 + $0x150] sm:$0xff]
        %v1638 = vld [vmem:[#allocation14 + $0x158] sm:$0xff]
        %v1639 = vld [vmem:[#allocation14 + $0x160] sm:$0xff]
        %v1640 = vld [vmem:[#allocation14 + $0x168] sm:$0xff]
        %v1641 = vld [vmem:[#allocation14 + $0x170] sm:$0xff]
        %v1642 = vld [vmem:[#allocation14 + $0x178] sm:$0xff]
        %v1643 = vld [vmem:[#allocation14 + $0x180] sm:$0xff]
        %v1644 = vld [vmem:[#allocation14 + $0x188] sm:$0xff]
        %v1645 = vld [vmem:[#allocation14 + $0x190] sm:$0xff]
        %v1646 = vld [vmem:[#allocation14 + $0x198] sm:$0xff]
        %v1647 = vld [vmem:[#allocation14 + $0x1a0] sm:$0xff]
        %v1648 = vld [vmem:[#allocation14 + $0x1a8] sm:$0xff]
        %v1649 = vld [vmem:[#allocation14 + $0x1b0] sm:$0xff]
        %v1650 = vld [vmem:[#allocation14 + $0x1b8] sm:$0xff]
        %v1651 = vld [vmem:[#allocation14 + $0x1c0] sm:$0xff]
        %v1652 = vld [vmem:[#allocation14 + $0x1c8] sm:$0xff]
        %v1653 = vld [vmem:[#allocation14 + $0x1d0] sm:$0xff]
        %v1654 = vld [vmem:[#allocation14 + $0x1d8] sm:$0xff]
        %v1655 = vld [vmem:[#allocation14 + $0x1e0] sm:$0xff]
        %v1656 = vld [vmem:[#allocation14 + $0x1e8] sm:$0xff]
        %v1657 = vld [vmem:[#allocation14 + $0x1f0] sm:$0xff]
        %v1658 = vld [vmem:[#allocation14 + $0x1f8] sm:$0xff]
        %v1659 = vld [vmem:[#allocation14 + $0x200] sm:$0xff]
        %v1660 = vld [vmem:[#allocation14 + $0x208] sm:$0xff]
        %v1661 = vld [vmem:[#allocation14 + $0x210] sm:$0xff]
        %v1662 = vld [vmem:[#allocation14 + $0x218] sm:$0xff]
        %v1663 = vld [vmem:[#allocation14 + $0x220] sm:$0xff]
        %v1664 = vld [vmem:[#allocation14 + $0x228] sm:$0xff]
        %v1665 = vld [vmem:[#allocation14 + $0x230] sm:$0xff]
        %v1666 = vld [vmem:[#allocation14 + $0x238] sm:$0xff]
        %v1667 = vld [vmem:[#allocation14 + $0x240] sm:$0xff]
        %v1668 = vld [vmem:[#allocation14 + $0x248] sm:$0xff]
        %v1669 = vld [vmem:[#allocation14 + $0x250] sm:$0xff]
        %v1670 = vld [vmem:[#allocation14 + $0x258] sm:$0xff]
        %v1671 = vld [vmem:[#allocation14 + $0x260] sm:$0xff]
        %v1672 = vld [vmem:[#allocation14 + $0x268] sm:$0xff]
        %v1673 = vld [vmem:[#allocation14 + $0x270] sm:$0xff]
        %v1674 = vld [vmem:[#allocation14 + $0x278] sm:$0xff]
        %v1675 = vld [vmem:[#allocation14 + $0x280] sm:$0xff]
        %v1676 = vld [vmem:[#allocation14 + $0x288] sm:$0xff]
        %v1677 = vld [vmem:[#allocation14 + $0x290] sm:$0xff]
        %v1678 = vld [vmem:[#allocation14 + $0x298] sm:$0xff]
        %v1679 = vld [vmem:[#allocation14 + $0x2a0] sm:$0xff]
        %v1680 = vld [vmem:[#allocation14 + $0x2a8] sm:$0xff]
        %v1681 = vld [vmem:[#allocation14 + $0x2b0] sm:$0xff]
        %v1682 = vld [vmem:[#allocation14 + $0x2b8] sm:$0xff]
        %v1683 = vld [vmem:[#allocation14 + $0x2c0] sm:$0xff]
        %v1684 = vld [vmem:[#allocation14 + $0x2c8] sm:$0xff]
        %v1685 = vld [vmem:[#allocation14 + $0x2d0] sm:$0xff]
        %v1686 = vld [vmem:[#allocation14 + $0x2d8] sm:$0xff]
        %v1687 = vld [vmem:[#allocation14 + $0x2e0] sm:$0xff]
        %v1688 = vld [vmem:[#allocation14 + $0x2e8] sm:$0xff]
        %v1689 = vld [vmem:[#allocation14 + $0x2f0] sm:$0xff]
        %v1690 = vld [vmem:[#allocation14 + $0x2f8] sm:$0xff]
        %1691 = vmatprep.subr.mxu0 0.0
        %1692 = vmatpush1.msra.mxu0 %v1595
        %1693 = vmatprep.subr.mxu0 0.0
        %1694 = vmatpush1.msra.mxu0 %v1596
        %1695 = vmatprep.subr.mxu0 0.0
        %1696 = vmatpush1.msra.mxu0 %v1597
        %1697 = vmatprep.subr.mxu0 0.0
        %1698 = vmatpush1.msra.mxu0 %v1598
        %1699 = vmatprep.subr.mxu0 0.0
        %1700 = vmatpush1.msra.mxu0 %v1599
        %1701 = vmatprep.subr.mxu0 0.0
        %1702 = vmatpush1.msra.mxu0 %v1600
        %1703 = vmatprep.subr.mxu0 0.0
        %1704 = vmatpush1.msra.mxu0 %v1601
        %1705 = vmatprep.subr.mxu0 0.0
        %1706 = vmatpush1.msra.mxu0 %v1602
        %1707 = vmatprep.subr.mxu0 0.0
        %1708 = vmatpush1.msra.mxu0 %v1603
        %1709 = vmatprep.subr.mxu0 0.0
        %1710 = vmatpush1.msra.mxu0 %v1604
        %1711 = vmatprep.subr.mxu0 0.0
        %1712 = vmatpush1.msra.mxu0 %v1605
        %1713 = vmatprep.subr.mxu0 0.0
        %1714 = vmatpush1.msra.mxu0 %v1606
        %1715 = vmatprep.subr.mxu0 0.0
        %1716 = vmatpush1.msra.mxu0 %v1607
        %1717 = vmatprep.subr.mxu0 0.0
        %1718 = vmatpush1.msra.mxu0 %v1608
        %1719 = vmatprep.subr.mxu0 0.0
        %1720 = vmatpush1.msra.mxu0 %v1609
        %1721 = vmatprep.subr.mxu0 0.0
        %1722 = vmatpush1.msra.mxu0 %v1610
        %1723 = vmatprep.subr.mxu0 0.0
        %1724 = vmatpush1.msra.mxu0 %v1611
        %1725 = vmatprep.subr.mxu0 0.0
        %1726 = vmatpush1.msra.mxu0 %v1612
        %1727 = vmatprep.subr.mxu0 0.0
        %1728 = vmatpush1.msra.mxu0 %v1613
        %1729 = vmatprep.subr.mxu0 0.0
        %1730 = vmatpush1.msra.mxu0 %v1614
        %1731 = vmatprep.subr.mxu0 0.0
        %1732 = vmatpush1.msra.mxu0 %v1615
        %1733 = vmatprep.subr.mxu0 0.0
        %1734 = vmatpush1.msra.mxu0 %v1616
        %1735 = vmatprep.subr.mxu0 0.0
        %1736 = vmatpush1.msra.mxu0 %v1617
        %1737 = vmatprep.subr.mxu0 0.0
        %1738 = vmatpush1.msra.mxu0 %v1618
        %1739 = vmatprep.subr.mxu0 0.0
        %1740 = vmatpush1.msra.mxu0 %v1619
        %1741 = vmatprep.subr.mxu0 0.0
        %1742 = vmatpush1.msra.mxu0 %v1620
        %1743 = vmatprep.subr.mxu0 0.0
        %1744 = vmatpush1.msra.mxu0 %v1621
        %1745 = vmatprep.subr.mxu0 0.0
        %1746 = vmatpush1.msra.mxu0 %v1622
        %1747 = vmatprep.subr.mxu0 0.0
        %1748 = vmatpush1.msra.mxu0 %v1623
        %1749 = vmatprep.subr.mxu0 0.0
        %1750 = vmatpush1.msra.mxu0 %v1624
        %1751 = vmatprep.subr.mxu0 0.0
        %1752 = vmatpush1.msra.mxu0 %v1625
        %1753 = vmatprep.subr.mxu0 0.0
        %1754 = vmatpush1.msra.mxu0 %v1626
        %1755 = vmatprep.mubr.f32.mxu0 %v1548
        %1756 = vmatmul.mubr.f32.gmra.mrb[0].mxu0 %v1547
        %v1757 = vpop.f32.mrb[0].mxu0
        %v1758 = vadd.f32 0.0, %v1757
        %v1759 = vpop.f32.mrb[0].mxu0
        %1760 = vmatprep.mubr.f32.mxu0 %v1554
        %1761 = vmatmul.mubr.f32.gmra.mrb[0].mxu0 %v1553
        %v1762 = vpop.f32.mrb[0].mxu0
        %v1763 = vadd.f32 0.0, %v1762
        %v1764 = vpop.f32.mrb[0].mxu0
        %1765 = vmatprep.mubr.f32.mxu0 %v1560
        %1766 = vmatmul.mubr.f32.gmra.mrb[0].mxu0 %v1559
        %v1767 = vpop.f32.mrb[0].mxu0
        %v1768 = vadd.f32 0.0, %v1767
        %v1769 = vpop.f32.mrb[0].mxu0
        %1770 = vmatprep.mubr.f32.mxu0 %v1566
        %1771 = vmatmul.mubr.f32.gmra.mrb[0].mxu0 %v1565
        %v1772 = vpop.f32.mrb[0].mxu0
        %v1773 = vadd.f32 0.0, %v1772
        %v1774 = vpop.f32.mrb[0].mxu0
        %1775 = vmatprep.mubr.f32.mxu0 %v1572
        %1776 = vmatmul.mubr.f32.gmra.mrb[0].mxu0 %v1571
        %v1777 = vpop.f32.mrb[0].mxu0
        %v1778 = vadd.f32 0.0, %v1777
        %v1779 = vpop.f32.mrb[0].mxu0
        %1780 = vmatprep.mubr.f32.mxu0 %v1578
        %1781 = vmatmul.mubr.f32.gmra.mrb[0].mxu0 %v1577
        %v1782 = vpop.f32.mrb[0].mxu0
        %v1783 = vadd.f32 0.0, %v1782
        %v1784 = vpop.f32.mrb[0].mxu0
        %1785 = vmatprep.mubr.f32.mxu0 %v1584
        %1786 = vmatmul.mubr.f32.gmra.mrb[0].mxu0 %v1583
        %v1787 = vpop.f32.mrb[0].mxu0
        %v1788 = vadd.f32 0.0, %v1787
        %v1789 = vpop.f32.mrb[0].mxu0
        %1790 = vmatprep.mubr.f32.mxu0 %v1590
        %1791 = vmatmul.mubr.f32.gmra.mrb[0].mxu0 %v1589
        %v1792 = vpop.f32.mrb[0].mxu0
        %v1793 = vadd.f32 0.0, %v1792
        %v1794 = vpop.f32.mrb[0].mxu0
        %1795 = vdwg.mxu0
        %1796 = vmatprep.subr.mxu0 0.0
        %1797 = vmatpush1.msra.mxu0 %v1627
        %1798 = vmatprep.subr.mxu0 0.0
        %1799 = vmatpush1.msra.mxu0 %v1628
        %1800 = vmatprep.subr.mxu0 0.0
        %1801 = vmatpush1.msra.mxu0 %v1629
        %1802 = vmatprep.subr.mxu0 0.0
        %1803 = vmatpush1.msra.mxu0 %v1630
        %1804 = vmatprep.subr.mxu0 0.0
        %1805 = vmatpush1.msra.mxu0 %v1631
        %1806 = vmatprep.subr.mxu0 0.0
        %1807 = vmatpush1.msra.mxu0 %v1632
        %1808 = vmatprep.subr.mxu0 0.0
        %1809 = vmatpush1.msra.mxu0 %v1633
        %1810 = vmatprep.subr.mxu0 0.0
        %1811 = vmatpush1.msra.mxu0 %v1634
        %1812 = vmatprep.subr.mxu0 0.0
        %1813 = vmatpush1.msra.mxu0 %v1635
        %1814 = vmatprep.subr.mxu0 0.0
        %1815 = vmatpush1.msra.mxu0 %v1636
        %1816 = vmatprep.subr.mxu0 0.0
        %1817 = vmatpush1.msra.mxu0 %v1637
        %1818 = vmatprep.subr.mxu0 0.0
        %1819 = vmatpush1.msra.mxu0 %v1638
        %1820 = vmatprep.subr.mxu0 0.0
        %1821 = vmatpush1.msra.mxu0 %v1639
        %1822 = vmatprep.subr.mxu0 0.0
        %1823 = vmatpush1.msra.mxu0 %v1640
        %1824 = vmatprep.subr.mxu0 0.0
        %1825 = vmatpush1.msra.mxu0 %v1641
        %1826 = vmatprep.subr.mxu0 0.0
        %1827 = vmatpush1.msra.mxu0 %v1642
        %1828 = vmatprep.subr.mxu0 0.0
        %1829 = vmatpush1.msra.mxu0 %v1643
        %1830 = vmatprep.subr.mxu0 0.0
        %1831 = vmatpush1.msra.mxu0 %v1644
        %1832 = vmatprep.subr.mxu0 0.0
        %1833 = vmatpush1.msra.mxu0 %v1645
        %1834 = vmatprep.subr.mxu0 0.0
        %1835 = vmatpush1.msra.mxu0 %v1646
        %1836 = vmatprep.subr.mxu0 0.0
        %1837 = vmatpush1.msra.mxu0 %v1647
        %1838 = vmatprep.subr.mxu0 0.0
        %1839 = vmatpush1.msra.mxu0 %v1648
        %1840 = vmatprep.subr.mxu0 0.0
        %1841 = vmatpush1.msra.mxu0 %v1649
        %1842 = vmatprep.subr.mxu0 0.0
        %1843 = vmatpush1.msra.mxu0 %v1650
        %1844 = vmatprep.subr.mxu0 0.0
        %1845 = vmatpush1.msra.mxu0 %v1651
        %1846 = vmatprep.subr.mxu0 0.0
        %1847 = vmatpush1.msra.mxu0 %v1652
        %1848 = vmatprep.subr.mxu0 0.0
        %1849 = vmatpush1.msra.mxu0 %v1653
        %1850 = vmatprep.subr.mxu0 0.0
        %1851 = vmatpush1.msra.mxu0 %v1654
        %1852 = vmatprep.subr.mxu0 0.0
        %1853 = vmatpush1.msra.mxu0 %v1655
        %1854 = vmatprep.subr.mxu0 0.0
        %1855 = vmatpush1.msra.mxu0 %v1656
        %1856 = vmatprep.subr.mxu0 0.0
        %1857 = vmatpush1.msra.mxu0 %v1657
        %1858 = vmatprep.subr.mxu0 0.0
        %1859 = vmatpush1.msra.mxu0 %v1658
        %1860 = vmatprep.mubr.f32.mxu0 %v1550
        %1861 = vmatmul.mubr.f32.gmra.mrb[0].mxu0 %v1549
        %v1862 = vpop.f32.mrb[0].mxu0
        %v1863 = vadd.f32 %v1758, %v1862
        %v1864 = vpop.f32.mrb[0].mxu0
        %1865 = vmatprep.mubr.f32.mxu0 %v1556
        %1866 = vmatmul.mubr.f32.gmra.mrb[0].mxu0 %v1555
        %v1867 = vpop.f32.mrb[0].mxu0
        %v1868 = vadd.f32 %v1763, %v1867
        %v1869 = vpop.f32.mrb[0].mxu0
        %1870 = vmatprep.mubr.f32.mxu0 %v1562
        %1871 = vmatmul.mubr.f32.gmra.mrb[0].mxu0 %v1561
        %v1872 = vpop.f32.mrb[0].mxu0
        %v1873 = vadd.f32 %v1768, %v1872
        %v1874 = vpop.f32.mrb[0].mxu0
        %1875 = vmatprep.mubr.f32.mxu0 %v1568
        %1876 = vmatmul.mubr.f32.gmra.mrb[0].mxu0 %v1567
        %v1877 = vpop.f32.mrb[0].mxu0
        %v1878 = vadd.f32 %v1773, %v1877
        %v1879 = vpop.f32.mrb[0].mxu0
        %1880 = vmatprep.mubr.f32.mxu0 %v1574
        %1881 = vmatmul.mubr.f32.gmra.mrb[0].mxu0 %v1573
        %v1882 = vpop.f32.mrb[0].mxu0
        %v1883 = vadd.f32 %v1778, %v1882
        %v1884 = vpop.f32.mrb[0].mxu0
        %1885 = vmatprep.mubr.f32.mxu0 %v1580
        %1886 = vmatmul.mubr.f32.gmra.mrb[0].mxu0 %v1579
        %v1887 = vpop.f32.mrb[0].mxu0
        %v1888 = vadd.f32 %v1783, %v1887
        %v1889 = vpop.f32.mrb[0].mxu0
        %1890 = vmatprep.mubr.f32.mxu0 %v1586
        %1891 = vmatmul.mubr.f32.gmra.mrb[0].mxu0 %v1585
        %v1892 = vpop.f32.mrb[0].mxu0
        %v1893 = vadd.f32 %v1788, %v1892
        %v1894 = vpop.f32.mrb[0].mxu0
        %1895 = vmatprep.mubr.f32.mxu0 %v1592
        %1896 = vmatmul.mubr.f32.gmra.mrb[0].mxu0 %v1591
        %v1897 = vpop.f32.mrb[0].mxu0
        %v1898 = vadd.f32 %v1793, %v1897
        %v1899 = vpop.f32.mrb[0].mxu0
        %1900 = vdwg.mxu0
        %1901 = vmatprep.subr.mxu0 0.0
        %1902 = vmatpush1.msra.mxu0 %v1659
        %1903 = vmatprep.subr.mxu0 0.0
        %1904 = vmatpush1.msra.mxu0 %v1660
        %1905 = vmatprep.subr.mxu0 0.0
        %1906 = vmatpush1.msra.mxu0 %v1661
        %1907 = vmatprep.subr.mxu0 0.0
        %1908 = vmatpush1.msra.mxu0 %v1662
        %1909 = vmatprep.subr.mxu0 0.0
        %1910 = vmatpush1.msra.mxu0 %v1663
        %1911 = vmatprep.subr.mxu0 0.0
        %1912 = vmatpush1.msra.mxu0 %v1664
        %1913 = vmatprep.subr.mxu0 0.0
        %1914 = vmatpush1.msra.mxu0 %v1665
        %1915 = vmatprep.subr.mxu0 0.0
        %1916 = vmatpush1.msra.mxu0 %v1666
        %1917 = vmatprep.subr.mxu0 0.0
        %1918 = vmatpush1.msra.mxu0 %v1667
        %1919 = vmatprep.subr.mxu0 0.0
        %1920 = vmatpush1.msra.mxu0 %v1668
        %1921 = vmatprep.subr.mxu0 0.0
        %1922 = vmatpush1.msra.mxu0 %v1669
        %1923 = vmatprep.subr.mxu0 0.0
        %1924 = vmatpush1.msra.mxu0 %v1670
        %1925 = vmatprep.subr.mxu0 0.0
        %1926 = vmatpush1.msra.mxu0 %v1671
        %1927 = vmatprep.subr.mxu0 0.0
        %1928 = vmatpush1.msra.mxu0 %v1672
        %1929 = vmatprep.subr.mxu0 0.0
        %1930 = vmatpush1.msra.mxu0 %v1673
        %1931 = vmatprep.subr.mxu0 0.0
        %1932 = vmatpush1.msra.mxu0 %v1674
        %1933 = vmatprep.subr.mxu0 0.0
        %1934 = vmatpush1.msra.mxu0 %v1675
        %1935 = vmatprep.subr.mxu0 0.0
        %1936 = vmatpush1.msra.mxu0 %v1676
        %1937 = vmatprep.subr.mxu0 0.0
        %1938 = vmatpush1.msra.mxu0 %v1677
        %1939 = vmatprep.subr.mxu0 0.0
        %1940 = vmatpush1.msra.mxu0 %v1678
        %1941 = vmatprep.subr.mxu0 0.0
        %1942 = vmatpush1.msra.mxu0 %v1679
        %1943 = vmatprep.subr.mxu0 0.0
        %1944 = vmatpush1.msra.mxu0 %v1680
        %1945 = vmatprep.subr.mxu0 0.0
        %1946 = vmatpush1.msra.mxu0 %v1681
        %1947 = vmatprep.subr.mxu0 0.0
        %1948 = vmatpush1.msra.mxu0 %v1682
        %1949 = vmatprep.subr.mxu0 0.0
        %1950 = vmatpush1.msra.mxu0 %v1683
        %1951 = vmatprep.subr.mxu0 0.0
        %1952 = vmatpush1.msra.mxu0 %v1684
        %1953 = vmatprep.subr.mxu0 0.0
        %1954 = vmatpush1.msra.mxu0 %v1685
        %1955 = vmatprep.subr.mxu0 0.0
        %1956 = vmatpush1.msra.mxu0 %v1686
        %1957 = vmatprep.subr.mxu0 0.0
        %1958 = vmatpush1.msra.mxu0 %v1687
        %1959 = vmatprep.subr.mxu0 0.0
        %1960 = vmatpush1.msra.mxu0 %v1688
        %1961 = vmatprep.subr.mxu0 0.0
        %1962 = vmatpush1.msra.mxu0 %v1689
        %1963 = vmatprep.subr.mxu0 0.0
        %1964 = vmatpush1.msra.mxu0 %v1690
        %1965 = vmatprep.mubr.f32.mxu0 %v1552
        %1966 = vmatmul.mubr.f32.gmra.mrb[0].mxu0 %v1551
        %v1967 = vpop.f32.mrb[0].mxu0
        %v1968 = vadd.f32 %v1863, %v1967
        %v1969 = vpop.f32.mrb[0].mxu0
        %1970 = vmatprep.mubr.f32.mxu0 %v1558
        %1971 = vmatmul.mubr.f32.gmra.mrb[0].mxu0 %v1557
        %v1972 = vpop.f32.mrb[0].mxu0
        %v1973 = vadd.f32 %v1868, %v1972
        %v1974 = vpop.f32.mrb[0].mxu0
        %1975 = vmatprep.mubr.f32.mxu0 %v1564
        %1976 = vmatmul.mubr.f32.gmra.mrb[0].mxu0 %v1563
        %v1977 = vpop.f32.mrb[0].mxu0
        %v1978 = vadd.f32 %v1873, %v1977
        %v1979 = vpop.f32.mrb[0].mxu0
        %1980 = vmatprep.mubr.f32.mxu0 %v1570
        %1981 = vmatmul.mubr.f32.gmra.mrb[0].mxu0 %v1569
        %v1982 = vpop.f32.mrb[0].mxu0
        %v1983 = vadd.f32 %v1878, %v1982
        %v1984 = vpop.f32.mrb[0].mxu0
        %1985 = vmatprep.mubr.f32.mxu0 %v1576
        %1986 = vmatmul.mubr.f32.gmra.mrb[0].mxu0 %v1575
        %v1987 = vpop.f32.mrb[0].mxu0
        %v1988 = vadd.f32 %v1883, %v1987
        %v1989 = vpop.f32.mrb[0].mxu0
        %1990 = vmatprep.mubr.f32.mxu0 %v1582
        %1991 = vmatmul.mubr.f32.gmra.mrb[0].mxu0 %v1581
        %v1992 = vpop.f32.mrb[0].mxu0
        %v1993 = vadd.f32 %v1888, %v1992
        %v1994 = vpop.f32.mrb[0].mxu0
        %1995 = vmatprep.mubr.f32.mxu0 %v1588
        %1996 = vmatmul.mubr.f32.gmra.mrb[0].mxu0 %v1587
        %v1997 = vpop.f32.mrb[0].mxu0
        %v1998 = vadd.f32 %v1893, %v1997
        %v1999 = vpop.f32.mrb[0].mxu0
        %2000 = vmatprep.mubr.f32.mxu0 %v1594
        %2001 = vmatmul.mubr.f32.gmra.mrb[0].mxu0 %v1593
        %v2002 = vpop.f32.mrb[0].mxu0
        %v2003 = vadd.f32 %v1898, %v2002
        %v2004 = vpop.f32.mrb[0].mxu0
        %2005 = vdwg.mxu0
        %2006 = vst [vmem:[#allocation4] sm:$0xff] %v1968
        %2007 = vst [vmem:[#allocation4 + $0x8] sm:$0xff] %v1973
        %2008 = vst [vmem:[#allocation4 + $0x10] sm:$0xff] %v1978
        %2009 = vst [vmem:[#allocation4 + $0x18] sm:$0xff] %v1983
        %2010 = vst [vmem:[#allocation4 + $0x20] sm:$0xff] %v1988
        %2011 = vst [vmem:[#allocation4 + $0x28] sm:$0xff] %v1993
        %2012 = vst [vmem:[#allocation4 + $0x30] sm:$0xff] %v1998
        %2013 = vst [vmem:[#allocation4 + $0x38] sm:$0xff] %v2003
        %v2014 = vld [vmem:[#allocation4] sm:$0xff]
        %v2015 = vld [vmem:[#allocation4 + $0x8] sm:$0xff]
        %v2016 = vld [vmem:[#allocation4 + $0x10] sm:$0xff]
        %v2017 = vld [vmem:[#allocation4 + $0x18] sm:$0xff]
        %v2018 = vld [vmem:[#allocation4 + $0x20] sm:$0xff]
        %v2019 = vld [vmem:[#allocation4 + $0x28] sm:$0xff]
        %v2020 = vld [vmem:[#allocation4 + $0x30] sm:$0xff]
        %v2021 = vld [vmem:[#allocation4 + $0x38] sm:$0xff]
        %v2022 = vld [vmem:[%s1087] sm:$0xff]
        %v2023 = vld [vmem:[%s1087 + $0x8] sm:$0xff]
        %v2024 = vld [vmem:[%s1087 + $0x10] sm:$0xff]
        %v2025 = vld [vmem:[%s1087 + $0x18] sm:$0xff]
        %v2026 = vld [vmem:[%s1087 + $0x30] sm:$0xff]
        %v2027 = vld [vmem:[%s1087 + $0x38] sm:$0xff]
        %v2028 = vld [vmem:[%s1087 + $0x40] sm:$0xff]
        %v2029 = vld [vmem:[%s1087 + $0x48] sm:$0xff]
        %v2030 = vld [vmem:[%s1087 + $0x60] sm:$0xff]
        %v2031 = vld [vmem:[%s1087 + $0x68] sm:$0xff]
        %v2032 = vld [vmem:[%s1087 + $0x70] sm:$0xff]
        %v2033 = vld [vmem:[%s1087 + $0x78] sm:$0xff]
        %v2034 = vld [vmem:[%s1087 + $0x90] sm:$0xff]
        %v2035 = vld [vmem:[%s1087 + $0x98] sm:$0xff]
        %v2036 = vld [vmem:[%s1087 + $0xa0] sm:$0xff]
        %v2037 = vld [vmem:[%s1087 + $0xa8] sm:$0xff]
        %2038 = vst [vmem:[#allocation3] sm:$0xff] %v2022
        %2039 = vst [vmem:[#allocation3 + $0x8] sm:$0xff] %v2023
        %2040 = vst [vmem:[#allocation3 + $0x30] sm:$0xff] %v2024
        %2041 = vst [vmem:[#allocation3 + $0x38] sm:$0xff] %v2025
        %2042 = vst [vmem:[#allocation3 + $0x60] sm:$0xff] %v2026
        %2043 = vst [vmem:[#allocation3 + $0x68] sm:$0xff] %v2027
        %2044 = vst [vmem:[#allocation3 + $0x90] sm:$0xff] %v2028
        %2045 = vst [vmem:[#allocation3 + $0x98] sm:$0xff] %v2029
        %2046 = vst [vmem:[#allocation3 + $0xc0] sm:$0xff] %v2030
        %2047 = vst [vmem:[#allocation3 + $0xc8] sm:$0xff] %v2031
        %2048 = vst [vmem:[#allocation3 + $0xf0] sm:$0xff] %v2032
        %2049 = vst [vmem:[#allocation3 + $0xf8] sm:$0xff] %v2033
        %2050 = vst [vmem:[#allocation3 + $0x120] sm:$0xff] %v2034
        %2051 = vst [vmem:[#allocation3 + $0x128] sm:$0xff] %v2035
        %2052 = vst [vmem:[#allocation3 + $0x150] sm:$0xff] %v2036
        %2053 = vst [vmem:[#allocation3 + $0x158] sm:$0xff] %v2037
        %v2054 = vld [vmem:[%s1087] sm:$0xfe]
        %v2055 = vld [vmem:[%s1087 + $0x8] sm:$0xfe]
        %v2056 = vld [vmem:[%s1087 + $0x10] sm:$0xff]
        %v2057 = vld [vmem:[%s1087 + $0x18] sm:$0xff]
        %v2058 = vld [vmem:[%s1087 + $0x20] sm:$0x1]
        %v2059 = vld [vmem:[%s1087 + $0x28] sm:$0x1]
        %v2060 = vld [vmem:[%s1087 + $0x30] sm:$0xfe]
        %v2061 = vld [vmem:[%s1087 + $0x38] sm:$0xfe]
        %v2062 = vld [vmem:[%s1087 + $0x40] sm:$0xff]
        %v2063 = vld [vmem:[%s1087 + $0x48] sm:$0xff]
        %v2064 = vld [vmem:[%s1087 + $0x50] sm:$0x1]
        %v2065 = vld [vmem:[%s1087 + $0x58] sm:$0x1]
        %v2066 = vld [vmem:[%s1087 + $0x60] sm:$0xfe]
        %v2067 = vld [vmem:[%s1087 + $0x68] sm:$0xfe]
        %v2068 = vld [vmem:[%s1087 + $0x70] sm:$0xff]
        %v2069 = vld [vmem:[%s1087 + $0x78] sm:$0xff]
        %v2070 = vld [vmem:[%s1087 + $0x80] sm:$0x1]
        %v2071 = vld [vmem:[%s1087 + $0x88] sm:$0x1]
        %v2072 = vld [vmem:[%s1087 + $0x90] sm:$0xfe]
        %v2073 = vld [vmem:[%s1087 + $0x98] sm:$0xfe]
        %v2074 = vld [vmem:[%s1087 + $0xa0] sm:$0xff]
        %v2075 = vld [vmem:[%s1087 + $0xa8] sm:$0xff]
        %v2076 = vld [vmem:[%s1087 + $0xb0] sm:$0x1]
        %v2077 = vld [vmem:[%s1087 + $0xb8] sm:$0x1]
        %v2102 = vrot.slane %v2054, 1
        %v2103 = vrot.slane %v2056, 1
        %v2104 = vsel %vm1353, %v2102, %v2103
        %v2105 = vrot.slane %v2055, 1
        %v2106 = vrot.slane %v2057, 1
        %v2107 = vsel %vm1353, %v2105, %v2106
        %v2108 = vrot.slane %v2058, 1
        %v2109 = vsel %vm1353, %v2103, %v2108
        %v2110 = vrot.slane %v2059, 1
        %v2111 = vsel %vm1353, %v2106, %v2110
        %v2112 = vrot.slane %v2060, 1
        %v2113 = vrot.slane %v2062, 1
        %v2114 = vsel %vm1353, %v2112, %v2113
        %v2115 = vrot.slane %v2061, 1
        %v2116 = vrot.slane %v2063, 1
        %v2117 = vsel %vm1353, %v2115, %v2116
        %v2118 = vrot.slane %v2064, 1
        %v2119 = vsel %vm1353, %v2113, %v2118
        %v2120 = vrot.slane %v2065, 1
        %v2121 = vsel %vm1353, %v2116, %v2120
        %v2122 = vrot.slane %v2066, 1
        %v2123 = vrot.slane %v2068, 1
        %v2124 = vsel %vm1353, %v2122, %v2123
        %v2125 = vrot.slane %v2067, 1
        %v2126 = vrot.slane %v2069, 1
        %v2127 = vsel %vm1353, %v2125, %v2126
        %v2128 = vrot.slane %v2070, 1
        %v2129 = vsel %vm1353, %v2123, %v2128
        %v2130 = vrot.slane %v2071, 1
        %v2131 = vsel %vm1353, %v2126, %v2130
        %v2132 = vrot.slane %v2072, 1
        %v2133 = vrot.slane %v2074, 1
        %v2134 = vsel %vm1353, %v2132, %v2133
        %v2135 = vrot.slane %v2073, 1
        %v2136 = vrot.slane %v2075, 1
        %v2137 = vsel %vm1353, %v2135, %v2136
        %v2138 = vrot.slane %v2076, 1
        %v2139 = vsel %vm1353, %v2133, %v2138
        %v2140 = vrot.slane %v2077, 1
        %v2141 = vsel %vm1353, %v2136, %v2140
        %2158 = vst [vmem:[#allocation3 + $0x10] sm:$0xff] %v2104
        %2159 = vst [vmem:[#allocation3 + $0x18] sm:$0xff] %v2107
        %2160 = vst [vmem:[#allocation3 + $0x40] sm:$0xff] %v2109
        %2161 = vst [vmem:[#allocation3 + $0x48] sm:$0xff] %v2111
        %2162 = vst [vmem:[#allocation3 + $0x70] sm:$0xff] %v2114
        %2163 = vst [vmem:[#allocation3 + $0x78] sm:$0xff] %v2117
        %2164 = vst [vmem:[#allocation3 + $0xa0] sm:$0xff] %v2119
        %2165 = vst [vmem:[#allocation3 + $0xa8] sm:$0xff] %v2121
        %2166 = vst [vmem:[#allocation3 + $0xd0] sm:$0xff] %v2124
        %2167 = vst [vmem:[#allocation3 + $0xd8] sm:$0xff] %v2127
        %2168 = vst [vmem:[#allocation3 + $0x100] sm:$0xff] %v2129
        %2169 = vst [vmem:[#allocation3 + $0x108] sm:$0xff] %v2131
        %2170 = vst [vmem:[#allocation3 + $0x130] sm:$0xff] %v2134
        %2171 = vst [vmem:[#allocation3 + $0x138] sm:$0xff] %v2137
        %2172 = vst [vmem:[#allocation3 + $0x160] sm:$0xff] %v2139
        %2173 = vst [vmem:[#allocation3 + $0x168] sm:$0xff] %v2141
        %v2174 = vld [vmem:[%s1087] sm:$0xfc]
        %v2175 = vld [vmem:[%s1087 + $0x8] sm:$0xfc]
        %v2176 = vld [vmem:[%s1087 + $0x10] sm:$0xff]
        %v2177 = vld [vmem:[%s1087 + $0x18] sm:$0xff]
        %v2178 = vld [vmem:[%s1087 + $0x20] sm:$0x3]
        %v2179 = vld [vmem:[%s1087 + $0x28] sm:$0x3]
        %v2180 = vld [vmem:[%s1087 + $0x30] sm:$0xfc]
        %v2181 = vld [vmem:[%s1087 + $0x38] sm:$0xfc]
        %v2182 = vld [vmem:[%s1087 + $0x40] sm:$0xff]
        %v2183 = vld [vmem:[%s1087 + $0x48] sm:$0xff]
        %v2184 = vld [vmem:[%s1087 + $0x50] sm:$0x3]
        %v2185 = vld [vmem:[%s1087 + $0x58] sm:$0x3]
        %v2186 = vld [vmem:[%s1087 + $0x60] sm:$0xfc]
        %v2187 = vld [vmem:[%s1087 + $0x68] sm:$0xfc]
        %v2188 = vld [vmem:[%s1087 + $0x70] sm:$0xff]
        %v2189 = vld [vmem:[%s1087 + $0x78] sm:$0xff]
        %v2190 = vld [vmem:[%s1087 + $0x80] sm:$0x3]
        %v2191 = vld [vmem:[%s1087 + $0x88] sm:$0x3]
        %v2192 = vld [vmem:[%s1087 + $0x90] sm:$0xfc]
        %v2193 = vld [vmem:[%s1087 + $0x98] sm:$0xfc]
        %v2194 = vld [vmem:[%s1087 + $0xa0] sm:$0xff]
        %v2195 = vld [vmem:[%s1087 + $0xa8] sm:$0xff]
        %v2196 = vld [vmem:[%s1087 + $0xb0] sm:$0x3]
        %v2197 = vld [vmem:[%s1087 + $0xb8] sm:$0x3]
        %v2222 = vrot.slane %v2174, 2
        %v2223 = vrot.slane %v2176, 2
        %v2224 = vsel %vm1474, %v2222, %v2223
        %v2225 = vrot.slane %v2175, 2
        %v2226 = vrot.slane %v2177, 2
        %v2227 = vsel %vm1474, %v2225, %v2226
        %v2228 = vrot.slane %v2178, 2
        %v2229 = vsel %vm1474, %v2223, %v2228
        %v2230 = vrot.slane %v2179, 2
        %v2231 = vsel %vm1474, %v2226, %v2230
        %v2232 = vrot.slane %v2180, 2
        %v2233 = vrot.slane %v2182, 2
        %v2234 = vsel %vm1474, %v2232, %v2233
        %v2235 = vrot.slane %v2181, 2
        %v2236 = vrot.slane %v2183, 2
        %v2237 = vsel %vm1474, %v2235, %v2236
        %v2238 = vrot.slane %v2184, 2
        %v2239 = vsel %vm1474, %v2233, %v2238
        %v2240 = vrot.slane %v2185, 2
        %v2241 = vsel %vm1474, %v2236, %v2240
        %v2242 = vrot.slane %v2186, 2
        %v2243 = vrot.slane %v2188, 2
        %v2244 = vsel %vm1474, %v2242, %v2243
        %v2245 = vrot.slane %v2187, 2
        %v2246 = vrot.slane %v2189, 2
        %v2247 = vsel %vm1474, %v2245, %v2246
        %v2248 = vrot.slane %v2190, 2
        %v2249 = vsel %vm1474, %v2243, %v2248
        %v2250 = vrot.slane %v2191, 2
        %v2251 = vsel %vm1474, %v2246, %v2250
        %v2252 = vrot.slane %v2192, 2
        %v2253 = vrot.slane %v2194, 2
        %v2254 = vsel %vm1474, %v2252, %v2253
        %v2255 = vrot.slane %v2193, 2
        %v2256 = vrot.slane %v2195, 2
        %v2257 = vsel %vm1474, %v2255, %v2256
        %v2258 = vrot.slane %v2196, 2
        %v2259 = vsel %vm1474, %v2253, %v2258
        %v2260 = vrot.slane %v2197, 2
        %v2261 = vsel %vm1474, %v2256, %v2260
        %2278 = vst [vmem:[#allocation3 + $0x20] sm:$0xff] %v2224
        %2279 = vst [vmem:[#allocation3 + $0x28] sm:$0xff] %v2227
        %2280 = vst [vmem:[#allocation3 + $0x50] sm:$0xff] %v2229
        %2281 = vst [vmem:[#allocation3 + $0x58] sm:$0xff] %v2231
        %2282 = vst [vmem:[#allocation3 + $0x80] sm:$0xff] %v2234
        %2283 = vst [vmem:[#allocation3 + $0x88] sm:$0xff] %v2237
        %2284 = vst [vmem:[#allocation3 + $0xb0] sm:$0xff] %v2239
        %2285 = vst [vmem:[#allocation3 + $0xb8] sm:$0xff] %v2241
        %2286 = vst [vmem:[#allocation3 + $0xe0] sm:$0xff] %v2244
        %2287 = vst [vmem:[#allocation3 + $0xe8] sm:$0xff] %v2247
        %2288 = vst [vmem:[#allocation3 + $0x110] sm:$0xff] %v2249
        %2289 = vst [vmem:[#allocation3 + $0x118] sm:$0xff] %v2251
        %2290 = vst [vmem:[#allocation3 + $0x140] sm:$0xff] %v2254
        %2291 = vst [vmem:[#allocation3 + $0x148] sm:$0xff] %v2257
        %2292 = vst [vmem:[#allocation3 + $0x170] sm:$0xff] %v2259
        %2293 = vst [vmem:[#allocation3 + $0x178] sm:$0xff] %v2261
        %v2294 = vld [vmem:[#allocation3] sm:$0xff]
        %v2295 = vld [vmem:[#allocation3 + $0x8] sm:$0xff]
        %v2296 = vld [vmem:[#allocation3 + $0x10] sm:$0xff]
        %v2297 = vld [vmem:[#allocation3 + $0x18] sm:$0xff]
        %v2298 = vld [vmem:[#allocation3 + $0x20] sm:$0xff]
        %v2299 = vld [vmem:[#allocation3 + $0x28] sm:$0xff]
        %v2300 = vld [vmem:[#allocation3 + $0x30] sm:$0xff]
        %v2301 = vld [vmem:[#allocation3 + $0x38] sm:$0xff]
        %v2302 = vld [vmem:[#allocation3 + $0x40] sm:$0xff]
        %v2303 = vld [vmem:[#allocation3 + $0x48] sm:$0xff]
        %v2304 = vld [vmem:[#allocation3 + $0x50] sm:$0xff]
        %v2305 = vld [vmem:[#allocation3 + $0x58] sm:$0xff]
        %v2306 = vld [vmem:[#allocation3 + $0x60] sm:$0xff]
        %v2307 = vld [vmem:[#allocation3 + $0x68] sm:$0xff]
        %v2308 = vld [vmem:[#allocation3 + $0x70] sm:$0xff]
        %v2309 = vld [vmem:[#allocation3 + $0x78] sm:$0xff]
        %v2310 = vld [vmem:[#allocation3 + $0x80] sm:$0xff]
        %v2311 = vld [vmem:[#allocation3 + $0x88] sm:$0xff]
        %v2312 = vld [vmem:[#allocation3 + $0x90] sm:$0xff]
        %v2313 = vld [vmem:[#allocation3 + $0x98] sm:$0xff]
        %v2314 = vld [vmem:[#allocation3 + $0xa0] sm:$0xff]
        %v2315 = vld [vmem:[#allocation3 + $0xa8] sm:$0xff]
        %v2316 = vld [vmem:[#allocation3 + $0xb0] sm:$0xff]
        %v2317 = vld [vmem:[#allocation3 + $0xb8] sm:$0xff]
        %v2318 = vld [vmem:[#allocation3 + $0xc0] sm:$0xff]
        %v2319 = vld [vmem:[#allocation3 + $0xc8] sm:$0xff]
        %v2320 = vld [vmem:[#allocation3 + $0xd0] sm:$0xff]
        %v2321 = vld [vmem:[#allocation3 + $0xd8] sm:$0xff]
        %v2322 = vld [vmem:[#allocation3 + $0xe0] sm:$0xff]
        %v2323 = vld [vmem:[#allocation3 + $0xe8] sm:$0xff]
        %v2324 = vld [vmem:[#allocation3 + $0xf0] sm:$0xff]
        %v2325 = vld [vmem:[#allocation3 + $0xf8] sm:$0xff]
        %v2326 = vld [vmem:[#allocation3 + $0x100] sm:$0xff]
        %v2327 = vld [vmem:[#allocation3 + $0x108] sm:$0xff]
        %v2328 = vld [vmem:[#allocation3 + $0x110] sm:$0xff]
        %v2329 = vld [vmem:[#allocation3 + $0x118] sm:$0xff]
        %v2330 = vld [vmem:[#allocation3 + $0x120] sm:$0xff]
        %v2331 = vld [vmem:[#allocation3 + $0x128] sm:$0xff]
        %v2332 = vld [vmem:[#allocation3 + $0x130] sm:$0xff]
        %v2333 = vld [vmem:[#allocation3 + $0x138] sm:$0xff]
        %v2334 = vld [vmem:[#allocation3 + $0x140] sm:$0xff]
        %v2335 = vld [vmem:[#allocation3 + $0x148] sm:$0xff]
        %v2336 = vld [vmem:[#allocation3 + $0x150] sm:$0xff]
        %v2337 = vld [vmem:[#allocation3 + $0x158] sm:$0xff]
        %v2338 = vld [vmem:[#allocation3 + $0x160] sm:$0xff]
        %v2339 = vld [vmem:[#allocation3 + $0x168] sm:$0xff]
        %v2340 = vld [vmem:[#allocation3 + $0x170] sm:$0xff]
        %v2341 = vld [vmem:[#allocation3 + $0x178] sm:$0xff]
        %s2342 = scalar_lea.vmem [#allocation14], 768
        %v2343 = vld [vmem:[%s2342] sm:$0xff]
        %v2344 = vld [vmem:[%s2342 + $0x8] sm:$0xff]
        %v2345 = vld [vmem:[%s2342 + $0x10] sm:$0xff]
        %v2346 = vld [vmem:[%s2342 + $0x18] sm:$0xff]
        %v2347 = vld [vmem:[%s2342 + $0x20] sm:$0xff]
        %v2348 = vld [vmem:[%s2342 + $0x28] sm:$0xff]
        %v2349 = vld [vmem:[%s2342 + $0x30] sm:$0xff]
        %v2350 = vld [vmem:[%s2342 + $0x38] sm:$0xff]
        %v2351 = vld [vmem:[%s2342 + $0x40] sm:$0xff]
        %v2352 = vld [vmem:[%s2342 + $0x48] sm:$0xff]
        %v2353 = vld [vmem:[%s2342 + $0x50] sm:$0xff]
        %v2354 = vld [vmem:[%s2342 + $0x58] sm:$0xff]
        %v2355 = vld [vmem:[%s2342 + $0x60] sm:$0xff]
        %v2356 = vld [vmem:[%s2342 + $0x68] sm:$0xff]
        %v2357 = vld [vmem:[%s2342 + $0x70] sm:$0xff]
        %v2358 = vld [vmem:[%s2342 + $0x78] sm:$0xff]
        %v2359 = vld [vmem:[%s2342 + $0x80] sm:$0xff]
        %v2360 = vld [vmem:[%s2342 + $0x88] sm:$0xff]
        %v2361 = vld [vmem:[%s2342 + $0x90] sm:$0xff]
        %v2362 = vld [vmem:[%s2342 + $0x98] sm:$0xff]
        %v2363 = vld [vmem:[%s2342 + $0xa0] sm:$0xff]
        %v2364 = vld [vmem:[%s2342 + $0xa8] sm:$0xff]
        %v2365 = vld [vmem:[%s2342 + $0xb0] sm:$0xff]
        %v2366 = vld [vmem:[%s2342 + $0xb8] sm:$0xff]
        %v2367 = vld [vmem:[%s2342 + $0xc0] sm:$0xff]
        %v2368 = vld [vmem:[%s2342 + $0xc8] sm:$0xff]
        %v2369 = vld [vmem:[%s2342 + $0xd0] sm:$0xff]
        %v2370 = vld [vmem:[%s2342 + $0xd8] sm:$0xff]
        %v2371 = vld [vmem:[%s2342 + $0xe0] sm:$0xff]
        %v2372 = vld [vmem:[%s2342 + $0xe8] sm:$0xff]
        %v2373 = vld [vmem:[%s2342 + $0xf0] sm:$0xff]
        %v2374 = vld [vmem:[%s2342 + $0xf8] sm:$0xff]
        %v2375 = vld [vmem:[%s2342 + $0x100] sm:$0xff]
        %v2376 = vld [vmem:[%s2342 + $0x108] sm:$0xff]
        %v2377 = vld [vmem:[%s2342 + $0x110] sm:$0xff]
        %v2378 = vld [vmem:[%s2342 + $0x118] sm:$0xff]
        %v2379 = vld [vmem:[%s2342 + $0x120] sm:$0xff]
        %v2380 = vld [vmem:[%s2342 + $0x128] sm:$0xff]
        %v2381 = vld [vmem:[%s2342 + $0x130] sm:$0xff]
        %v2382 = vld [vmem:[%s2342 + $0x138] sm:$0xff]
        %v2383 = vld [vmem:[%s2342 + $0x140] sm:$0xff]
        %v2384 = vld [vmem:[%s2342 + $0x148] sm:$0xff]
        %v2385 = vld [vmem:[%s2342 + $0x150] sm:$0xff]
        %v2386 = vld [vmem:[%s2342 + $0x158] sm:$0xff]
        %v2387 = vld [vmem:[%s2342 + $0x160] sm:$0xff]
        %v2388 = vld [vmem:[%s2342 + $0x168] sm:$0xff]
        %v2389 = vld [vmem:[%s2342 + $0x170] sm:$0xff]
        %v2390 = vld [vmem:[%s2342 + $0x178] sm:$0xff]
        %v2391 = vld [vmem:[%s2342 + $0x180] sm:$0xff]
        %v2392 = vld [vmem:[%s2342 + $0x188] sm:$0xff]
        %v2393 = vld [vmem:[%s2342 + $0x190] sm:$0xff]
        %v2394 = vld [vmem:[%s2342 + $0x198] sm:$0xff]
        %v2395 = vld [vmem:[%s2342 + $0x1a0] sm:$0xff]
        %v2396 = vld [vmem:[%s2342 + $0x1a8] sm:$0xff]
        %v2397 = vld [vmem:[%s2342 + $0x1b0] sm:$0xff]
        %v2398 = vld [vmem:[%s2342 + $0x1b8] sm:$0xff]
        %v2399 = vld [vmem:[%s2342 + $0x1c0] sm:$0xff]
        %v2400 = vld [vmem:[%s2342 + $0x1c8] sm:$0xff]
        %v2401 = vld [vmem:[%s2342 + $0x1d0] sm:$0xff]
        %v2402 = vld [vmem:[%s2342 + $0x1d8] sm:$0xff]
        %v2403 = vld [vmem:[%s2342 + $0x1e0] sm:$0xff]
        %v2404 = vld [vmem:[%s2342 + $0x1e8] sm:$0xff]
        %v2405 = vld [vmem:[%s2342 + $0x1f0] sm:$0xff]
        %v2406 = vld [vmem:[%s2342 + $0x1f8] sm:$0xff]
        %v2407 = vld [vmem:[%s2342 + $0x200] sm:$0xff]
        %v2408 = vld [vmem:[%s2342 + $0x208] sm:$0xff]
        %v2409 = vld [vmem:[%s2342 + $0x210] sm:$0xff]
        %v2410 = vld [vmem:[%s2342 + $0x218] sm:$0xff]
        %v2411 = vld [vmem:[%s2342 + $0x220] sm:$0xff]
        %v2412 = vld [vmem:[%s2342 + $0x228] sm:$0xff]
        %v2413 = vld [vmem:[%s2342 + $0x230] sm:$0xff]
        %v2414 = vld [vmem:[%s2342 + $0x238] sm:$0xff]
        %v2415 = vld [vmem:[%s2342 + $0x240] sm:$0xff]
        %v2416 = vld [vmem:[%s2342 + $0x248] sm:$0xff]
        %v2417 = vld [vmem:[%s2342 + $0x250] sm:$0xff]
        %v2418 = vld [vmem:[%s2342 + $0x258] sm:$0xff]
        %v2419 = vld [vmem:[%s2342 + $0x260] sm:$0xff]
        %v2420 = vld [vmem:[%s2342 + $0x268] sm:$0xff]
        %v2421 = vld [vmem:[%s2342 + $0x270] sm:$0xff]
        %v2422 = vld [vmem:[%s2342 + $0x278] sm:$0xff]
        %v2423 = vld [vmem:[%s2342 + $0x280] sm:$0xff]
        %v2424 = vld [vmem:[%s2342 + $0x288] sm:$0xff]
        %v2425 = vld [vmem:[%s2342 + $0x290] sm:$0xff]
        %v2426 = vld [vmem:[%s2342 + $0x298] sm:$0xff]
        %v2427 = vld [vmem:[%s2342 + $0x2a0] sm:$0xff]
        %v2428 = vld [vmem:[%s2342 + $0x2a8] sm:$0xff]
        %v2429 = vld [vmem:[%s2342 + $0x2b0] sm:$0xff]
        %v2430 = vld [vmem:[%s2342 + $0x2b8] sm:$0xff]
        %v2431 = vld [vmem:[%s2342 + $0x2c0] sm:$0xff]
        %v2432 = vld [vmem:[%s2342 + $0x2c8] sm:$0xff]
        %v2433 = vld [vmem:[%s2342 + $0x2d0] sm:$0xff]
        %v2434 = vld [vmem:[%s2342 + $0x2d8] sm:$0xff]
        %v2435 = vld [vmem:[%s2342 + $0x2e0] sm:$0xff]
        %v2436 = vld [vmem:[%s2342 + $0x2e8] sm:$0xff]
        %v2437 = vld [vmem:[%s2342 + $0x2f0] sm:$0xff]
        %v2438 = vld [vmem:[%s2342 + $0x2f8] sm:$0xff]
        %2439 = vmatprep.subr.mxu0 0.0
        %2440 = vmatpush1.msra.mxu0 %v2343
        %2441 = vmatprep.subr.mxu0 0.0
        %2442 = vmatpush1.msra.mxu0 %v2344
        %2443 = vmatprep.subr.mxu0 0.0
        %2444 = vmatpush1.msra.mxu0 %v2345
        %2445 = vmatprep.subr.mxu0 0.0
        %2446 = vmatpush1.msra.mxu0 %v2346
        %2447 = vmatprep.subr.mxu0 0.0
        %2448 = vmatpush1.msra.mxu0 %v2347
        %2449 = vmatprep.subr.mxu0 0.0
        %2450 = vmatpush1.msra.mxu0 %v2348
        %2451 = vmatprep.subr.mxu0 0.0
        %2452 = vmatpush1.msra.mxu0 %v2349
        %2453 = vmatprep.subr.mxu0 0.0
        %2454 = vmatpush1.msra.mxu0 %v2350
        %2455 = vmatprep.subr.mxu0 0.0
        %2456 = vmatpush1.msra.mxu0 %v2351
        %2457 = vmatprep.subr.mxu0 0.0
        %2458 = vmatpush1.msra.mxu0 %v2352
        %2459 = vmatprep.subr.mxu0 0.0
        %2460 = vmatpush1.msra.mxu0 %v2353
        %2461 = vmatprep.subr.mxu0 0.0
        %2462 = vmatpush1.msra.mxu0 %v2354
        %2463 = vmatprep.subr.mxu0 0.0
        %2464 = vmatpush1.msra.mxu0 %v2355
        %2465 = vmatprep.subr.mxu0 0.0
        %2466 = vmatpush1.msra.mxu0 %v2356
        %2467 = vmatprep.subr.mxu0 0.0
        %2468 = vmatpush1.msra.mxu0 %v2357
        %2469 = vmatprep.subr.mxu0 0.0
        %2470 = vmatpush1.msra.mxu0 %v2358
        %2471 = vmatprep.subr.mxu0 0.0
        %2472 = vmatpush1.msra.mxu0 %v2359
        %2473 = vmatprep.subr.mxu0 0.0
        %2474 = vmatpush1.msra.mxu0 %v2360
        %2475 = vmatprep.subr.mxu0 0.0
        %2476 = vmatpush1.msra.mxu0 %v2361
        %2477 = vmatprep.subr.mxu0 0.0
        %2478 = vmatpush1.msra.mxu0 %v2362
        %2479 = vmatprep.subr.mxu0 0.0
        %2480 = vmatpush1.msra.mxu0 %v2363
        %2481 = vmatprep.subr.mxu0 0.0
        %2482 = vmatpush1.msra.mxu0 %v2364
        %2483 = vmatprep.subr.mxu0 0.0
        %2484 = vmatpush1.msra.mxu0 %v2365
        %2485 = vmatprep.subr.mxu0 0.0
        %2486 = vmatpush1.msra.mxu0 %v2366
        %2487 = vmatprep.subr.mxu0 0.0
        %2488 = vmatpush1.msra.mxu0 %v2367
        %2489 = vmatprep.subr.mxu0 0.0
        %2490 = vmatpush1.msra.mxu0 %v2368
        %2491 = vmatprep.subr.mxu0 0.0
        %2492 = vmatpush1.msra.mxu0 %v2369
        %2493 = vmatprep.subr.mxu0 0.0
        %2494 = vmatpush1.msra.mxu0 %v2370
        %2495 = vmatprep.subr.mxu0 0.0
        %2496 = vmatpush1.msra.mxu0 %v2371
        %2497 = vmatprep.subr.mxu0 0.0
        %2498 = vmatpush1.msra.mxu0 %v2372
        %2499 = vmatprep.subr.mxu0 0.0
        %2500 = vmatpush1.msra.mxu0 %v2373
        %2501 = vmatprep.subr.mxu0 0.0
        %2502 = vmatpush1.msra.mxu0 %v2374
        %2503 = vmatprep.mubr.f32.mxu0 %v2295
        %2504 = vmatmul.mubr.f32.gmra.mrb[0].mxu0 %v2294
        %v2505 = vpop.f32.mrb[0].mxu0
        %v2506 = vadd.f32 0.0, %v2505
        %v2507 = vpop.f32.mrb[0].mxu0
        %2508 = vmatprep.mubr.f32.mxu0 %v2301
        %2509 = vmatmul.mubr.f32.gmra.mrb[0].mxu0 %v2300
        %v2510 = vpop.f32.mrb[0].mxu0
        %v2511 = vadd.f32 0.0, %v2510
        %v2512 = vpop.f32.mrb[0].mxu0
        %2513 = vmatprep.mubr.f32.mxu0 %v2307
        %2514 = vmatmul.mubr.f32.gmra.mrb[0].mxu0 %v2306
        %v2515 = vpop.f32.mrb[0].mxu0
        %v2516 = vadd.f32 0.0, %v2515
        %v2517 = vpop.f32.mrb[0].mxu0
        %2518 = vmatprep.mubr.f32.mxu0 %v2313
        %2519 = vmatmul.mubr.f32.gmra.mrb[0].mxu0 %v2312
        %v2520 = vpop.f32.mrb[0].mxu0
        %v2521 = vadd.f32 0.0, %v2520
        %v2522 = vpop.f32.mrb[0].mxu0
        %2523 = vmatprep.mubr.f32.mxu0 %v2319
        %2524 = vmatmul.mubr.f32.gmra.mrb[0].mxu0 %v2318
        %v2525 = vpop.f32.mrb[0].mxu0
        %v2526 = vadd.f32 0.0, %v2525
        %v2527 = vpop.f32.mrb[0].mxu0
        %2528 = vmatprep.mubr.f32.mxu0 %v2325
        %2529 = vmatmul.mubr.f32.gmra.mrb[0].mxu0 %v2324
        %v2530 = vpop.f32.mrb[0].mxu0
        %v2531 = vadd.f32 0.0, %v2530
        %v2532 = vpop.f32.mrb[0].mxu0
        %2533 = vmatprep.mubr.f32.mxu0 %v2331
        %2534 = vmatmul.mubr.f32.gmra.mrb[0].mxu0 %v2330
        %v2535 = vpop.f32.mrb[0].mxu0
        %v2536 = vadd.f32 0.0, %v2535
        %v2537 = vpop.f32.mrb[0].mxu0
        %2538 = vmatprep.mubr.f32.mxu0 %v2337
        %2539 = vmatmul.mubr.f32.gmra.mrb[0].mxu0 %v2336
        %v2540 = vpop.f32.mrb[0].mxu0
        %v2541 = vadd.f32 0.0, %v2540
        %v2542 = vpop.f32.mrb[0].mxu0
        %2543 = vdwg.mxu0
        %2544 = vmatprep.subr.mxu0 0.0
        %2545 = vmatpush1.msra.mxu0 %v2375
        %2546 = vmatprep.subr.mxu0 0.0
        %2547 = vmatpush1.msra.mxu0 %v2376
        %2548 = vmatprep.subr.mxu0 0.0
        %2549 = vmatpush1.msra.mxu0 %v2377
        %2550 = vmatprep.subr.mxu0 0.0
        %2551 = vmatpush1.msra.mxu0 %v2378
        %2552 = vmatprep.subr.mxu0 0.0
        %2553 = vmatpush1.msra.mxu0 %v2379
        %2554 = vmatprep.subr.mxu0 0.0
        %2555 = vmatpush1.msra.mxu0 %v2380
        %2556 = vmatprep.subr.mxu0 0.0
        %2557 = vmatpush1.msra.mxu0 %v2381
        %2558 = vmatprep.subr.mxu0 0.0
        %2559 = vmatpush1.msra.mxu0 %v2382
        %2560 = vmatprep.subr.mxu0 0.0
        %2561 = vmatpush1.msra.mxu0 %v2383
        %2562 = vmatprep.subr.mxu0 0.0
        %2563 = vmatpush1.msra.mxu0 %v2384
        %2564 = vmatprep.subr.mxu0 0.0
        %2565 = vmatpush1.msra.mxu0 %v2385
        %2566 = vmatprep.subr.mxu0 0.0
        %2567 = vmatpush1.msra.mxu0 %v2386
        %2568 = vmatprep.subr.mxu0 0.0
        %2569 = vmatpush1.msra.mxu0 %v2387
        %2570 = vmatprep.subr.mxu0 0.0
        %2571 = vmatpush1.msra.mxu0 %v2388
        %2572 = vmatprep.subr.mxu0 0.0
        %2573 = vmatpush1.msra.mxu0 %v2389
        %2574 = vmatprep.subr.mxu0 0.0
        %2575 = vmatpush1.msra.mxu0 %v2390
        %2576 = vmatprep.subr.mxu0 0.0
        %2577 = vmatpush1.msra.mxu0 %v2391
        %2578 = vmatprep.subr.mxu0 0.0
        %2579 = vmatpush1.msra.mxu0 %v2392
        %2580 = vmatprep.subr.mxu0 0.0
        %2581 = vmatpush1.msra.mxu0 %v2393
        %2582 = vmatprep.subr.mxu0 0.0
        %2583 = vmatpush1.msra.mxu0 %v2394
        %2584 = vmatprep.subr.mxu0 0.0
        %2585 = vmatpush1.msra.mxu0 %v2395
        %2586 = vmatprep.subr.mxu0 0.0
        %2587 = vmatpush1.msra.mxu0 %v2396
        %2588 = vmatprep.subr.mxu0 0.0
        %2589 = vmatpush1.msra.mxu0 %v2397
        %2590 = vmatprep.subr.mxu0 0.0
        %2591 = vmatpush1.msra.mxu0 %v2398
        %2592 = vmatprep.subr.mxu0 0.0
        %2593 = vmatpush1.msra.mxu0 %v2399
        %2594 = vmatprep.subr.mxu0 0.0
        %2595 = vmatpush1.msra.mxu0 %v2400
        %2596 = vmatprep.subr.mxu0 0.0
        %2597 = vmatpush1.msra.mxu0 %v2401
        %2598 = vmatprep.subr.mxu0 0.0
        %2599 = vmatpush1.msra.mxu0 %v2402
        %2600 = vmatprep.subr.mxu0 0.0
        %2601 = vmatpush1.msra.mxu0 %v2403
        %2602 = vmatprep.subr.mxu0 0.0
        %2603 = vmatpush1.msra.mxu0 %v2404
        %2604 = vmatprep.subr.mxu0 0.0
        %2605 = vmatpush1.msra.mxu0 %v2405
        %2606 = vmatprep.subr.mxu0 0.0
        %2607 = vmatpush1.msra.mxu0 %v2406
        %2608 = vmatprep.mubr.f32.mxu0 %v2297
        %2609 = vmatmul.mubr.f32.gmra.mrb[0].mxu0 %v2296
        %v2610 = vpop.f32.mrb[0].mxu0
        %v2611 = vadd.f32 %v2506, %v2610
        %v2612 = vpop.f32.mrb[0].mxu0
        %2613 = vmatprep.mubr.f32.mxu0 %v2303
        %2614 = vmatmul.mubr.f32.gmra.mrb[0].mxu0 %v2302
        %v2615 = vpop.f32.mrb[0].mxu0
        %v2616 = vadd.f32 %v2511, %v2615
        %v2617 = vpop.f32.mrb[0].mxu0
        %2618 = vmatprep.mubr.f32.mxu0 %v2309
        %2619 = vmatmul.mubr.f32.gmra.mrb[0].mxu0 %v2308
        %v2620 = vpop.f32.mrb[0].mxu0
        %v2621 = vadd.f32 %v2516, %v2620
        %v2622 = vpop.f32.mrb[0].mxu0
        %2623 = vmatprep.mubr.f32.mxu0 %v2315
        %2624 = vmatmul.mubr.f32.gmra.mrb[0].mxu0 %v2314
        %v2625 = vpop.f32.mrb[0].mxu0
        %v2626 = vadd.f32 %v2521, %v2625
        %v2627 = vpop.f32.mrb[0].mxu0
        %2628 = vmatprep.mubr.f32.mxu0 %v2321
        %2629 = vmatmul.mubr.f32.gmra.mrb[0].mxu0 %v2320
        %v2630 = vpop.f32.mrb[0].mxu0
        %v2631 = vadd.f32 %v2526, %v2630
        %v2632 = vpop.f32.mrb[0].mxu0
        %2633 = vmatprep.mubr.f32.mxu0 %v2327
        %2634 = vmatmul.mubr.f32.gmra.mrb[0].mxu0 %v2326
        %v2635 = vpop.f32.mrb[0].mxu0
        %v2636 = vadd.f32 %v2531, %v2635
        %v2637 = vpop.f32.mrb[0].mxu0
        %2638 = vmatprep.mubr.f32.mxu0 %v2333
        %2639 = vmatmul.mubr.f32.gmra.mrb[0].mxu0 %v2332
        %v2640 = vpop.f32.mrb[0].mxu0
        %v2641 = vadd.f32 %v2536, %v2640
        %v2642 = vpop.f32.mrb[0].mxu0
        %2643 = vmatprep.mubr.f32.mxu0 %v2339
        %2644 = vmatmul.mubr.f32.gmra.mrb[0].mxu0 %v2338
        %v2645 = vpop.f32.mrb[0].mxu0
        %v2646 = vadd.f32 %v2541, %v2645
        %v2647 = vpop.f32.mrb[0].mxu0
        %2648 = vdwg.mxu0
        %2649 = vmatprep.subr.mxu0 0.0
        %2650 = vmatpush1.msra.mxu0 %v2407
        %2651 = vmatprep.subr.mxu0 0.0
        %2652 = vmatpush1.msra.mxu0 %v2408
        %2653 = vmatprep.subr.mxu0 0.0
        %2654 = vmatpush1.msra.mxu0 %v2409
        %2655 = vmatprep.subr.mxu0 0.0
        %2656 = vmatpush1.msra.mxu0 %v2410
        %2657 = vmatprep.subr.mxu0 0.0
        %2658 = vmatpush1.msra.mxu0 %v2411
        %2659 = vmatprep.subr.mxu0 0.0
        %2660 = vmatpush1.msra.mxu0 %v2412
        %2661 = vmatprep.subr.mxu0 0.0
        %2662 = vmatpush1.msra.mxu0 %v2413
        %2663 = vmatprep.subr.mxu0 0.0
        %2664 = vmatpush1.msra.mxu0 %v2414
        %2665 = vmatprep.subr.mxu0 0.0
        %2666 = vmatpush1.msra.mxu0 %v2415
        %2667 = vmatprep.subr.mxu0 0.0
        %2668 = vmatpush1.msra.mxu0 %v2416
        %2669 = vmatprep.subr.mxu0 0.0
        %2670 = vmatpush1.msra.mxu0 %v2417
        %2671 = vmatprep.subr.mxu0 0.0
        %2672 = vmatpush1.msra.mxu0 %v2418
        %2673 = vmatprep.subr.mxu0 0.0
        %2674 = vmatpush1.msra.mxu0 %v2419
        %2675 = vmatprep.subr.mxu0 0.0
        %2676 = vmatpush1.msra.mxu0 %v2420
        %2677 = vmatprep.subr.mxu0 0.0
        %2678 = vmatpush1.msra.mxu0 %v2421
        %2679 = vmatprep.subr.mxu0 0.0
        %2680 = vmatpush1.msra.mxu0 %v2422
        %2681 = vmatprep.subr.mxu0 0.0
        %2682 = vmatpush1.msra.mxu0 %v2423
        %2683 = vmatprep.subr.mxu0 0.0
        %2684 = vmatpush1.msra.mxu0 %v2424
        %2685 = vmatprep.subr.mxu0 0.0
        %2686 = vmatpush1.msra.mxu0 %v2425
        %2687 = vmatprep.subr.mxu0 0.0
        %2688 = vmatpush1.msra.mxu0 %v2426
        %2689 = vmatprep.subr.mxu0 0.0
        %2690 = vmatpush1.msra.mxu0 %v2427
        %2691 = vmatprep.subr.mxu0 0.0
        %2692 = vmatpush1.msra.mxu0 %v2428
        %2693 = vmatprep.subr.mxu0 0.0
        %2694 = vmatpush1.msra.mxu0 %v2429
        %2695 = vmatprep.subr.mxu0 0.0
        %2696 = vmatpush1.msra.mxu0 %v2430
        %2697 = vmatprep.subr.mxu0 0.0
        %2698 = vmatpush1.msra.mxu0 %v2431
        %2699 = vmatprep.subr.mxu0 0.0
        %2700 = vmatpush1.msra.mxu0 %v2432
        %2701 = vmatprep.subr.mxu0 0.0
        %2702 = vmatpush1.msra.mxu0 %v2433
        %2703 = vmatprep.subr.mxu0 0.0
        %2704 = vmatpush1.msra.mxu0 %v2434
        %2705 = vmatprep.subr.mxu0 0.0
        %2706 = vmatpush1.msra.mxu0 %v2435
        %2707 = vmatprep.subr.mxu0 0.0
        %2708 = vmatpush1.msra.mxu0 %v2436
        %2709 = vmatprep.subr.mxu0 0.0
        %2710 = vmatpush1.msra.mxu0 %v2437
        %2711 = vmatprep.subr.mxu0 0.0
        %2712 = vmatpush1.msra.mxu0 %v2438
        %2713 = vmatprep.mubr.f32.mxu0 %v2299
        %2714 = vmatmul.mubr.f32.gmra.mrb[0].mxu0 %v2298
        %v2715 = vpop.f32.mrb[0].mxu0
        %v2716 = vadd.f32 %v2611, %v2715
        %v2717 = vpop.f32.mrb[0].mxu0
        %2718 = vmatprep.mubr.f32.mxu0 %v2305
        %2719 = vmatmul.mubr.f32.gmra.mrb[0].mxu0 %v2304
        %v2720 = vpop.f32.mrb[0].mxu0
        %v2721 = vadd.f32 %v2616, %v2720
        %v2722 = vpop.f32.mrb[0].mxu0
        %2723 = vmatprep.mubr.f32.mxu0 %v2311
        %2724 = vmatmul.mubr.f32.gmra.mrb[0].mxu0 %v2310
        %v2725 = vpop.f32.mrb[0].mxu0
        %v2726 = vadd.f32 %v2621, %v2725
        %v2727 = vpop.f32.mrb[0].mxu0
        %2728 = vmatprep.mubr.f32.mxu0 %v2317
        %2729 = vmatmul.mubr.f32.gmra.mrb[0].mxu0 %v2316
        %v2730 = vpop.f32.mrb[0].mxu0
        %v2731 = vadd.f32 %v2626, %v2730
        %v2732 = vpop.f32.mrb[0].mxu0
        %2733 = vmatprep.mubr.f32.mxu0 %v2323
        %2734 = vmatmul.mubr.f32.gmra.mrb[0].mxu0 %v2322
        %v2735 = vpop.f32.mrb[0].mxu0
        %v2736 = vadd.f32 %v2631, %v2735
        %v2737 = vpop.f32.mrb[0].mxu0
        %2738 = vmatprep.mubr.f32.mxu0 %v2329
        %2739 = vmatmul.mubr.f32.gmra.mrb[0].mxu0 %v2328
        %v2740 = vpop.f32.mrb[0].mxu0
        %v2741 = vadd.f32 %v2636, %v2740
        %v2742 = vpop.f32.mrb[0].mxu0
        %2743 = vmatprep.mubr.f32.mxu0 %v2335
        %2744 = vmatmul.mubr.f32.gmra.mrb[0].mxu0 %v2334
        %v2745 = vpop.f32.mrb[0].mxu0
        %v2746 = vadd.f32 %v2641, %v2745
        %v2747 = vpop.f32.mrb[0].mxu0
        %2748 = vmatprep.mubr.f32.mxu0 %v2341
        %2749 = vmatmul.mubr.f32.gmra.mrb[0].mxu0 %v2340
        %v2750 = vpop.f32.mrb[0].mxu0
        %v2751 = vadd.f32 %v2646, %v2750
        %v2752 = vpop.f32.mrb[0].mxu0
        %2753 = vdwg.mxu0
        %v2754 = vadd.f32 %v2014, %v2716
        %v2755 = vadd.f32 %v2015, %v2721
        %v2756 = vadd.f32 %v2016, %v2726
        %v2757 = vadd.f32 %v2017, %v2731
        %v2758 = vadd.f32 %v2018, %v2736
        %v2759 = vadd.f32 %v2019, %v2741
        %v2760 = vadd.f32 %v2020, %v2746
        %v2761 = vadd.f32 %v2021, %v2751
        %2762 = vst [vmem:[#allocation4] sm:$0xff] %v2754
        %2763 = vst [vmem:[#allocation4 + $0x8] sm:$0xff] %v2755
        %2764 = vst [vmem:[#allocation4 + $0x10] sm:$0xff] %v2756
        %2765 = vst [vmem:[#allocation4 + $0x18] sm:$0xff] %v2757
        %2766 = vst [vmem:[#allocation4 + $0x20] sm:$0xff] %v2758
        %2767 = vst [vmem:[#allocation4 + $0x28] sm:$0xff] %v2759
        %2768 = vst [vmem:[#allocation4 + $0x30] sm:$0xff] %v2760
        %2769 = vst [vmem:[#allocation4 + $0x38] sm:$0xff] %v2761
        %v2770 = vld [vmem:[#allocation4] sm:$0xff]
        %v2771 = vld [vmem:[#allocation4 + $0x8] sm:$0xff]
        %v2772 = vld [vmem:[#allocation4 + $0x10] sm:$0xff]
        %v2773 = vld [vmem:[#allocation4 + $0x18] sm:$0xff]
        %v2774 = vld [vmem:[#allocation4 + $0x20] sm:$0xff]
        %v2775 = vld [vmem:[#allocation4 + $0x28] sm:$0xff]
        %v2776 = vld [vmem:[#allocation4 + $0x30] sm:$0xff]
        %v2777 = vld [vmem:[#allocation4 + $0x38] sm:$0xff]
        %s2778 = scalar_lea.vmem [#allocation2], 96
        %v2779 = vld [vmem:[%s2778] sm:$0xff]
        %v2780 = vld [vmem:[%s2778 + $0x8] sm:$0xff]
        %v2781 = vld [vmem:[%s2778 + $0x10] sm:$0xff]
        %v2782 = vld [vmem:[%s2778 + $0x18] sm:$0xff]
        %v2783 = vld [vmem:[%s2778 + $0x30] sm:$0xff]
        %v2784 = vld [vmem:[%s2778 + $0x38] sm:$0xff]
        %v2785 = vld [vmem:[%s2778 + $0x40] sm:$0xff]
        %v2786 = vld [vmem:[%s2778 + $0x48] sm:$0xff]
        %v2787 = vld [vmem:[%s2778 + $0x60] sm:$0xff]
        %v2788 = vld [vmem:[%s2778 + $0x68] sm:$0xff]
        %v2789 = vld [vmem:[%s2778 + $0x70] sm:$0xff]
        %v2790 = vld [vmem:[%s2778 + $0x78] sm:$0xff]
        %v2791 = vld [vmem:[%s2778 + $0x90] sm:$0xff]
        %v2792 = vld [vmem:[%s2778 + $0x98] sm:$0xff]
        %v2793 = vld [vmem:[%s2778 + $0xa0] sm:$0xff]
        %v2794 = vld [vmem:[%s2778 + $0xa8] sm:$0xff]
        %2795 = vst [vmem:[#allocation3] sm:$0xff] %v2779
        %2796 = vst [vmem:[#allocation3 + $0x8] sm:$0xff] %v2780
        %2797 = vst [vmem:[#allocation3 + $0x30] sm:$0xff] %v2781
        %2798 = vst [vmem:[#allocation3 + $0x38] sm:$0xff] %v2782
        %2799 = vst [vmem:[#allocation3 + $0x60] sm:$0xff] %v2783
        %2800 = vst [vmem:[#allocation3 + $0x68] sm:$0xff] %v2784
        %2801 = vst [vmem:[#allocation3 + $0x90] sm:$0xff] %v2785
        %2802 = vst [vmem:[#allocation3 + $0x98] sm:$0xff] %v2786
        %2803 = vst [vmem:[#allocation3 + $0xc0] sm:$0xff] %v2787
        %2804 = vst [vmem:[#allocation3 + $0xc8] sm:$0xff] %v2788
        %2805 = vst [vmem:[#allocation3 + $0xf0] sm:$0xff] %v2789
        %2806 = vst [vmem:[#allocation3 + $0xf8] sm:$0xff] %v2790
        %2807 = vst [vmem:[#allocation3 + $0x120] sm:$0xff] %v2791
        %2808 = vst [vmem:[#allocation3 + $0x128] sm:$0xff] %v2792
        %2809 = vst [vmem:[#allocation3 + $0x150] sm:$0xff] %v2793
        %2810 = vst [vmem:[#allocation3 + $0x158] sm:$0xff] %v2794
        %v2811 = vld [vmem:[%s2778] sm:$0xfe]
        %v2812 = vld [vmem:[%s2778 + $0x8] sm:$0xfe]
        %v2813 = vld [vmem:[%s2778 + $0x10] sm:$0xff]
        %v2814 = vld [vmem:[%s2778 + $0x18] sm:$0xff]
        %v2815 = vld [vmem:[%s2778 + $0x20] sm:$0x1]
        %v2816 = vld [vmem:[%s2778 + $0x28] sm:$0x1]
        %v2817 = vld [vmem:[%s2778 + $0x30] sm:$0xfe]
        %v2818 = vld [vmem:[%s2778 + $0x38] sm:$0xfe]
        %v2819 = vld [vmem:[%s2778 + $0x40] sm:$0xff]
        %v2820 = vld [vmem:[%s2778 + $0x48] sm:$0xff]
        %v2821 = vld [vmem:[%s2778 + $0x50] sm:$0x1]
        %v2822 = vld [vmem:[%s2778 + $0x58] sm:$0x1]
        %v2823 = vld [vmem:[%s2778 + $0x60] sm:$0xfe]
        %v2824 = vld [vmem:[%s2778 + $0x68] sm:$0xfe]
        %v2825 = vld [vmem:[%s2778 + $0x70] sm:$0xff]
        %v2826 = vld [vmem:[%s2778 + $0x78] sm:$0xff]
        %v2827 = vld [vmem:[%s2778 + $0x80] sm:$0x1]
        %v2828 = vld [vmem:[%s2778 + $0x88] sm:$0x1]
        %v2829 = vld [vmem:[%s2778 + $0x90] sm:$0xfe]
        %v2830 = vld [vmem:[%s2778 + $0x98] sm:$0xfe]
        %v2831 = vld [vmem:[%s2778 + $0xa0] sm:$0xff]
        %v2832 = vld [vmem:[%s2778 + $0xa8] sm:$0xff]
        %v2833 = vld [vmem:[%s2778 + $0xb0] sm:$0x1]
        %v2834 = vld [vmem:[%s2778 + $0xb8] sm:$0x1]
        %v2859 = vrot.slane %v2811, 1
        %v2860 = vrot.slane %v2813, 1
        %v2861 = vsel %vm1353, %v2859, %v2860
        %v2862 = vrot.slane %v2812, 1
        %v2863 = vrot.slane %v2814, 1
        %v2864 = vsel %vm1353, %v2862, %v2863
        %v2865 = vrot.slane %v2815, 1
        %v2866 = vsel %vm1353, %v2860, %v2865
        %v2867 = vrot.slane %v2816, 1
        %v2868 = vsel %vm1353, %v2863, %v2867
        %v2869 = vrot.slane %v2817, 1
        %v2870 = vrot.slane %v2819, 1
        %v2871 = vsel %vm1353, %v2869, %v2870
        %v2872 = vrot.slane %v2818, 1
        %v2873 = vrot.slane %v2820, 1
        %v2874 = vsel %vm1353, %v2872, %v2873
        %v2875 = vrot.slane %v2821, 1
        %v2876 = vsel %vm1353, %v2870, %v2875
        %v2877 = vrot.slane %v2822, 1
        %v2878 = vsel %vm1353, %v2873, %v2877
        %v2879 = vrot.slane %v2823, 1
        %v2880 = vrot.slane %v2825, 1
        %v2881 = vsel %vm1353, %v2879, %v2880
        %v2882 = vrot.slane %v2824, 1
        %v2883 = vrot.slane %v2826, 1
        %v2884 = vsel %vm1353, %v2882, %v2883
        %v2885 = vrot.slane %v2827, 1
        %v2886 = vsel %vm1353, %v2880, %v2885
        %v2887 = vrot.slane %v2828, 1
        %v2888 = vsel %vm1353, %v2883, %v2887
        %v2889 = vrot.slane %v2829, 1
        %v2890 = vrot.slane %v2831, 1
        %v2891 = vsel %vm1353, %v2889, %v2890
        %v2892 = vrot.slane %v2830, 1
        %v2893 = vrot.slane %v2832, 1
        %v2894 = vsel %vm1353, %v2892, %v2893
        %v2895 = vrot.slane %v2833, 1
        %v2896 = vsel %vm1353, %v2890, %v2895
        %v2897 = vrot.slane %v2834, 1
        %v2898 = vsel %vm1353, %v2893, %v2897
        %2915 = vst [vmem:[#allocation3 + $0x10] sm:$0xff] %v2861
        %2916 = vst [vmem:[#allocation3 + $0x18] sm:$0xff] %v2864
        %2917 = vst [vmem:[#allocation3 + $0x40] sm:$0xff] %v2866
        %2918 = vst [vmem:[#allocation3 + $0x48] sm:$0xff] %v2868
        %2919 = vst [vmem:[#allocation3 + $0x70] sm:$0xff] %v2871
        %2920 = vst [vmem:[#allocation3 + $0x78] sm:$0xff] %v2874
        %2921 = vst [vmem:[#allocation3 + $0xa0] sm:$0xff] %v2876
        %2922 = vst [vmem:[#allocation3 + $0xa8] sm:$0xff] %v2878
        %2923 = vst [vmem:[#allocation3 + $0xd0] sm:$0xff] %v2881
        %2924 = vst [vmem:[#allocation3 + $0xd8] sm:$0xff] %v2884
        %2925 = vst [vmem:[#allocation3 + $0x100] sm:$0xff] %v2886
        %2926 = vst [vmem:[#allocation3 + $0x108] sm:$0xff] %v2888
        %2927 = vst [vmem:[#allocation3 + $0x130] sm:$0xff] %v2891
        %2928 = vst [vmem:[#allocation3 + $0x138] sm:$0xff] %v2894
        %2929 = vst [vmem:[#allocation3 + $0x160] sm:$0xff] %v2896
        %2930 = vst [vmem:[#allocation3 + $0x168] sm:$0xff] %v2898
        %v2931 = vld [vmem:[%s2778] sm:$0xfc]
        %v2932 = vld [vmem:[%s2778 + $0x8] sm:$0xfc]
        %v2933 = vld [vmem:[%s2778 + $0x10] sm:$0xff]
        %v2934 = vld [vmem:[%s2778 + $0x18] sm:$0xff]
        %v2935 = vld [vmem:[%s2778 + $0x20] sm:$0x3]
        %v2936 = vld [vmem:[%s2778 + $0x28] sm:$0x3]
        %v2937 = vld [vmem:[%s2778 + $0x30] sm:$0xfc]
        %v2938 = vld [vmem:[%s2778 + $0x38] sm:$0xfc]
        %v2939 = vld [vmem:[%s2778 + $0x40] sm:$0xff]
        %v2940 = vld [vmem:[%s2778 + $0x48] sm:$0xff]
        %v2941 = vld [vmem:[%s2778 + $0x50] sm:$0x3]
        %v2942 = vld [vmem:[%s2778 + $0x58] sm:$0x3]
        %v2943 = vld [vmem:[%s2778 + $0x60] sm:$0xfc]
        %v2944 = vld [vmem:[%s2778 + $0x68] sm:$0xfc]
        %v2945 = vld [vmem:[%s2778 + $0x70] sm:$0xff]
        %v2946 = vld [vmem:[%s2778 + $0x78] sm:$0xff]
        %v2947 = vld [vmem:[%s2778 + $0x80] sm:$0x3]
        %v2948 = vld [vmem:[%s2778 + $0x88] sm:$0x3]
        %v2949 = vld [vmem:[%s2778 + $0x90] sm:$0xfc]
        %v2950 = vld [vmem:[%s2778 + $0x98] sm:$0xfc]
        %v2951 = vld [vmem:[%s2778 + $0xa0] sm:$0xff]
        %v2952 = vld [vmem:[%s2778 + $0xa8] sm:$0xff]
        %v2953 = vld [vmem:[%s2778 + $0xb0] sm:$0x3]
        %v2954 = vld [vmem:[%s2778 + $0xb8] sm:$0x3]
        %v2979 = vrot.slane %v2931, 2
        %v2980 = vrot.slane %v2933, 2
        %v2981 = vsel %vm1474, %v2979, %v2980
        %v2982 = vrot.slane %v2932, 2
        %v2983 = vrot.slane %v2934, 2
        %v2984 = vsel %vm1474, %v2982, %v2983
        %v2985 = vrot.slane %v2935, 2
        %v2986 = vsel %vm1474, %v2980, %v2985
        %v2987 = vrot.slane %v2936, 2
        %v2988 = vsel %vm1474, %v2983, %v2987
        %v2989 = vrot.slane %v2937, 2
        %v2990 = vrot.slane %v2939, 2
        %v2991 = vsel %vm1474, %v2989, %v2990
        %v2992 = vrot.slane %v2938, 2
        %v2993 = vrot.slane %v2940, 2
        %v2994 = vsel %vm1474, %v2992, %v2993
        %v2995 = vrot.slane %v2941, 2
        %v2996 = vsel %vm1474, %v2990, %v2995
        %v2997 = vrot.slane %v2942, 2
        %v2998 = vsel %vm1474, %v2993, %v2997
        %v2999 = vrot.slane %v2943, 2
        %v3000 = vrot.slane %v2945, 2
        %v3001 = vsel %vm1474, %v2999, %v3000
        %v3002 = vrot.slane %v2944, 2
        %v3003 = vrot.slane %v2946, 2
        %v3004 = vsel %vm1474, %v3002, %v3003
        %v3005 = vrot.slane %v2947, 2
        %v3006 = vsel %vm1474, %v3000, %v3005
        %v3007 = vrot.slane %v2948, 2
        %v3008 = vsel %vm1474, %v3003, %v3007
        %v3009 = vrot.slane %v2949, 2
        %v3010 = vrot.slane %v2951, 2
        %v3011 = vsel %vm1474, %v3009, %v3010
        %v3012 = vrot.slane %v2950, 2
        %v3013 = vrot.slane %v2952, 2
        %v3014 = vsel %vm1474, %v3012, %v3013
        %v3015 = vrot.slane %v2953, 2
        %v3016 = vsel %vm1474, %v3010, %v3015
        %v3017 = vrot.slane %v2954, 2
        %v3018 = vsel %vm1474, %v3013, %v3017
        %3035 = vst [vmem:[#allocation3 + $0x20] sm:$0xff] %v2981
        %3036 = vst [vmem:[#allocation3 + $0x28] sm:$0xff] %v2984
        %3037 = vst [vmem:[#allocation3 + $0x50] sm:$0xff] %v2986
        %3038 = vst [vmem:[#allocation3 + $0x58] sm:$0xff] %v2988
        %3039 = vst [vmem:[#allocation3 + $0x80] sm:$0xff] %v2991
        %3040 = vst [vmem:[#allocation3 + $0x88] sm:$0xff] %v2994
        %3041 = vst [vmem:[#allocation3 + $0xb0] sm:$0xff] %v2996
        %3042 = vst [vmem:[#allocation3 + $0xb8] sm:$0xff] %v2998
        %3043 = vst [vmem:[#allocation3 + $0xe0] sm:$0xff] %v3001
        %3044 = vst [vmem:[#allocation3 + $0xe8] sm:$0xff] %v3004
        %3045 = vst [vmem:[#allocation3 + $0x110] sm:$0xff] %v3006
        %3046 = vst [vmem:[#allocation3 + $0x118] sm:$0xff] %v3008
        %3047 = vst [vmem:[#allocation3 + $0x140] sm:$0xff] %v3011
        %3048 = vst [vmem:[#allocation3 + $0x148] sm:$0xff] %v3014
        %3049 = vst [vmem:[#allocation3 + $0x170] sm:$0xff] %v3016
        %3050 = vst [vmem:[#allocation3 + $0x178] sm:$0xff] %v3018
        %v3051 = vld [vmem:[#allocation3] sm:$0xff]
        %v3052 = vld [vmem:[#allocation3 + $0x8] sm:$0xff]
        %v3053 = vld [vmem:[#allocation3 + $0x10] sm:$0xff]
        %v3054 = vld [vmem:[#allocation3 + $0x18] sm:$0xff]
        %v3055 = vld [vmem:[#allocation3 + $0x20] sm:$0xff]
        %v3056 = vld [vmem:[#allocation3 + $0x28] sm:$0xff]
        %v3057 = vld [vmem:[#allocation3 + $0x30] sm:$0xff]
        %v3058 = vld [vmem:[#allocation3 + $0x38] sm:$0xff]
        %v3059 = vld [vmem:[#allocation3 + $0x40] sm:$0xff]
        %v3060 = vld [vmem:[#allocation3 + $0x48] sm:$0xff]
        %v3061 = vld [vmem:[#allocation3 + $0x50] sm:$0xff]
        %v3062 = vld [vmem:[#allocation3 + $0x58] sm:$0xff]
        %v3063 = vld [vmem:[#allocation3 + $0x60] sm:$0xff]
        %v3064 = vld [vmem:[#allocation3 + $0x68] sm:$0xff]
        %v3065 = vld [vmem:[#allocation3 + $0x70] sm:$0xff]
        %v3066 = vld [vmem:[#allocation3 + $0x78] sm:$0xff]
        %v3067 = vld [vmem:[#allocation3 + $0x80] sm:$0xff]
        %v3068 = vld [vmem:[#allocation3 + $0x88] sm:$0xff]
        %v3069 = vld [vmem:[#allocation3 + $0x90] sm:$0xff]
        %v3070 = vld [vmem:[#allocation3 + $0x98] sm:$0xff]
        %v3071 = vld [vmem:[#allocation3 + $0xa0] sm:$0xff]
        %v3072 = vld [vmem:[#allocation3 + $0xa8] sm:$0xff]
        %v3073 = vld [vmem:[#allocation3 + $0xb0] sm:$0xff]
        %v3074 = vld [vmem:[#allocation3 + $0xb8] sm:$0xff]
        %v3075 = vld [vmem:[#allocation3 + $0xc0] sm:$0xff]
        %v3076 = vld [vmem:[#allocation3 + $0xc8] sm:$0xff]
        %v3077 = vld [vmem:[#allocation3 + $0xd0] sm:$0xff]
        %v3078 = vld [vmem:[#allocation3 + $0xd8] sm:$0xff]
        %v3079 = vld [vmem:[#allocation3 + $0xe0] sm:$0xff]
        %v3080 = vld [vmem:[#allocation3 + $0xe8] sm:$0xff]
        %v3081 = vld [vmem:[#allocation3 + $0xf0] sm:$0xff]
        %v3082 = vld [vmem:[#allocation3 + $0xf8] sm:$0xff]
        %v3083 = vld [vmem:[#allocation3 + $0x100] sm:$0xff]
        %v3084 = vld [vmem:[#allocation3 + $0x108] sm:$0xff]
        %v3085 = vld [vmem:[#allocation3 + $0x110] sm:$0xff]
        %v3086 = vld [vmem:[#allocation3 + $0x118] sm:$0xff]
        %v3087 = vld [vmem:[#allocation3 + $0x120] sm:$0xff]
        %v3088 = vld [vmem:[#allocation3 + $0x128] sm:$0xff]
        %v3089 = vld [vmem:[#allocation3 + $0x130] sm:$0xff]
        %v3090 = vld [vmem:[#allocation3 + $0x138] sm:$0xff]
        %v3091 = vld [vmem:[#allocation3 + $0x140] sm:$0xff]
        %v3092 = vld [vmem:[#allocation3 + $0x148] sm:$0xff]
        %v3093 = vld [vmem:[#allocation3 + $0x150] sm:$0xff]
        %v3094 = vld [vmem:[#allocation3 + $0x158] sm:$0xff]
        %v3095 = vld [vmem:[#allocation3 + $0x160] sm:$0xff]
        %v3096 = vld [vmem:[#allocation3 + $0x168] sm:$0xff]
        %v3097 = vld [vmem:[#allocation3 + $0x170] sm:$0xff]
        %v3098 = vld [vmem:[#allocation3 + $0x178] sm:$0xff]
        %s3099 = scalar_lea.vmem [#allocation14], 1536
        %v3100 = vld [vmem:[%s3099] sm:$0xff]
        %v3101 = vld [vmem:[%s3099 + $0x8] sm:$0xff]
        %v3102 = vld [vmem:[%s3099 + $0x10] sm:$0xff]
        %v3103 = vld [vmem:[%s3099 + $0x18] sm:$0xff]
        %v3104 = vld [vmem:[%s3099 + $0x20] sm:$0xff]
        %v3105 = vld [vmem:[%s3099 + $0x28] sm:$0xff]
        %v3106 = vld [vmem:[%s3099 + $0x30] sm:$0xff]
        %v3107 = vld [vmem:[%s3099 + $0x38] sm:$0xff]
        %v3108 = vld [vmem:[%s3099 + $0x40] sm:$0xff]
        %v3109 = vld [vmem:[%s3099 + $0x48] sm:$0xff]
        %v3110 = vld [vmem:[%s3099 + $0x50] sm:$0xff]
        %v3111 = vld [vmem:[%s3099 + $0x58] sm:$0xff]
        %v3112 = vld [vmem:[%s3099 + $0x60] sm:$0xff]
        %v3113 = vld [vmem:[%s3099 + $0x68] sm:$0xff]
        %v3114 = vld [vmem:[%s3099 + $0x70] sm:$0xff]
        %v3115 = vld [vmem:[%s3099 + $0x78] sm:$0xff]
        %v3116 = vld [vmem:[%s3099 + $0x80] sm:$0xff]
        %v3117 = vld [vmem:[%s3099 + $0x88] sm:$0xff]
        %v3118 = vld [vmem:[%s3099 + $0x90] sm:$0xff]
        %v3119 = vld [vmem:[%s3099 + $0x98] sm:$0xff]
        %v3120 = vld [vmem:[%s3099 + $0xa0] sm:$0xff]
        %v3121 = vld [vmem:[%s3099 + $0xa8] sm:$0xff]
        %v3122 = vld [vmem:[%s3099 + $0xb0] sm:$0xff]
        %v3123 = vld [vmem:[%s3099 + $0xb8] sm:$0xff]
        %v3124 = vld [vmem:[%s3099 + $0xc0] sm:$0xff]
        %v3125 = vld [vmem:[%s3099 + $0xc8] sm:$0xff]
        %v3126 = vld [vmem:[%s3099 + $0xd0] sm:$0xff]
        %v3127 = vld [vmem:[%s3099 + $0xd8] sm:$0xff]
        %v3128 = vld [vmem:[%s3099 + $0xe0] sm:$0xff]
        %v3129 = vld [vmem:[%s3099 + $0xe8] sm:$0xff]
        %v3130 = vld [vmem:[%s3099 + $0xf0] sm:$0xff]
        %v3131 = vld [vmem:[%s3099 + $0xf8] sm:$0xff]
        %v3132 = vld [vmem:[%s3099 + $0x100] sm:$0xff]
        %v3133 = vld [vmem:[%s3099 + $0x108] sm:$0xff]
        %v3134 = vld [vmem:[%s3099 + $0x110] sm:$0xff]
        %v3135 = vld [vmem:[%s3099 + $0x118] sm:$0xff]
        %v3136 = vld [vmem:[%s3099 + $0x120] sm:$0xff]
        %v3137 = vld [vmem:[%s3099 + $0x128] sm:$0xff]
        %v3138 = vld [vmem:[%s3099 + $0x130] sm:$0xff]
        %v3139 = vld [vmem:[%s3099 + $0x138] sm:$0xff]
        %v3140 = vld [vmem:[%s3099 + $0x140] sm:$0xff]
        %v3141 = vld [vmem:[%s3099 + $0x148] sm:$0xff]
        %v3142 = vld [vmem:[%s3099 + $0x150] sm:$0xff]
        %v3143 = vld [vmem:[%s3099 + $0x158] sm:$0xff]
        %v3144 = vld [vmem:[%s3099 + $0x160] sm:$0xff]
        %v3145 = vld [vmem:[%s3099 + $0x168] sm:$0xff]
        %v3146 = vld [vmem:[%s3099 + $0x170] sm:$0xff]
        %v3147 = vld [vmem:[%s3099 + $0x178] sm:$0xff]
        %v3148 = vld [vmem:[%s3099 + $0x180] sm:$0xff]
        %v3149 = vld [vmem:[%s3099 + $0x188] sm:$0xff]
        %v3150 = vld [vmem:[%s3099 + $0x190] sm:$0xff]
        %v3151 = vld [vmem:[%s3099 + $0x198] sm:$0xff]
        %v3152 = vld [vmem:[%s3099 + $0x1a0] sm:$0xff]
        %v3153 = vld [vmem:[%s3099 + $0x1a8] sm:$0xff]
        %v3154 = vld [vmem:[%s3099 + $0x1b0] sm:$0xff]
        %v3155 = vld [vmem:[%s3099 + $0x1b8] sm:$0xff]
        %v3156 = vld [vmem:[%s3099 + $0x1c0] sm:$0xff]
        %v3157 = vld [vmem:[%s3099 + $0x1c8] sm:$0xff]
        %v3158 = vld [vmem:[%s3099 + $0x1d0] sm:$0xff]
        %v3159 = vld [vmem:[%s3099 + $0x1d8] sm:$0xff]
        %v3160 = vld [vmem:[%s3099 + $0x1e0] sm:$0xff]
        %v3161 = vld [vmem:[%s3099 + $0x1e8] sm:$0xff]
        %v3162 = vld [vmem:[%s3099 + $0x1f0] sm:$0xff]
        %v3163 = vld [vmem:[%s3099 + $0x1f8] sm:$0xff]
        %v3164 = vld [vmem:[%s3099 + $0x200] sm:$0xff]
        %v3165 = vld [vmem:[%s3099 + $0x208] sm:$0xff]
        %v3166 = vld [vmem:[%s3099 + $0x210] sm:$0xff]
        %v3167 = vld [vmem:[%s3099 + $0x218] sm:$0xff]
        %v3168 = vld [vmem:[%s3099 + $0x220] sm:$0xff]
        %v3169 = vld [vmem:[%s3099 + $0x228] sm:$0xff]
        %v3170 = vld [vmem:[%s3099 + $0x230] sm:$0xff]
        %v3171 = vld [vmem:[%s3099 + $0x238] sm:$0xff]
        %v3172 = vld [vmem:[%s3099 + $0x240] sm:$0xff]
        %v3173 = vld [vmem:[%s3099 + $0x248] sm:$0xff]
        %v3174 = vld [vmem:[%s3099 + $0x250] sm:$0xff]
        %v3175 = vld [vmem:[%s3099 + $0x258] sm:$0xff]
        %v3176 = vld [vmem:[%s3099 + $0x260] sm:$0xff]
        %v3177 = vld [vmem:[%s3099 + $0x268] sm:$0xff]
        %v3178 = vld [vmem:[%s3099 + $0x270] sm:$0xff]
        %v3179 = vld [vmem:[%s3099 + $0x278] sm:$0xff]
        %v3180 = vld [vmem:[%s3099 + $0x280] sm:$0xff]
        %v3181 = vld [vmem:[%s3099 + $0x288] sm:$0xff]
        %v3182 = vld [vmem:[%s3099 + $0x290] sm:$0xff]
        %v3183 = vld [vmem:[%s3099 + $0x298] sm:$0xff]
        %v3184 = vld [vmem:[%s3099 + $0x2a0] sm:$0xff]
        %v3185 = vld [vmem:[%s3099 + $0x2a8] sm:$0xff]
        %v3186 = vld [vmem:[%s3099 + $0x2b0] sm:$0xff]
        %v3187 = vld [vmem:[%s3099 + $0x2b8] sm:$0xff]
        %v3188 = vld [vmem:[%s3099 + $0x2c0] sm:$0xff]
        %v3189 = vld [vmem:[%s3099 + $0x2c8] sm:$0xff]
        %v3190 = vld [vmem:[%s3099 + $0x2d0] sm:$0xff]
        %v3191 = vld [vmem:[%s3099 + $0x2d8] sm:$0xff]
        %v3192 = vld [vmem:[%s3099 + $0x2e0] sm:$0xff]
        %v3193 = vld [vmem:[%s3099 + $0x2e8] sm:$0xff]
        %v3194 = vld [vmem:[%s3099 + $0x2f0] sm:$0xff]
        %v3195 = vld [vmem:[%s3099 + $0x2f8] sm:$0xff]
        %3196 = vmatprep.subr.mxu0 0.0
        %3197 = vmatpush1.msra.mxu0 %v3100
        %3198 = vmatprep.subr.mxu0 0.0
        %3199 = vmatpush1.msra.mxu0 %v3101
        %3200 = vmatprep.subr.mxu0 0.0
        %3201 = vmatpush1.msra.mxu0 %v3102
        %3202 = vmatprep.subr.mxu0 0.0
        %3203 = vmatpush1.msra.mxu0 %v3103
        %3204 = vmatprep.subr.mxu0 0.0
        %3205 = vmatpush1.msra.mxu0 %v3104
        %3206 = vmatprep.subr.mxu0 0.0
        %3207 = vmatpush1.msra.mxu0 %v3105
        %3208 = vmatprep.subr.mxu0 0.0
        %3209 = vmatpush1.msra.mxu0 %v3106
        %3210 = vmatprep.subr.mxu0 0.0
        %3211 = vmatpush1.msra.mxu0 %v3107
        %3212 = vmatprep.subr.mxu0 0.0
        %3213 = vmatpush1.msra.mxu0 %v3108
        %3214 = vmatprep.subr.mxu0 0.0
        %3215 = vmatpush1.msra.mxu0 %v3109
        %3216 = vmatprep.subr.mxu0 0.0
        %3217 = vmatpush1.msra.mxu0 %v3110
        %3218 = vmatprep.subr.mxu0 0.0
        %3219 = vmatpush1.msra.mxu0 %v3111
        %3220 = vmatprep.subr.mxu0 0.0
        %3221 = vmatpush1.msra.mxu0 %v3112
        %3222 = vmatprep.subr.mxu0 0.0
        %3223 = vmatpush1.msra.mxu0 %v3113
        %3224 = vmatprep.subr.mxu0 0.0
        %3225 = vmatpush1.msra.mxu0 %v3114
        %3226 = vmatprep.subr.mxu0 0.0
        %3227 = vmatpush1.msra.mxu0 %v3115
        %3228 = vmatprep.subr.mxu0 0.0
        %3229 = vmatpush1.msra.mxu0 %v3116
        %3230 = vmatprep.subr.mxu0 0.0
        %3231 = vmatpush1.msra.mxu0 %v3117
        %3232 = vmatprep.subr.mxu0 0.0
        %3233 = vmatpush1.msra.mxu0 %v3118
        %3234 = vmatprep.subr.mxu0 0.0
        %3235 = vmatpush1.msra.mxu0 %v3119
        %3236 = vmatprep.subr.mxu0 0.0
        %3237 = vmatpush1.msra.mxu0 %v3120
        %3238 = vmatprep.subr.mxu0 0.0
        %3239 = vmatpush1.msra.mxu0 %v3121
        %3240 = vmatprep.subr.mxu0 0.0
        %3241 = vmatpush1.msra.mxu0 %v3122
        %3242 = vmatprep.subr.mxu0 0.0
        %3243 = vmatpush1.msra.mxu0 %v3123
        %3244 = vmatprep.subr.mxu0 0.0
        %3245 = vmatpush1.msra.mxu0 %v3124
        %3246 = vmatprep.subr.mxu0 0.0
        %3247 = vmatpush1.msra.mxu0 %v3125
        %3248 = vmatprep.subr.mxu0 0.0
        %3249 = vmatpush1.msra.mxu0 %v3126
        %3250 = vmatprep.subr.mxu0 0.0
        %3251 = vmatpush1.msra.mxu0 %v3127
        %3252 = vmatprep.subr.mxu0 0.0
        %3253 = vmatpush1.msra.mxu0 %v3128
        %3254 = vmatprep.subr.mxu0 0.0
        %3255 = vmatpush1.msra.mxu0 %v3129
        %3256 = vmatprep.subr.mxu0 0.0
        %3257 = vmatpush1.msra.mxu0 %v3130
        %3258 = vmatprep.subr.mxu0 0.0
        %3259 = vmatpush1.msra.mxu0 %v3131
        %3260 = vmatprep.mubr.f32.mxu0 %v3052
        %3261 = vmatmul.mubr.f32.gmra.mrb[0].mxu0 %v3051
        %v3262 = vpop.f32.mrb[0].mxu0
        %v3263 = vadd.f32 0.0, %v3262
        %v3264 = vpop.f32.mrb[0].mxu0
        %3265 = vmatprep.mubr.f32.mxu0 %v3058
        %3266 = vmatmul.mubr.f32.gmra.mrb[0].mxu0 %v3057
        %v3267 = vpop.f32.mrb[0].mxu0
        %v3268 = vadd.f32 0.0, %v3267
        %v3269 = vpop.f32.mrb[0].mxu0
        %3270 = vmatprep.mubr.f32.mxu0 %v3064
        %3271 = vmatmul.mubr.f32.gmra.mrb[0].mxu0 %v3063
        %v3272 = vpop.f32.mrb[0].mxu0
        %v3273 = vadd.f32 0.0, %v3272
        %v3274 = vpop.f32.mrb[0].mxu0
        %3275 = vmatprep.mubr.f32.mxu0 %v3070
        %3276 = vmatmul.mubr.f32.gmra.mrb[0].mxu0 %v3069
        %v3277 = vpop.f32.mrb[0].mxu0
        %v3278 = vadd.f32 0.0, %v3277
        %v3279 = vpop.f32.mrb[0].mxu0
        %3280 = vmatprep.mubr.f32.mxu0 %v3076
        %3281 = vmatmul.mubr.f32.gmra.mrb[0].mxu0 %v3075
        %v3282 = vpop.f32.mrb[0].mxu0
        %v3283 = vadd.f32 0.0, %v3282
        %v3284 = vpop.f32.mrb[0].mxu0
        %3285 = vmatprep.mubr.f32.mxu0 %v3082
        %3286 = vmatmul.mubr.f32.gmra.mrb[0].mxu0 %v3081
        %v3287 = vpop.f32.mrb[0].mxu0
        %v3288 = vadd.f32 0.0, %v3287
        %v3289 = vpop.f32.mrb[0].mxu0
        %3290 = vmatprep.mubr.f32.mxu0 %v3088
        %3291 = vmatmul.mubr.f32.gmra.mrb[0].mxu0 %v3087
        %v3292 = vpop.f32.mrb[0].mxu0
        %v3293 = vadd.f32 0.0, %v3292
        %v3294 = vpop.f32.mrb[0].mxu0
        %3295 = vmatprep.mubr.f32.mxu0 %v3094
        %3296 = vmatmul.mubr.f32.gmra.mrb[0].mxu0 %v3093
        %v3297 = vpop.f32.mrb[0].mxu0
        %v3298 = vadd.f32 0.0, %v3297
        %v3299 = vpop.f32.mrb[0].mxu0
        %3300 = vdwg.mxu0
        %3301 = vmatprep.subr.mxu0 0.0
        %3302 = vmatpush1.msra.mxu0 %v3132
        %3303 = vmatprep.subr.mxu0 0.0
        %3304 = vmatpush1.msra.mxu0 %v3133
        %3305 = vmatprep.subr.mxu0 0.0
        %3306 = vmatpush1.msra.mxu0 %v3134
        %3307 = vmatprep.subr.mxu0 0.0
        %3308 = vmatpush1.msra.mxu0 %v3135
        %3309 = vmatprep.subr.mxu0 0.0
        %3310 = vmatpush1.msra.mxu0 %v3136
        %3311 = vmatprep.subr.mxu0 0.0
        %3312 = vmatpush1.msra.mxu0 %v3137
        %3313 = vmatprep.subr.mxu0 0.0
        %3314 = vmatpush1.msra.mxu0 %v3138
        %3315 = vmatprep.subr.mxu0 0.0
        %3316 = vmatpush1.msra.mxu0 %v3139
        %3317 = vmatprep.subr.mxu0 0.0
        %3318 = vmatpush1.msra.mxu0 %v3140
        %3319 = vmatprep.subr.mxu0 0.0
        %3320 = vmatpush1.msra.mxu0 %v3141
        %3321 = vmatprep.subr.mxu0 0.0
        %3322 = vmatpush1.msra.mxu0 %v3142
        %3323 = vmatprep.subr.mxu0 0.0
        %3324 = vmatpush1.msra.mxu0 %v3143
        %3325 = vmatprep.subr.mxu0 0.0
        %3326 = vmatpush1.msra.mxu0 %v3144
        %3327 = vmatprep.subr.mxu0 0.0
        %3328 = vmatpush1.msra.mxu0 %v3145
        %3329 = vmatprep.subr.mxu0 0.0
        %3330 = vmatpush1.msra.mxu0 %v3146
        %3331 = vmatprep.subr.mxu0 0.0
        %3332 = vmatpush1.msra.mxu0 %v3147
        %3333 = vmatprep.subr.mxu0 0.0
        %3334 = vmatpush1.msra.mxu0 %v3148
        %3335 = vmatprep.subr.mxu0 0.0
        %3336 = vmatpush1.msra.mxu0 %v3149
        %3337 = vmatprep.subr.mxu0 0.0
        %3338 = vmatpush1.msra.mxu0 %v3150
        %3339 = vmatprep.subr.mxu0 0.0
        %3340 = vmatpush1.msra.mxu0 %v3151
        %3341 = vmatprep.subr.mxu0 0.0
        %3342 = vmatpush1.msra.mxu0 %v3152
        %3343 = vmatprep.subr.mxu0 0.0
        %3344 = vmatpush1.msra.mxu0 %v3153
        %3345 = vmatprep.subr.mxu0 0.0
        %3346 = vmatpush1.msra.mxu0 %v3154
        %3347 = vmatprep.subr.mxu0 0.0
        %3348 = vmatpush1.msra.mxu0 %v3155
        %3349 = vmatprep.subr.mxu0 0.0
        %3350 = vmatpush1.msra.mxu0 %v3156
        %3351 = vmatprep.subr.mxu0 0.0
        %3352 = vmatpush1.msra.mxu0 %v3157
        %3353 = vmatprep.subr.mxu0 0.0
        %3354 = vmatpush1.msra.mxu0 %v3158
        %3355 = vmatprep.subr.mxu0 0.0
        %3356 = vmatpush1.msra.mxu0 %v3159
        %3357 = vmatprep.subr.mxu0 0.0
        %3358 = vmatpush1.msra.mxu0 %v3160
        %3359 = vmatprep.subr.mxu0 0.0
        %3360 = vmatpush1.msra.mxu0 %v3161
        %3361 = vmatprep.subr.mxu0 0.0
        %3362 = vmatpush1.msra.mxu0 %v3162
        %3363 = vmatprep.subr.mxu0 0.0
        %3364 = vmatpush1.msra.mxu0 %v3163
        %3365 = vmatprep.mubr.f32.mxu0 %v3054
        %3366 = vmatmul.mubr.f32.gmra.mrb[0].mxu0 %v3053
        %v3367 = vpop.f32.mrb[0].mxu0
        %v3368 = vadd.f32 %v3263, %v3367
        %v3369 = vpop.f32.mrb[0].mxu0
        %3370 = vmatprep.mubr.f32.mxu0 %v3060
        %3371 = vmatmul.mubr.f32.gmra.mrb[0].mxu0 %v3059
        %v3372 = vpop.f32.mrb[0].mxu0
        %v3373 = vadd.f32 %v3268, %v3372
        %v3374 = vpop.f32.mrb[0].mxu0
        %3375 = vmatprep.mubr.f32.mxu0 %v3066
        %3376 = vmatmul.mubr.f32.gmra.mrb[0].mxu0 %v3065
        %v3377 = vpop.f32.mrb[0].mxu0
        %v3378 = vadd.f32 %v3273, %v3377
        %v3379 = vpop.f32.mrb[0].mxu0
        %3380 = vmatprep.mubr.f32.mxu0 %v3072
        %3381 = vmatmul.mubr.f32.gmra.mrb[0].mxu0 %v3071
        %v3382 = vpop.f32.mrb[0].mxu0
        %v3383 = vadd.f32 %v3278, %v3382
        %v3384 = vpop.f32.mrb[0].mxu0
        %3385 = vmatprep.mubr.f32.mxu0 %v3078
        %3386 = vmatmul.mubr.f32.gmra.mrb[0].mxu0 %v3077
        %v3387 = vpop.f32.mrb[0].mxu0
        %v3388 = vadd.f32 %v3283, %v3387
        %v3389 = vpop.f32.mrb[0].mxu0
        %3390 = vmatprep.mubr.f32.mxu0 %v3084
        %3391 = vmatmul.mubr.f32.gmra.mrb[0].mxu0 %v3083
        %v3392 = vpop.f32.mrb[0].mxu0
        %v3393 = vadd.f32 %v3288, %v3392
        %v3394 = vpop.f32.mrb[0].mxu0
        %3395 = vmatprep.mubr.f32.mxu0 %v3090
        %3396 = vmatmul.mubr.f32.gmra.mrb[0].mxu0 %v3089
        %v3397 = vpop.f32.mrb[0].mxu0
        %v3398 = vadd.f32 %v3293, %v3397
        %v3399 = vpop.f32.mrb[0].mxu0
        %3400 = vmatprep.mubr.f32.mxu0 %v3096
        %3401 = vmatmul.mubr.f32.gmra.mrb[0].mxu0 %v3095
        %v3402 = vpop.f32.mrb[0].mxu0
        %v3403 = vadd.f32 %v3298, %v3402
        %v3404 = vpop.f32.mrb[0].mxu0
        %3405 = vdwg.mxu0
        %3406 = vmatprep.subr.mxu0 0.0
        %3407 = vmatpush1.msra.mxu0 %v3164
        %3408 = vmatprep.subr.mxu0 0.0
        %3409 = vmatpush1.msra.mxu0 %v3165
        %3410 = vmatprep.subr.mxu0 0.0
        %3411 = vmatpush1.msra.mxu0 %v3166
        %3412 = vmatprep.subr.mxu0 0.0
        %3413 = vmatpush1.msra.mxu0 %v3167
        %3414 = vmatprep.subr.mxu0 0.0
        %3415 = vmatpush1.msra.mxu0 %v3168
        %3416 = vmatprep.subr.mxu0 0.0
        %3417 = vmatpush1.msra.mxu0 %v3169
        %3418 = vmatprep.subr.mxu0 0.0
        %3419 = vmatpush1.msra.mxu0 %v3170
        %3420 = vmatprep.subr.mxu0 0.0
        %3421 = vmatpush1.msra.mxu0 %v3171
        %3422 = vmatprep.subr.mxu0 0.0
        %3423 = vmatpush1.msra.mxu0 %v3172
        %3424 = vmatprep.subr.mxu0 0.0
        %3425 = vmatpush1.msra.mxu0 %v3173
        %3426 = vmatprep.subr.mxu0 0.0
        %3427 = vmatpush1.msra.mxu0 %v3174
        %3428 = vmatprep.subr.mxu0 0.0
        %3429 = vmatpush1.msra.mxu0 %v3175
        %3430 = vmatprep.subr.mxu0 0.0
        %3431 = vmatpush1.msra.mxu0 %v3176
        %3432 = vmatprep.subr.mxu0 0.0
        %3433 = vmatpush1.msra.mxu0 %v3177
        %3434 = vmatprep.subr.mxu0 0.0
        %3435 = vmatpush1.msra.mxu0 %v3178
        %3436 = vmatprep.subr.mxu0 0.0
        %3437 = vmatpush1.msra.mxu0 %v3179
        %3438 = vmatprep.subr.mxu0 0.0
        %3439 = vmatpush1.msra.mxu0 %v3180
        %3440 = vmatprep.subr.mxu0 0.0
        %3441 = vmatpush1.msra.mxu0 %v3181
        %3442 = vmatprep.subr.mxu0 0.0
        %3443 = vmatpush1.msra.mxu0 %v3182
        %3444 = vmatprep.subr.mxu0 0.0
        %3445 = vmatpush1.msra.mxu0 %v3183
        %3446 = vmatprep.subr.mxu0 0.0
        %3447 = vmatpush1.msra.mxu0 %v3184
        %3448 = vmatprep.subr.mxu0 0.0
        %3449 = vmatpush1.msra.mxu0 %v3185
        %3450 = vmatprep.subr.mxu0 0.0
        %3451 = vmatpush1.msra.mxu0 %v3186
        %3452 = vmatprep.subr.mxu0 0.0
        %3453 = vmatpush1.msra.mxu0 %v3187
        %3454 = vmatprep.subr.mxu0 0.0
        %3455 = vmatpush1.msra.mxu0 %v3188
        %3456 = vmatprep.subr.mxu0 0.0
        %3457 = vmatpush1.msra.mxu0 %v3189
        %3458 = vmatprep.subr.mxu0 0.0
        %3459 = vmatpush1.msra.mxu0 %v3190
        %3460 = vmatprep.subr.mxu0 0.0
        %3461 = vmatpush1.msra.mxu0 %v3191
        %3462 = vmatprep.subr.mxu0 0.0
        %3463 = vmatpush1.msra.mxu0 %v3192
        %3464 = vmatprep.subr.mxu0 0.0
        %3465 = vmatpush1.msra.mxu0 %v3193
        %3466 = vmatprep.subr.mxu0 0.0
        %3467 = vmatpush1.msra.mxu0 %v3194
        %3468 = vmatprep.subr.mxu0 0.0
        %3469 = vmatpush1.msra.mxu0 %v3195
        %3470 = vmatprep.mubr.f32.mxu0 %v3056
        %3471 = vmatmul.mubr.f32.gmra.mrb[0].mxu0 %v3055
        %v3472 = vpop.f32.mrb[0].mxu0
        %v3473 = vadd.f32 %v3368, %v3472
        %v3474 = vpop.f32.mrb[0].mxu0
        %3475 = vmatprep.mubr.f32.mxu0 %v3062
        %3476 = vmatmul.mubr.f32.gmra.mrb[0].mxu0 %v3061
        %v3477 = vpop.f32.mrb[0].mxu0
        %v3478 = vadd.f32 %v3373, %v3477
        %v3479 = vpop.f32.mrb[0].mxu0
        %3480 = vmatprep.mubr.f32.mxu0 %v3068
        %3481 = vmatmul.mubr.f32.gmra.mrb[0].mxu0 %v3067
        %v3482 = vpop.f32.mrb[0].mxu0
        %v3483 = vadd.f32 %v3378, %v3482
        %v3484 = vpop.f32.mrb[0].mxu0
        %3485 = vmatprep.mubr.f32.mxu0 %v3074
        %3486 = vmatmul.mubr.f32.gmra.mrb[0].mxu0 %v3073
        %v3487 = vpop.f32.mrb[0].mxu0
        %v3488 = vadd.f32 %v3383, %v3487
        %v3489 = vpop.f32.mrb[0].mxu0
        %3490 = vmatprep.mubr.f32.mxu0 %v3080
        %3491 = vmatmul.mubr.f32.gmra.mrb[0].mxu0 %v3079
        %v3492 = vpop.f32.mrb[0].mxu0
        %v3493 = vadd.f32 %v3388, %v3492
        %v3494 = vpop.f32.mrb[0].mxu0
        %3495 = vmatprep.mubr.f32.mxu0 %v3086
        %3496 = vmatmul.mubr.f32.gmra.mrb[0].mxu0 %v3085
        %v3497 = vpop.f32.mrb[0].mxu0
        %v3498 = vadd.f32 %v3393, %v3497
        %v3499 = vpop.f32.mrb[0].mxu0
        %3500 = vmatprep.mubr.f32.mxu0 %v3092
        %3501 = vmatmul.mubr.f32.gmra.mrb[0].mxu0 %v3091
        %v3502 = vpop.f32.mrb[0].mxu0
        %v3503 = vadd.f32 %v3398, %v3502
        %v3504 = vpop.f32.mrb[0].mxu0
        %3505 = vmatprep.mubr.f32.mxu0 %v3098
        %3506 = vmatmul.mubr.f32.gmra.mrb[0].mxu0 %v3097
        %v3507 = vpop.f32.mrb[0].mxu0
        %v3508 = vadd.f32 %v3403, %v3507
        %v3509 = vpop.f32.mrb[0].mxu0
        %3510 = vdwg.mxu0
        %v3511 = vadd.f32 %v2770, %v3473
        %v3512 = vadd.f32 %v2771, %v3478
        %v3513 = vadd.f32 %v2772, %v3483
        %v3514 = vadd.f32 %v2773, %v3488
        %v3515 = vadd.f32 %v2774, %v3493
        %v3516 = vadd.f32 %v2775, %v3498
        %v3517 = vadd.f32 %v2776, %v3503
        %v3518 = vadd.f32 %v2777, %v3508
        %v3519 = vld [vmem:[#allocation16] sm:$0x1]
        %v3521 = vlaneseq
        %v3522 = vshrl.u32 %v3521, 7
        %v3523 = vsub.s32 0, %v3522
        %v3524 = vrot.slane %v3519, %v3523
        %v3526 = vadd.f32 %v3511, %v3524
        %v3527 = vadd.f32 %v3512, %v3524
        %v3528 = vadd.f32 %v3513, %v3524
        %v3529 = vadd.f32 %v3514, %v3524
        %v3530 = vadd.f32 %v3515, %v3524
        %v3531 = vadd.f32 %v3516, %v3524
        %v3532 = vadd.f32 %v3517, %v3524
        %v3533 = vadd.f32 %v3518, %v3524
        %v3534 = vmax.f32 %v3526, 0.0
        %v3535 = vmax.f32 %v3527, 0.0
        %v3536 = vmax.f32 %v3528, 0.0
        %v3537 = vmax.f32 %v3529, 0.0
        %v3538 = vmax.f32 %v3530, 0.0
        %v3539 = vmax.f32 %v3531, 0.0
        %v3540 = vmax.f32 %v3532, 0.0
        %v3541 = vmax.f32 %v3533, 0.0
        %3542 = vst [vmem:[%s670] sm:$0xff] %v3534
        %3543 = vst [vmem:[%s670 + $0x8] sm:$0xff] %v3535
        %3544 = vst [vmem:[%s670 + $0x10] sm:$0xff] %v3536
        %3545 = vst [vmem:[%s670 + $0x18] sm:$0xff] %v3537
        %3546 = vst [vmem:[%s670 + $0x20] sm:$0xff] %v3538
        %3547 = vst [vmem:[%s670 + $0x28] sm:$0xff] %v3539
        %3548 = vst [vmem:[%s670 + $0x30] sm:$0xff] %v3540
        %3549 = vst [vmem:[%s670 + $0x38] sm:$0xff] %v3541
        %s3550 = sand.u32 %s338, 1
        %s3551 = scalar_lea.sflag [#allocation7], %s3550
        %s3552 = sand.u32 %s338, 1
        %s3553 = smul.addr %s3552, 64
        %s3554 = scalar_lea.vmem [#allocation17], %s3553
        // Predicated region
        $region97: #{tpu_custom_call.1} parent=59 // pred_check
          %p3555 = pneg %p348
        $region98: #{tpu_custom_call.1} parent=59 // pred_check_branch
          %3557 = sbr.rel (%p3555) target = $region100
        $region99: #{tpu_custom_call.1} parent=59 // pred_region
          %s3558 = smul.u32 4, %s37
          %s3560 = ssub.s32 1024, 1024
          %3561 = vsyncadd %s3551, %s3560
          %s3562 = smul.addr %s3558, 2
          %s3563 = smul.addr %s36, 32
          %s3564 = sadd.s32 %s3562, %s3563
          %s3565 = smul.addr %s3564, 128
          %s3566 = scalar_lea.hbm %s10, %s3565
          %s3567 = sshll.u32 %s3554, 4
          %s3568 = int_to_ptr.vmem [resolvable:$true] %s3567
          %3573 = dma.vmem_to_hbm [thread:$0]  %s3568, 1024, %s3566, %s3551, 128, 128, 8
        $region100: #{tpu_custom_call.1} parent=59 // pred_fallthru
          _
      $region60: #{tpu_custom_call.1} parent=5 // pred_fallthru
        _
      %p3574 = scmp.le.s32.totalorder 2, %s27
      // Predicated region
      $region101: #{tpu_custom_call.1} parent=5 // pred_check
        %p3575 = pneg %p3574
      $region102: #{tpu_custom_call.1} parent=5 // pred_check_branch
        %3577 = sbr.rel (%p3575) target = $region104
      $region103: #{tpu_custom_call.1} parent=5 // pred_region
        %s3578 = ssub.s32 %s27, 2
        // Predicated region
        $region105: #{tpu_custom_call.1} parent=103 // pred_check
          %p3579 = pneg %p354
        $region106: #{tpu_custom_call.1} parent=103 // pred_check_branch
          %3581 = sbr.rel (%p3579) target = $region108
        $region107: #{tpu_custom_call.1} parent=103 // pred_region
          %s3582 = sand.u32 %s339, 1
          %s3583 = scalar_lea.sflag [#allocation7], %s3582
          %s3584 = sand.u32 %s339, 1
          %s3585 = smul.addr %s3584, 64
          %s3586 = scalar_lea.vmem [#allocation17], %s3585
          %3587 = dma.done %s3583, 1024
        $region108: #{tpu_custom_call.1} parent=103 // pred_fallthru
          _
      $region104: #{tpu_custom_call.1} parent=5 // pred_fallthru
        _
    $region6: #{tpu_custom_call.1} parent=1 // loop_footer
      %s31 = sadd.s32 1, %s27
    $region7: #{tpu_custom_call.1} parent=1 // loop_footer_branch
      %26 = sbr.rel target = $region3
    $region8: #{tpu_custom_call.1} parent=1 // loop_exit
      _
    %3588 = vsyncpa [#allocation6], 1
    %s3589 = scalar_lea.sflag [#allocation6], 1
    %3590 = vsyncpa %s3589, 1
    %3591 = vsyncpa [#allocation9], 1
    %s3592 = scalar_lea.sflag [#allocation9], 1
    %3593 = vsyncpa %s3592, 1
    %3594 = vsyncpa [#allocation12], 1
    %3595 = vsyncpa [#allocation15], 1
    %3596 = vsyncpa [#allocation7], 1
    %s3597 = scalar_lea.sflag [#allocation7], 1
    %3598 = vsyncpa %s3597, 1

</llo_original>
